<compile_context>
chip_gen: v7x
topology: tpu7x:2x2x1
jax: 0.10.0
libtpu: 0.0.40
codegen_flags: <defaults>
</compile_context>

<pallas_src>
import functools

import jax
import jax.numpy as jnp
from jax.experimental import pallas as pl
from jax.experimental.pallas import tpu as pltpu  # noqa: F401 (no grid/scratch needed in fused kernel)

# ----- model hyper-params (stand-ins for params.BASELINE_*) -----
INPUT_SIZE = 30
HIDDEN_SIZE = 32          # params.BASELINE_HIDDEN_SIZE
NUM_LAYERS = 2            # params.BASELINE_HIDDEN_LAYERS

BATCH = 2
SEQ_LEN = 8


# ---------------------------------------------------------------------------
# Fused kernel: multi-layer LSTM (fully unrolled over time) + fc head.
#
# Argument layout (all VMEM refs):
#   x_ref                               (B, T, D)   batch-first input
#   [w_ihT_l, w_hhT_l, b_l] * L         (Din,4H), (H,4H), (1,4H) per layer
#   fc_w_ref, fc_b_ref                  (1, H), (1, 1)
#   out_ref                             (B, 1)
# ---------------------------------------------------------------------------
def _fused_lstm_kernel(x_ref, *rest, num_layers, seq_len, hidden_size):
    H = hidden_size
    T = seq_len
    layer_refs = rest[: 3 * num_layers]
    fc_w_ref, fc_b_ref, out_ref = rest[3 * num_layers:]
    B = out_ref.shape[0]

    # Layer-0 inputs: static time slices of the batch-first input block.
    seq = [x_ref[:, t, :] for t in range(T)]          # T x (B, D_in)

    for layer in range(num_layers):
        w_ihT = layer_refs[3 * layer][...]            # (D_in, 4H)
        w_hhT = layer_refs[3 * layer + 1][...]        # (H, 4H)
        bias = layer_refs[3 * layer + 2][...]         # (1, 4H) broadcasts over B

        h = jnp.zeros((B, H), jnp.float32)
        c = jnp.zeros((B, H), jnp.float32)
        new_seq = []
        for t in range(T):                            # fully unrolled recurrence
            gates = (
                jnp.dot(seq[t], w_ihT, preferred_element_type=jnp.float32)
                + jnp.dot(h, w_hhT, preferred_element_type=jnp.float32)
                + bias
            )                                         # (B, 4H)
            # Full-width EUP passes on the packed 4H=128 gate tile, then
            # static 32-lane slices (cheaper than 4 narrow transcendentals).
            sig = jax.nn.sigmoid(gates)
            th = jnp.tanh(gates)
            i_g = sig[:, 0 * H:1 * H]
            f_g = sig[:, 1 * H:2 * H]
            g_g = th[:, 2 * H:3 * H]
            o_g = sig[:, 3 * H:4 * H]

            c = f_g * c + i_g * g_g
            h = o_g * jnp.tanh(c)
            new_seq.append(h)
        seq = new_seq                                 # feeds the next layer

    # fc head on the last hidden state: VPU multiply + lane reduce (N=1, so no
    # MXU matmul / no (H,1) operand with 1/128 lane utilization).
    h_last = seq[-1]                                  # (B, H)
    out_ref[...] = (
        jnp.sum(h_last * fc_w_ref[...], axis=-1, keepdims=True) + fc_b_ref[...]
    )


def lstm_model_forward(x_btd, lstm_params, fc_w, fc_b):
    """x_btd: (B, T, D) batch-first, as in the PyTorch module. Returns (B, 1)."""
    B, T, D = x_btd.shape
    H = fc_w.shape[1]
    num_layers = len(lstm_params)

    inputs = [x_btd]
    in_specs = [pl.BlockSpec((B, T, D), lambda: (0, 0, 0))]
    for (w_ih, w_hh, b_ih, b_hh) in lstm_params:
        d_in = w_ih.shape[1]
        # Pre-transpose weights so the kernel does x @ W^T as x @ (W.T);
        # fold the two biases together once on the host side.
        inputs += [w_ih.T, w_hh.T, (b_ih + b_hh).reshape(1, 4 * H)]
        in_specs += [
            pl.BlockSpec((d_in, 4 * H), lambda: (0, 0)),
            pl.BlockSpec((H, 4 * H), lambda: (0, 0)),
            pl.BlockSpec((1, 4 * H), lambda: (0, 0)),
        ]
    inputs += [fc_w, fc_b.reshape(1, 1)]
    in_specs += [
        pl.BlockSpec((1, H), lambda: (0, 0)),
        pl.BlockSpec((1, 1), lambda: (0, 0)),
    ]

    kernel = functools.partial(
        _fused_lstm_kernel, num_layers=num_layers, seq_len=T, hidden_size=H)

    # Single kernel invocation (no grid): everything resident in VMEM.
    return pl.pallas_call(
        kernel,
        out_shape=jax.ShapeDtypeStruct((B, 1), jnp.float32),
        in_specs=in_specs,
        out_specs=pl.BlockSpec((B, 1), lambda: (0, 0)),
    )(*inputs)


# ---------------------------------------------------------------------------
# Pure-JAX reference (for correctness check; no torch)
# ---------------------------------------------------------------------------
def lstm_model_reference(x_btd, lstm_params, fc_w, fc_b):
    B = x_btd.shape[0]
    seq = jnp.transpose(x_btd, (1, 0, 2))
    for (w_ih, w_hh, b_ih, b_hh) in lstm_params:
        H = w_hh.shape[1]

        def step(carry, x_t):
            h, c = carry
            gates = x_t @ w_ih.T + h @ w_hh.T + b_ih + b_hh
            i = jax.nn.sigmoid(gates[:, 0 * H:1 * H])
            f = jax.nn.sigmoid(gates[:, 1 * H:2 * H])
            g = jnp.tanh(gates[:, 2 * H:3 * H])
            o = jax.nn.sigmoid(gates[:, 3 * H:4 * H])
            c = f * c + i * g
            h = o * jnp.tanh(c)
            return (h, c), h

        init = (jnp.zeros((B, H), jnp.float32), jnp.zeros((B, H), jnp.float32))
        _, seq = jax.lax.scan(step, init, seq)
    return seq[-1] @ fc_w.T + fc_b


# ---------------------------------------------------------------------------
def init_params(key):
    """Deterministic init mimicking PyTorch's U(-1/sqrt(H), 1/sqrt(H))."""
    H, D = HIDDEN_SIZE, INPUT_SIZE
    bound = 1.0 / (H ** 0.5)
    lstm_params = []
    for layer in range(NUM_LAYERS):
        d_in = D if layer == 0 else H
        key, k1, k2, k3, k4 = jax.random.split(key, 5)
        w_ih = jax.random.uniform(k1, (4 * H, d_in), jnp.float32, -bound, bound)
        w_hh = jax.random.uniform(k2, (4 * H, H), jnp.float32, -bound, bound)
        b_ih = jax.random.uniform(k3, (4 * H,), jnp.float32, -bound, bound)
        b_hh = jax.random.uniform(k4, (4 * H,), jnp.float32, -bound, bound)
        lstm_params.append((w_ih, w_hh, b_ih, b_hh))
    key, k5, k6 = jax.random.split(key, 3)
    fc_w = jax.random.uniform(k5, (1, H), jnp.float32, -bound, bound)
    fc_b = jax.random.uniform(k6, (1,), jnp.float32, -bound, bound)
    return lstm_params, fc_w, fc_b


if __name__ == "__main__":
    key = jax.random.PRNGKey(0)
    key, kx = jax.random.split(key)
    x = jax.random.normal(kx, (BATCH, SEQ_LEN, INPUT_SIZE), jnp.float32)

    lstm_params, fc_w, fc_b = init_params(key)

    out = lstm_model_forward(x, lstm_params, fc_w, fc_b)
    out = jax.block_until_ready(out)

    ref = lstm_model_reference(x, lstm_params, fc_w, fc_b)
    assert out.shape == (BATCH, 1), out.shape
    assert jnp.allclose(out, ref, atol=1e-5, rtol=1e-5), (out, ref)

    print("KERNEL_OK")
</pallas_src>

<mosaic_0001>
module attributes {stable_mosaic.version = 11 : i64} {
  func.func @_fused_lstm_kernel(%arg0: memref<2x8x30xf32, #tpu.memory_space<vmem>>, %arg1: memref<30x128xf32, #tpu.memory_space<vmem>>, %arg2: memref<32x128xf32, #tpu.memory_space<vmem>>, %arg3: memref<1x128xf32, #tpu.memory_space<vmem>>, %arg4: memref<32x128xf32, #tpu.memory_space<vmem>>, %arg5: memref<32x128xf32, #tpu.memory_space<vmem>>, %arg6: memref<1x128xf32, #tpu.memory_space<vmem>>, %arg7: memref<1x32xf32, #tpu.memory_space<vmem>>, %arg8: memref<1x1xf32, #tpu.memory_space<vmem>>, %arg9: memref<2x1xf32, #tpu.memory_space<vmem>>) attributes {dimension_semantics = [], scalar_prefetch = 0 : i64, scratch_operands = 0 : i64, tpu.core_type = #tpu.core_type<tc>} {
    %c0 = arith.constant 0 : index
    %c0_0 = arith.constant 0 : index
    %c0_1 = arith.constant 0 : index
    %0 = vector.load %arg0[%c0, %c0_0, %c0_1] : memref<2x8x30xf32, #tpu.memory_space<vmem>>, vector<2x1x30xf32>
    %1 = vector.shape_cast %0 : vector<2x1x30xf32> to vector<2x30xf32>
    %c0_2 = arith.constant 0 : index
    %c1 = arith.constant 1 : index
    %c0_3 = arith.constant 0 : index
    %2 = vector.load %arg0[%c0_2, %c1, %c0_3] : memref<2x8x30xf32, #tpu.memory_space<vmem>>, vector<2x1x30xf32>
    %3 = vector.shape_cast %2 : vector<2x1x30xf32> to vector<2x30xf32>
    %c0_4 = arith.constant 0 : index
    %c2 = arith.constant 2 : index
    %c0_5 = arith.constant 0 : index
    %4 = vector.load %arg0[%c0_4, %c2, %c0_5] : memref<2x8x30xf32, #tpu.memory_space<vmem>>, vector<2x1x30xf32>
    %5 = vector.shape_cast %4 : vector<2x1x30xf32> to vector<2x30xf32>
    %c0_6 = arith.constant 0 : index
    %c3 = arith.constant 3 : index
    %c0_7 = arith.constant 0 : index
    %6 = vector.load %arg0[%c0_6, %c3, %c0_7] : memref<2x8x30xf32, #tpu.memory_space<vmem>>, vector<2x1x30xf32>
    %7 = vector.shape_cast %6 : vector<2x1x30xf32> to vector<2x30xf32>
    %c0_8 = arith.constant 0 : index
    %c4 = arith.constant 4 : index
    %c0_9 = arith.constant 0 : index
    %8 = vector.load %arg0[%c0_8, %c4, %c0_9] : memref<2x8x30xf32, #tpu.memory_space<vmem>>, vector<2x1x30xf32>
    %9 = vector.shape_cast %8 : vector<2x1x30xf32> to vector<2x30xf32>
    %c0_10 = arith.constant 0 : index
    %c5 = arith.constant 5 : index
    %c0_11 = arith.constant 0 : index
    %10 = vector.load %arg0[%c0_10, %c5, %c0_11] : memref<2x8x30xf32, #tpu.memory_space<vmem>>, vector<2x1x30xf32>
    %11 = vector.shape_cast %10 : vector<2x1x30xf32> to vector<2x30xf32>
    %c0_12 = arith.constant 0 : index
    %c6 = arith.constant 6 : index
    %c0_13 = arith.constant 0 : index
    %12 = vector.load %arg0[%c0_12, %c6, %c0_13] : memref<2x8x30xf32, #tpu.memory_space<vmem>>, vector<2x1x30xf32>
    %13 = vector.shape_cast %12 : vector<2x1x30xf32> to vector<2x30xf32>
    %c0_14 = arith.constant 0 : index
    %c7 = arith.constant 7 : index
    %c0_15 = arith.constant 0 : index
    %14 = vector.load %arg0[%c0_14, %c7, %c0_15] : memref<2x8x30xf32, #tpu.memory_space<vmem>>, vector<2x1x30xf32>
    %15 = vector.shape_cast %14 : vector<2x1x30xf32> to vector<2x30xf32>
    %c0_16 = arith.constant 0 : index
    %c0_17 = arith.constant 0 : index
    %16 = vector.load %arg1[%c0_16, %c0_17] : memref<30x128xf32, #tpu.memory_space<vmem>>, vector<30x128xf32>
    %c0_18 = arith.constant 0 : index
    %c0_19 = arith.constant 0 : index
    %17 = vector.load %arg2[%c0_18, %c0_19] : memref<32x128xf32, #tpu.memory_space<vmem>>, vector<32x128xf32>
    %c0_20 = arith.constant 0 : index
    %c0_21 = arith.constant 0 : index
    %18 = vector.load %arg3[%c0_20, %c0_21] : memref<1x128xf32, #tpu.memory_space<vmem>>, vector<1x128xf32>
    %cst = arith.constant 0.000000e+00 : f32
    %19 = vector.broadcast %cst : f32 to vector<2x32xf32>
    %cst_22 = arith.constant 0.000000e+00 : f32
    %20 = vector.broadcast %cst_22 : f32 to vector<2x32xf32>
    %cst_23 = arith.constant dense<0.000000e+00> : vector<2x128xf32>
    %21 = tpu.matmul %1, %16, %cst_23 {dimension_numbers = #tpu.dot_dimension_numbers<[1], [0], [0], [1], [0, 0, 1, 1], [], []>} : vector<2x30xf32>, vector<30x128xf32>, vector<2x128xf32> -> vector<2x128xf32>
    %cst_24 = arith.constant dense<0.000000e+00> : vector<2x128xf32>
    %22 = tpu.matmul %19, %17, %cst_24 {dimension_numbers = #tpu.dot_dimension_numbers<[1], [0], [0], [1], [0, 0, 1, 1], [], []>} : vector<2x32xf32>, vector<32x128xf32>, vector<2x128xf32> -> vector<2x128xf32>
    %23 = arith.addf %21, %22 : vector<2x128xf32>
    %24 = vector.broadcast %18 : vector<1x128xf32> to vector<2x128xf32>
    %25 = arith.addf %23, %24 : vector<2x128xf32>
    %26 = arith.negf %25 : vector<2x128xf32>
    %27 = math.exp %26 : vector<2x128xf32>
    %cst_25 = arith.constant 1.000000e+00 : f32
    %28 = vector.broadcast %cst_25 : f32 to vector<2x128xf32>
    %29 = arith.addf %28, %27 : vector<2x128xf32>
    %30 = arith.divf %28, %29 : vector<2x128xf32>
    %31 = math.tanh %25 : vector<2x128xf32>
    %32 = vector.extract_strided_slice %30 {offsets = [0, 0], sizes = [2, 32], strides = [1, 1]} : vector<2x128xf32> to vector<2x32xf32>
    %33 = vector.extract_strided_slice %30 {offsets = [0, 32], sizes = [2, 32], strides = [1, 1]} : vector<2x128xf32> to vector<2x32xf32>
    %34 = vector.extract_strided_slice %31 {offsets = [0, 64], sizes = [2, 32], strides = [1, 1]} : vector<2x128xf32> to vector<2x32xf32>
    %35 = vector.extract_strided_slice %30 {offsets = [0, 96], sizes = [2, 32], strides = [1, 1]} : vector<2x128xf32> to vector<2x32xf32>
    %36 = arith.mulf %33, %20 : vector<2x32xf32>
    %37 = arith.mulf %32, %34 : vector<2x32xf32>
    %38 = arith.addf %36, %37 : vector<2x32xf32>
    %39 = math.tanh %38 : vector<2x32xf32>
    %40 = arith.mulf %35, %39 : vector<2x32xf32>
    %cst_26 = arith.constant dense<0.000000e+00> : vector<2x128xf32>
    %41 = tpu.matmul %3, %16, %cst_26 {dimension_numbers = #tpu.dot_dimension_numbers<[1], [0], [0], [1], [0, 0, 1, 1], [], []>} : vector<2x30xf32>, vector<30x128xf32>, vector<2x128xf32> -> vector<2x128xf32>
    %cst_27 = arith.constant dense<0.000000e+00> : vector<2x128xf32>
    %42 = tpu.matmul %40, %17, %cst_27 {dimension_numbers = #tpu.dot_dimension_numbers<[1], [0], [0], [1], [0, 0, 1, 1], [], []>} : vector<2x32xf32>, vector<32x128xf32>, vector<2x128xf32> -> vector<2x128xf32>
    %43 = arith.addf %41, %42 : vector<2x128xf32>
    %44 = vector.broadcast %18 : vector<1x128xf32> to vector<2x128xf32>
    %45 = arith.addf %43, %44 : vector<2x128xf32>
    %46 = arith.negf %45 : vector<2x128xf32>
    %47 = math.exp %46 : vector<2x128xf32>
    %cst_28 = arith.constant 1.000000e+00 : f32
    %48 = vector.broadcast %cst_28 : f32 to vector<2x128xf32>
    %49 = arith.addf %48, %47 : vector<2x128xf32>
    %50 = arith.divf %48, %49 : vector<2x128xf32>
    %51 = math.tanh %45 : vector<2x128xf32>
    %52 = vector.extract_strided_slice %50 {offsets = [0, 0], sizes = [2, 32], strides = [1, 1]} : vector<2x128xf32> to vector<2x32xf32>
    %53 = vector.extract_strided_slice %50 {offsets = [0, 32], sizes = [2, 32], strides = [1, 1]} : vector<2x128xf32> to vector<2x32xf32>
    %54 = vector.extract_strided_slice %51 {offsets = [0, 64], sizes = [2, 32], strides = [1, 1]} : vector<2x128xf32> to vector<2x32xf32>
    %55 = vector.extract_strided_slice %50 {offsets = [0, 96], sizes = [2, 32], strides = [1, 1]} : vector<2x128xf32> to vector<2x32xf32>
    %56 = arith.mulf %53, %38 : vector<2x32xf32>
    %57 = arith.mulf %52, %54 : vector<2x32xf32>
    %58 = arith.addf %56, %57 : vector<2x32xf32>
    %59 = math.tanh %58 : vector<2x32xf32>
    %60 = arith.mulf %55, %59 : vector<2x32xf32>
    %cst_29 = arith.constant dense<0.000000e+00> : vector<2x128xf32>
    %61 = tpu.matmul %5, %16, %cst_29 {dimension_numbers = #tpu.dot_dimension_numbers<[1], [0], [0], [1], [0, 0, 1, 1], [], []>} : vector<2x30xf32>, vector<30x128xf32>, vector<2x128xf32> -> vector<2x128xf32>
    %cst_30 = arith.constant dense<0.000000e+00> : vector<2x128xf32>
    %62 = tpu.matmul %60, %17, %cst_30 {dimension_numbers = #tpu.dot_dimension_numbers<[1], [0], [0], [1], [0, 0, 1, 1], [], []>} : vector<2x32xf32>, vector<32x128xf32>, vector<2x128xf32> -> vector<2x128xf32>
    %63 = arith.addf %61, %62 : vector<2x128xf32>
    %64 = vector.broadcast %18 : vector<1x128xf32> to vector<2x128xf32>
    %65 = arith.addf %63, %64 : vector<2x128xf32>
    %66 = arith.negf %65 : vector<2x128xf32>
    %67 = math.exp %66 : vector<2x128xf32>
    %cst_31 = arith.constant 1.000000e+00 : f32
    %68 = vector.broadcast %cst_31 : f32 to vector<2x128xf32>
    %69 = arith.addf %68, %67 : vector<2x128xf32>
    %70 = arith.divf %68, %69 : vector<2x128xf32>
    %71 = math.tanh %65 : vector<2x128xf32>
    %72 = vector.extract_strided_slice %70 {offsets = [0, 0], sizes = [2, 32], strides = [1, 1]} : vector<2x128xf32> to vector<2x32xf32>
    %73 = vector.extract_strided_slice %70 {offsets = [0, 32], sizes = [2, 32], strides = [1, 1]} : vector<2x128xf32> to vector<2x32xf32>
    %74 = vector.extract_strided_slice %71 {offsets = [0, 64], sizes = [2, 32], strides = [1, 1]} : vector<2x128xf32> to vector<2x32xf32>
    %75 = vector.extract_strided_slice %70 {offsets = [0, 96], sizes = [2, 32], strides = [1, 1]} : vector<2x128xf32> to vector<2x32xf32>
    %76 = arith.mulf %73, %58 : vector<2x32xf32>
    %77 = arith.mulf %72, %74 : vector<2x32xf32>
    %78 = arith.addf %76, %77 : vector<2x32xf32>
    %79 = math.tanh %78 : vector<2x32xf32>
    %80 = arith.mulf %75, %79 : vector<2x32xf32>
    %cst_32 = arith.constant dense<0.000000e+00> : vector<2x128xf32>
    %81 = tpu.matmul %7, %16, %cst_32 {dimension_numbers = #tpu.dot_dimension_numbers<[1], [0], [0], [1], [0, 0, 1, 1], [], []>} : vector<2x30xf32>, vector<30x128xf32>, vector<2x128xf32> -> vector<2x128xf32>
    %cst_33 = arith.constant dense<0.000000e+00> : vector<2x128xf32>
    %82 = tpu.matmul %80, %17, %cst_33 {dimension_numbers = #tpu.dot_dimension_numbers<[1], [0], [0], [1], [0, 0, 1, 1], [], []>} : vector<2x32xf32>, vector<32x128xf32>, vector<2x128xf32> -> vector<2x128xf32>
    %83 = arith.addf %81, %82 : vector<2x128xf32>
    %84 = vector.broadcast %18 : vector<1x128xf32> to vector<2x128xf32>
    %85 = arith.addf %83, %84 : vector<2x128xf32>
    %86 = arith.negf %85 : vector<2x128xf32>
    %87 = math.exp %86 : vector<2x128xf32>
    %cst_34 = arith.constant 1.000000e+00 : f32
    %88 = vector.broadcast %cst_34 : f32 to vector<2x128xf32>
    %89 = arith.addf %88, %87 : vector<2x128xf32>
    %90 = arith.divf %88, %89 : vector<2x128xf32>
    %91 = math.tanh %85 : vector<2x128xf32>
    %92 = vector.extract_strided_slice %90 {offsets = [0, 0], sizes = [2, 32], strides = [1, 1]} : vector<2x128xf32> to vector<2x32xf32>
    %93 = vector.extract_strided_slice %90 {offsets = [0, 32], sizes = [2, 32], strides = [1, 1]} : vector<2x128xf32> to vector<2x32xf32>
    %94 = vector.extract_strided_slice %91 {offsets = [0, 64], sizes = [2, 32], strides = [1, 1]} : vector<2x128xf32> to vector<2x32xf32>
    %95 = vector.extract_strided_slice %90 {offsets = [0, 96], sizes = [2, 32], strides = [1, 1]} : vector<2x128xf32> to vector<2x32xf32>
    %96 = arith.mulf %93, %78 : vector<2x32xf32>
    %97 = arith.mulf %92, %94 : vector<2x32xf32>
    %98 = arith.addf %96, %97 : vector<2x32xf32>
    %99 = math.tanh %98 : vector<2x32xf32>
    %100 = arith.mulf %95, %99 : vector<2x32xf32>
    %cst_35 = arith.constant dense<0.000000e+00> : vector<2x128xf32>
    %101 = tpu.matmul %9, %16, %cst_35 {dimension_numbers = #tpu.dot_dimension_numbers<[1], [0], [0], [1], [0, 0, 1, 1], [], []>} : vector<2x30xf32>, vector<30x128xf32>, vector<2x128xf32> -> vector<2x128xf32>
    %cst_36 = arith.constant dense<0.000000e+00> : vector<2x128xf32>
    %102 = tpu.matmul %100, %17, %cst_36 {dimension_numbers = #tpu.dot_dimension_numbers<[1], [0], [0], [1], [0, 0, 1, 1], [], []>} : vector<2x32xf32>, vector<32x128xf32>, vector<2x128xf32> -> vector<2x128xf32>
    %103 = arith.addf %101, %102 : vector<2x128xf32>
    %104 = vector.broadcast %18 : vector<1x128xf32> to vector<2x128xf32>
    %105 = arith.addf %103, %104 : vector<2x128xf32>
    %106 = arith.negf %105 : vector<2x128xf32>
    %107 = math.exp %106 : vector<2x128xf32>
    %cst_37 = arith.constant 1.000000e+00 : f32
    %108 = vector.broadcast %cst_37 : f32 to vector<2x128xf32>
    %109 = arith.addf %108, %107 : vector<2x128xf32>
    %110 = arith.divf %108, %109 : vector<2x128xf32>
    %111 = math.tanh %105 : vector<2x128xf32>
    %112 = vector.extract_strided_slice %110 {offsets = [0, 0], sizes = [2, 32], strides = [1, 1]} : vector<2x128xf32> to vector<2x32xf32>
    %113 = vector.extract_strided_slice %110 {offsets = [0, 32], sizes = [2, 32], strides = [1, 1]} : vector<2x128xf32> to vector<2x32xf32>
    %114 = vector.extract_strided_slice %111 {offsets = [0, 64], sizes = [2, 32], strides = [1, 1]} : vector<2x128xf32> to vector<2x32xf32>
    %115 = vector.extract_strided_slice %110 {offsets = [0, 96], sizes = [2, 32], strides = [1, 1]} : vector<2x128xf32> to vector<2x32xf32>
    %116 = arith.mulf %113, %98 : vector<2x32xf32>
    %117 = arith.mulf %112, %114 : vector<2x32xf32>
    %118 = arith.addf %116, %117 : vector<2x32xf32>
    %119 = math.tanh %118 : vector<2x32xf32>
    %120 = arith.mulf %115, %119 : vector<2x32xf32>
    %cst_38 = arith.constant dense<0.000000e+00> : vector<2x128xf32>
    %121 = tpu.matmul %11, %16, %cst_38 {dimension_numbers = #tpu.dot_dimension_numbers<[1], [0], [0], [1], [0, 0, 1, 1], [], []>} : vector<2x30xf32>, vector<30x128xf32>, vector<2x128xf32> -> vector<2x128xf32>
    %cst_39 = arith.constant dense<0.000000e+00> : vector<2x128xf32>
    %122 = tpu.matmul %120, %17, %cst_39 {dimension_numbers = #tpu.dot_dimension_numbers<[1], [0], [0], [1], [0, 0, 1, 1], [], []>} : vector<2x32xf32>, vector<32x128xf32>, vector<2x128xf32> -> vector<2x128xf32>
    %123 = arith.addf %121, %122 : vector<2x128xf32>
    %124 = vector.broadcast %18 : vector<1x128xf32> to vector<2x128xf32>
    %125 = arith.addf %123, %124 : vector<2x128xf32>
    %126 = arith.negf %125 : vector<2x128xf32>
    %127 = math.exp %126 : vector<2x128xf32>
    %cst_40 = arith.constant 1.000000e+00 : f32
    %128 = vector.broadcast %cst_40 : f32 to vector<2x128xf32>
    %129 = arith.addf %128, %127 : vector<2x128xf32>
    %130 = arith.divf %128, %129 : vector<2x128xf32>
    %131 = math.tanh %125 : vector<2x128xf32>
    %132 = vector.extract_strided_slice %130 {offsets = [0, 0], sizes = [2, 32], strides = [1, 1]} : vector<2x128xf32> to vector<2x32xf32>
    %133 = vector.extract_strided_slice %130 {offsets = [0, 32], sizes = [2, 32], strides = [1, 1]} : vector<2x128xf32> to vector<2x32xf32>
    %134 = vector.extract_strided_slice %131 {offsets = [0, 64], sizes = [2, 32], strides = [1, 1]} : vector<2x128xf32> to vector<2x32xf32>
    %135 = vector.extract_strided_slice %130 {offsets = [0, 96], sizes = [2, 32], strides = [1, 1]} : vector<2x128xf32> to vector<2x32xf32>
    %136 = arith.mulf %133, %118 : vector<2x32xf32>
    %137 = arith.mulf %132, %134 : vector<2x32xf32>
    %138 = arith.addf %136, %137 : vector<2x32xf32>
    %139 = math.tanh %138 : vector<2x32xf32>
    %140 = arith.mulf %135, %139 : vector<2x32xf32>
    %cst_41 = arith.constant dense<0.000000e+00> : vector<2x128xf32>
    %141 = tpu.matmul %13, %16, %cst_41 {dimension_numbers = #tpu.dot_dimension_numbers<[1], [0], [0], [1], [0, 0, 1, 1], [], []>} : vector<2x30xf32>, vector<30x128xf32>, vector<2x128xf32> -> vector<2x128xf32>
    %cst_42 = arith.constant dense<0.000000e+00> : vector<2x128xf32>
    %142 = tpu.matmul %140, %17, %cst_42 {dimension_numbers = #tpu.dot_dimension_numbers<[1], [0], [0], [1], [0, 0, 1, 1], [], []>} : vector<2x32xf32>, vector<32x128xf32>, vector<2x128xf32> -> vector<2x128xf32>
    %143 = arith.addf %141, %142 : vector<2x128xf32>
    %144 = vector.broadcast %18 : vector<1x128xf32> to vector<2x128xf32>
    %145 = arith.addf %143, %144 : vector<2x128xf32>
    %146 = arith.negf %145 : vector<2x128xf32>
    %147 = math.exp %146 : vector<2x128xf32>
    %cst_43 = arith.constant 1.000000e+00 : f32
    %148 = vector.broadcast %cst_43 : f32 to vector<2x128xf32>
    %149 = arith.addf %148, %147 : vector<2x128xf32>
    %150 = arith.divf %148, %149 : vector<2x128xf32>
    %151 = math.tanh %145 : vector<2x128xf32>
    %152 = vector.extract_strided_slice %150 {offsets = [0, 0], sizes = [2, 32], strides = [1, 1]} : vector<2x128xf32> to vector<2x32xf32>
    %153 = vector.extract_strided_slice %150 {offsets = [0, 32], sizes = [2, 32], strides = [1, 1]} : vector<2x128xf32> to vector<2x32xf32>
    %154 = vector.extract_strided_slice %151 {offsets = [0, 64], sizes = [2, 32], strides = [1, 1]} : vector<2x128xf32> to vector<2x32xf32>
    %155 = vector.extract_strided_slice %150 {offsets = [0, 96], sizes = [2, 32], strides = [1, 1]} : vector<2x128xf32> to vector<2x32xf32>
    %156 = arith.mulf %153, %138 : vector<2x32xf32>
    %157 = arith.mulf %152, %154 : vector<2x32xf32>
    %158 = arith.addf %156, %157 : vector<2x32xf32>
    %159 = math.tanh %158 : vector<2x32xf32>
    %160 = arith.mulf %155, %159 : vector<2x32xf32>
    %cst_44 = arith.constant dense<0.000000e+00> : vector<2x128xf32>
    %161 = tpu.matmul %15, %16, %cst_44 {dimension_numbers = #tpu.dot_dimension_numbers<[1], [0], [0], [1], [0, 0, 1, 1], [], []>} : vector<2x30xf32>, vector<30x128xf32>, vector<2x128xf32> -> vector<2x128xf32>
    %cst_45 = arith.constant dense<0.000000e+00> : vector<2x128xf32>
    %162 = tpu.matmul %160, %17, %cst_45 {dimension_numbers = #tpu.dot_dimension_numbers<[1], [0], [0], [1], [0, 0, 1, 1], [], []>} : vector<2x32xf32>, vector<32x128xf32>, vector<2x128xf32> -> vector<2x128xf32>
    %163 = arith.addf %161, %162 : vector<2x128xf32>
    %164 = vector.broadcast %18 : vector<1x128xf32> to vector<2x128xf32>
    %165 = arith.addf %163, %164 : vector<2x128xf32>
    %166 = arith.negf %165 : vector<2x128xf32>
    %167 = math.exp %166 : vector<2x128xf32>
    %cst_46 = arith.constant 1.000000e+00 : f32
    %168 = vector.broadcast %cst_46 : f32 to vector<2x128xf32>
    %169 = arith.addf %168, %167 : vector<2x128xf32>
    %170 = arith.divf %168, %169 : vector<2x128xf32>
    %171 = math.tanh %165 : vector<2x128xf32>
    %172 = vector.extract_strided_slice %170 {offsets = [0, 0], sizes = [2, 32], strides = [1, 1]} : vector<2x128xf32> to vector<2x32xf32>
    %173 = vector.extract_strided_slice %170 {offsets = [0, 32], sizes = [2, 32], strides = [1, 1]} : vector<2x128xf32> to vector<2x32xf32>
    %174 = vector.extract_strided_slice %171 {offsets = [0, 64], sizes = [2, 32], strides = [1, 1]} : vector<2x128xf32> to vector<2x32xf32>
    %175 = vector.extract_strided_slice %170 {offsets = [0, 96], sizes = [2, 32], strides = [1, 1]} : vector<2x128xf32> to vector<2x32xf32>
    %176 = arith.mulf %173, %158 : vector<2x32xf32>
    %177 = arith.mulf %172, %174 : vector<2x32xf32>
    %178 = arith.addf %176, %177 : vector<2x32xf32>
    %179 = math.tanh %178 : vector<2x32xf32>
    %180 = arith.mulf %175, %179 : vector<2x32xf32>
    %c0_47 = arith.constant 0 : index
    %c0_48 = arith.constant 0 : index
    %181 = vector.load %arg4[%c0_47, %c0_48] : memref<32x128xf32, #tpu.memory_space<vmem>>, vector<32x128xf32>
    %c0_49 = arith.constant 0 : index
    %c0_50 = arith.constant 0 : index
    %182 = vector.load %arg5[%c0_49, %c0_50] : memref<32x128xf32, #tpu.memory_space<vmem>>, vector<32x128xf32>
    %c0_51 = arith.constant 0 : index
    %c0_52 = arith.constant 0 : index
    %183 = vector.load %arg6[%c0_51, %c0_52] : memref<1x128xf32, #tpu.memory_space<vmem>>, vector<1x128xf32>
    %cst_53 = arith.constant 0.000000e+00 : f32
    %184 = vector.broadcast %cst_53 : f32 to vector<2x32xf32>
    %cst_54 = arith.constant 0.000000e+00 : f32
    %185 = vector.broadcast %cst_54 : f32 to vector<2x32xf32>
    %cst_55 = arith.constant dense<0.000000e+00> : vector<2x128xf32>
    %186 = tpu.matmul %40, %181, %cst_55 {dimension_numbers = #tpu.dot_dimension_numbers<[1], [0], [0], [1], [0, 0, 1, 1], [], []>} : vector<2x32xf32>, vector<32x128xf32>, vector<2x128xf32> -> vector<2x128xf32>
    %cst_56 = arith.constant dense<0.000000e+00> : vector<2x128xf32>
    %187 = tpu.matmul %184, %182, %cst_56 {dimension_numbers = #tpu.dot_dimension_numbers<[1], [0], [0], [1], [0, 0, 1, 1], [], []>} : vector<2x32xf32>, vector<32x128xf32>, vector<2x128xf32> -> vector<2x128xf32>
    %188 = arith.addf %186, %187 : vector<2x128xf32>
    %189 = vector.broadcast %183 : vector<1x128xf32> to vector<2x128xf32>
    %190 = arith.addf %188, %189 : vector<2x128xf32>
    %191 = arith.negf %190 : vector<2x128xf32>
    %192 = math.exp %191 : vector<2x128xf32>
    %cst_57 = arith.constant 1.000000e+00 : f32
    %193 = vector.broadcast %cst_57 : f32 to vector<2x128xf32>
    %194 = arith.addf %193, %192 : vector<2x128xf32>
    %195 = arith.divf %193, %194 : vector<2x128xf32>
    %196 = math.tanh %190 : vector<2x128xf32>
    %197 = vector.extract_strided_slice %195 {offsets = [0, 0], sizes = [2, 32], strides = [1, 1]} : vector<2x128xf32> to vector<2x32xf32>
    %198 = vector.extract_strided_slice %195 {offsets = [0, 32], sizes = [2, 32], strides = [1, 1]} : vector<2x128xf32> to vector<2x32xf32>
    %199 = vector.extract_strided_slice %196 {offsets = [0, 64], sizes = [2, 32], strides = [1, 1]} : vector<2x128xf32> to vector<2x32xf32>
    %200 = vector.extract_strided_slice %195 {offsets = [0, 96], sizes = [2, 32], strides = [1, 1]} : vector<2x128xf32> to vector<2x32xf32>
    %201 = arith.mulf %198, %185 : vector<2x32xf32>
    %202 = arith.mulf %197, %199 : vector<2x32xf32>
    %203 = arith.addf %201, %202 : vector<2x32xf32>
    %204 = math.tanh %203 : vector<2x32xf32>
    %205 = arith.mulf %200, %204 : vector<2x32xf32>
    %cst_58 = arith.constant dense<0.000000e+00> : vector<2x128xf32>
    %206 = tpu.matmul %60, %181, %cst_58 {dimension_numbers = #tpu.dot_dimension_numbers<[1], [0], [0], [1], [0, 0, 1, 1], [], []>} : vector<2x32xf32>, vector<32x128xf32>, vector<2x128xf32> -> vector<2x128xf32>
    %cst_59 = arith.constant dense<0.000000e+00> : vector<2x128xf32>
    %207 = tpu.matmul %205, %182, %cst_59 {dimension_numbers = #tpu.dot_dimension_numbers<[1], [0], [0], [1], [0, 0, 1, 1], [], []>} : vector<2x32xf32>, vector<32x128xf32>, vector<2x128xf32> -> vector<2x128xf32>
    %208 = arith.addf %206, %207 : vector<2x128xf32>
    %209 = vector.broadcast %183 : vector<1x128xf32> to vector<2x128xf32>
    %210 = arith.addf %208, %209 : vector<2x128xf32>
    %211 = arith.negf %210 : vector<2x128xf32>
    %212 = math.exp %211 : vector<2x128xf32>
    %cst_60 = arith.constant 1.000000e+00 : f32
    %213 = vector.broadcast %cst_60 : f32 to vector<2x128xf32>
    %214 = arith.addf %213, %212 : vector<2x128xf32>
    %215 = arith.divf %213, %214 : vector<2x128xf32>
    %216 = math.tanh %210 : vector<2x128xf32>
    %217 = vector.extract_strided_slice %215 {offsets = [0, 0], sizes = [2, 32], strides = [1, 1]} : vector<2x128xf32> to vector<2x32xf32>
    %218 = vector.extract_strided_slice %215 {offsets = [0, 32], sizes = [2, 32], strides = [1, 1]} : vector<2x128xf32> to vector<2x32xf32>
    %219 = vector.extract_strided_slice %216 {offsets = [0, 64], sizes = [2, 32], strides = [1, 1]} : vector<2x128xf32> to vector<2x32xf32>
    %220 = vector.extract_strided_slice %215 {offsets = [0, 96], sizes = [2, 32], strides = [1, 1]} : vector<2x128xf32> to vector<2x32xf32>
    %221 = arith.mulf %218, %203 : vector<2x32xf32>
    %222 = arith.mulf %217, %219 : vector<2x32xf32>
    %223 = arith.addf %221, %222 : vector<2x32xf32>
    %224 = math.tanh %223 : vector<2x32xf32>
    %225 = arith.mulf %220, %224 : vector<2x32xf32>
    %cst_61 = arith.constant dense<0.000000e+00> : vector<2x128xf32>
    %226 = tpu.matmul %80, %181, %cst_61 {dimension_numbers = #tpu.dot_dimension_numbers<[1], [0], [0], [1], [0, 0, 1, 1], [], []>} : vector<2x32xf32>, vector<32x128xf32>, vector<2x128xf32> -> vector<2x128xf32>
    %cst_62 = arith.constant dense<0.000000e+00> : vector<2x128xf32>
    %227 = tpu.matmul %225, %182, %cst_62 {dimension_numbers = #tpu.dot_dimension_numbers<[1], [0], [0], [1], [0, 0, 1, 1], [], []>} : vector<2x32xf32>, vector<32x128xf32>, vector<2x128xf32> -> vector<2x128xf32>
    %228 = arith.addf %226, %227 : vector<2x128xf32>
    %229 = vector.broadcast %183 : vector<1x128xf32> to vector<2x128xf32>
    %230 = arith.addf %228, %229 : vector<2x128xf32>
    %231 = arith.negf %230 : vector<2x128xf32>
    %232 = math.exp %231 : vector<2x128xf32>
    %cst_63 = arith.constant 1.000000e+00 : f32
    %233 = vector.broadcast %cst_63 : f32 to vector<2x128xf32>
    %234 = arith.addf %233, %232 : vector<2x128xf32>
    %235 = arith.divf %233, %234 : vector<2x128xf32>
    %236 = math.tanh %230 : vector<2x128xf32>
    %237 = vector.extract_strided_slice %235 {offsets = [0, 0], sizes = [2, 32], strides = [1, 1]} : vector<2x128xf32> to vector<2x32xf32>
    %238 = vector.extract_strided_slice %235 {offsets = [0, 32], sizes = [2, 32], strides = [1, 1]} : vector<2x128xf32> to vector<2x32xf32>
    %239 = vector.extract_strided_slice %236 {offsets = [0, 64], sizes = [2, 32], strides = [1, 1]} : vector<2x128xf32> to vector<2x32xf32>
    %240 = vector.extract_strided_slice %235 {offsets = [0, 96], sizes = [2, 32], strides = [1, 1]} : vector<2x128xf32> to vector<2x32xf32>
    %241 = arith.mulf %238, %223 : vector<2x32xf32>
    %242 = arith.mulf %237, %239 : vector<2x32xf32>
    %243 = arith.addf %241, %242 : vector<2x32xf32>
    %244 = math.tanh %243 : vector<2x32xf32>
    %245 = arith.mulf %240, %244 : vector<2x32xf32>
    %cst_64 = arith.constant dense<0.000000e+00> : vector<2x128xf32>
    %246 = tpu.matmul %100, %181, %cst_64 {dimension_numbers = #tpu.dot_dimension_numbers<[1], [0], [0], [1], [0, 0, 1, 1], [], []>} : vector<2x32xf32>, vector<32x128xf32>, vector<2x128xf32> -> vector<2x128xf32>
    %cst_65 = arith.constant dense<0.000000e+00> : vector<2x128xf32>
    %247 = tpu.matmul %245, %182, %cst_65 {dimension_numbers = #tpu.dot_dimension_numbers<[1], [0], [0], [1], [0, 0, 1, 1], [], []>} : vector<2x32xf32>, vector<32x128xf32>, vector<2x128xf32> -> vector<2x128xf32>
    %248 = arith.addf %246, %247 : vector<2x128xf32>
    %249 = vector.broadcast %183 : vector<1x128xf32> to vector<2x128xf32>
    %250 = arith.addf %248, %249 : vector<2x128xf32>
    %251 = arith.negf %250 : vector<2x128xf32>
    %252 = math.exp %251 : vector<2x128xf32>
    %cst_66 = arith.constant 1.000000e+00 : f32
    %253 = vector.broadcast %cst_66 : f32 to vector<2x128xf32>
    %254 = arith.addf %253, %252 : vector<2x128xf32>
    %255 = arith.divf %253, %254 : vector<2x128xf32>
    %256 = math.tanh %250 : vector<2x128xf32>
    %257 = vector.extract_strided_slice %255 {offsets = [0, 0], sizes = [2, 32], strides = [1, 1]} : vector<2x128xf32> to vector<2x32xf32>
    %258 = vector.extract_strided_slice %255 {offsets = [0, 32], sizes = [2, 32], strides = [1, 1]} : vector<2x128xf32> to vector<2x32xf32>
    %259 = vector.extract_strided_slice %256 {offsets = [0, 64], sizes = [2, 32], strides = [1, 1]} : vector<2x128xf32> to vector<2x32xf32>
    %260 = vector.extract_strided_slice %255 {offsets = [0, 96], sizes = [2, 32], strides = [1, 1]} : vector<2x128xf32> to vector<2x32xf32>
    %261 = arith.mulf %258, %243 : vector<2x32xf32>
    %262 = arith.mulf %257, %259 : vector<2x32xf32>
    %263 = arith.addf %261, %262 : vector<2x32xf32>
    %264 = math.tanh %263 : vector<2x32xf32>
    %265 = arith.mulf %260, %264 : vector<2x32xf32>
    %cst_67 = arith.constant dense<0.000000e+00> : vector<2x128xf32>
    %266 = tpu.matmul %120, %181, %cst_67 {dimension_numbers = #tpu.dot_dimension_numbers<[1], [0], [0], [1], [0, 0, 1, 1], [], []>} : vector<2x32xf32>, vector<32x128xf32>, vector<2x128xf32> -> vector<2x128xf32>
    %cst_68 = arith.constant dense<0.000000e+00> : vector<2x128xf32>
    %267 = tpu.matmul %265, %182, %cst_68 {dimension_numbers = #tpu.dot_dimension_numbers<[1], [0], [0], [1], [0, 0, 1, 1], [], []>} : vector<2x32xf32>, vector<32x128xf32>, vector<2x128xf32> -> vector<2x128xf32>
    %268 = arith.addf %266, %267 : vector<2x128xf32>
    %269 = vector.broadcast %183 : vector<1x128xf32> to vector<2x128xf32>
    %270 = arith.addf %268, %269 : vector<2x128xf32>
    %271 = arith.negf %270 : vector<2x128xf32>
    %272 = math.exp %271 : vector<2x128xf32>
    %cst_69 = arith.constant 1.000000e+00 : f32
    %273 = vector.broadcast %cst_69 : f32 to vector<2x128xf32>
    %274 = arith.addf %273, %272 : vector<2x128xf32>
    %275 = arith.divf %273, %274 : vector<2x128xf32>
    %276 = math.tanh %270 : vector<2x128xf32>
    %277 = vector.extract_strided_slice %275 {offsets = [0, 0], sizes = [2, 32], strides = [1, 1]} : vector<2x128xf32> to vector<2x32xf32>
    %278 = vector.extract_strided_slice %275 {offsets = [0, 32], sizes = [2, 32], strides = [1, 1]} : vector<2x128xf32> to vector<2x32xf32>
    %279 = vector.extract_strided_slice %276 {offsets = [0, 64], sizes = [2, 32], strides = [1, 1]} : vector<2x128xf32> to vector<2x32xf32>
    %280 = vector.extract_strided_slice %275 {offsets = [0, 96], sizes = [2, 32], strides = [1, 1]} : vector<2x128xf32> to vector<2x32xf32>
    %281 = arith.mulf %278, %263 : vector<2x32xf32>
    %282 = arith.mulf %277, %279 : vector<2x32xf32>
    %283 = arith.addf %281, %282 : vector<2x32xf32>
    %284 = math.tanh %283 : vector<2x32xf32>
    %285 = arith.mulf %280, %284 : vector<2x32xf32>
    %cst_70 = arith.constant dense<0.000000e+00> : vector<2x128xf32>
    %286 = tpu.matmul %140, %181, %cst_70 {dimension_numbers = #tpu.dot_dimension_numbers<[1], [0], [0], [1], [0, 0, 1, 1], [], []>} : vector<2x32xf32>, vector<32x128xf32>, vector<2x128xf32> -> vector<2x128xf32>
    %cst_71 = arith.constant dense<0.000000e+00> : vector<2x128xf32>
    %287 = tpu.matmul %285, %182, %cst_71 {dimension_numbers = #tpu.dot_dimension_numbers<[1], [0], [0], [1], [0, 0, 1, 1], [], []>} : vector<2x32xf32>, vector<32x128xf32>, vector<2x128xf32> -> vector<2x128xf32>
    %288 = arith.addf %286, %287 : vector<2x128xf32>
    %289 = vector.broadcast %183 : vector<1x128xf32> to vector<2x128xf32>
    %290 = arith.addf %288, %289 : vector<2x128xf32>
    %291 = arith.negf %290 : vector<2x128xf32>
    %292 = math.exp %291 : vector<2x128xf32>
    %cst_72 = arith.constant 1.000000e+00 : f32
    %293 = vector.broadcast %cst_72 : f32 to vector<2x128xf32>
    %294 = arith.addf %293, %292 : vector<2x128xf32>
    %295 = arith.divf %293, %294 : vector<2x128xf32>
    %296 = math.tanh %290 : vector<2x128xf32>
    %297 = vector.extract_strided_slice %295 {offsets = [0, 0], sizes = [2, 32], strides = [1, 1]} : vector<2x128xf32> to vector<2x32xf32>
    %298 = vector.extract_strided_slice %295 {offsets = [0, 32], sizes = [2, 32], strides = [1, 1]} : vector<2x128xf32> to vector<2x32xf32>
    %299 = vector.extract_strided_slice %296 {offsets = [0, 64], sizes = [2, 32], strides = [1, 1]} : vector<2x128xf32> to vector<2x32xf32>
    %300 = vector.extract_strided_slice %295 {offsets = [0, 96], sizes = [2, 32], strides = [1, 1]} : vector<2x128xf32> to vector<2x32xf32>
    %301 = arith.mulf %298, %283 : vector<2x32xf32>
    %302 = arith.mulf %297, %299 : vector<2x32xf32>
    %303 = arith.addf %301, %302 : vector<2x32xf32>
    %304 = math.tanh %303 : vector<2x32xf32>
    %305 = arith.mulf %300, %304 : vector<2x32xf32>
    %cst_73 = arith.constant dense<0.000000e+00> : vector<2x128xf32>
    %306 = tpu.matmul %160, %181, %cst_73 {dimension_numbers = #tpu.dot_dimension_numbers<[1], [0], [0], [1], [0, 0, 1, 1], [], []>} : vector<2x32xf32>, vector<32x128xf32>, vector<2x128xf32> -> vector<2x128xf32>
    %cst_74 = arith.constant dense<0.000000e+00> : vector<2x128xf32>
    %307 = tpu.matmul %305, %182, %cst_74 {dimension_numbers = #tpu.dot_dimension_numbers<[1], [0], [0], [1], [0, 0, 1, 1], [], []>} : vector<2x32xf32>, vector<32x128xf32>, vector<2x128xf32> -> vector<2x128xf32>
    %308 = arith.addf %306, %307 : vector<2x128xf32>
    %309 = vector.broadcast %183 : vector<1x128xf32> to vector<2x128xf32>
    %310 = arith.addf %308, %309 : vector<2x128xf32>
    %311 = arith.negf %310 : vector<2x128xf32>
    %312 = math.exp %311 : vector<2x128xf32>
    %cst_75 = arith.constant 1.000000e+00 : f32
    %313 = vector.broadcast %cst_75 : f32 to vector<2x128xf32>
    %314 = arith.addf %313, %312 : vector<2x128xf32>
    %315 = arith.divf %313, %314 : vector<2x128xf32>
    %316 = math.tanh %310 : vector<2x128xf32>
    %317 = vector.extract_strided_slice %315 {offsets = [0, 0], sizes = [2, 32], strides = [1, 1]} : vector<2x128xf32> to vector<2x32xf32>
    %318 = vector.extract_strided_slice %315 {offsets = [0, 32], sizes = [2, 32], strides = [1, 1]} : vector<2x128xf32> to vector<2x32xf32>
    %319 = vector.extract_strided_slice %316 {offsets = [0, 64], sizes = [2, 32], strides = [1, 1]} : vector<2x128xf32> to vector<2x32xf32>
    %320 = vector.extract_strided_slice %315 {offsets = [0, 96], sizes = [2, 32], strides = [1, 1]} : vector<2x128xf32> to vector<2x32xf32>
    %321 = arith.mulf %318, %303 : vector<2x32xf32>
    %322 = arith.mulf %317, %319 : vector<2x32xf32>
    %323 = arith.addf %321, %322 : vector<2x32xf32>
    %324 = math.tanh %323 : vector<2x32xf32>
    %325 = arith.mulf %320, %324 : vector<2x32xf32>
    %cst_76 = arith.constant dense<0.000000e+00> : vector<2x128xf32>
    %326 = tpu.matmul %180, %181, %cst_76 {dimension_numbers = #tpu.dot_dimension_numbers<[1], [0], [0], [1], [0, 0, 1, 1], [], []>} : vector<2x32xf32>, vector<32x128xf32>, vector<2x128xf32> -> vector<2x128xf32>
    %cst_77 = arith.constant dense<0.000000e+00> : vector<2x128xf32>
    %327 = tpu.matmul %325, %182, %cst_77 {dimension_numbers = #tpu.dot_dimension_numbers<[1], [0], [0], [1], [0, 0, 1, 1], [], []>} : vector<2x32xf32>, vector<32x128xf32>, vector<2x128xf32> -> vector<2x128xf32>
    %328 = arith.addf %326, %327 : vector<2x128xf32>
    %329 = vector.broadcast %183 : vector<1x128xf32> to vector<2x128xf32>
    %330 = arith.addf %328, %329 : vector<2x128xf32>
    %331 = arith.negf %330 : vector<2x128xf32>
    %332 = math.exp %331 : vector<2x128xf32>
    %cst_78 = arith.constant 1.000000e+00 : f32
    %333 = vector.broadcast %cst_78 : f32 to vector<2x128xf32>
    %334 = arith.addf %333, %332 : vector<2x128xf32>
    %335 = arith.divf %333, %334 : vector<2x128xf32>
    %336 = math.tanh %330 : vector<2x128xf32>
    %337 = vector.extract_strided_slice %335 {offsets = [0, 0], sizes = [2, 32], strides = [1, 1]} : vector<2x128xf32> to vector<2x32xf32>
    %338 = vector.extract_strided_slice %335 {offsets = [0, 32], sizes = [2, 32], strides = [1, 1]} : vector<2x128xf32> to vector<2x32xf32>
    %339 = vector.extract_strided_slice %336 {offsets = [0, 64], sizes = [2, 32], strides = [1, 1]} : vector<2x128xf32> to vector<2x32xf32>
    %340 = vector.extract_strided_slice %335 {offsets = [0, 96], sizes = [2, 32], strides = [1, 1]} : vector<2x128xf32> to vector<2x32xf32>
    %341 = arith.mulf %338, %323 : vector<2x32xf32>
    %342 = arith.mulf %337, %339 : vector<2x32xf32>
    %343 = arith.addf %341, %342 : vector<2x32xf32>
    %344 = math.tanh %343 : vector<2x32xf32>
    %345 = arith.mulf %340, %344 : vector<2x32xf32>
    %c0_79 = arith.constant 0 : index
    %c0_80 = arith.constant 0 : index
    %346 = vector.load %arg7[%c0_79, %c0_80] : memref<1x32xf32, #tpu.memory_space<vmem>>, vector<1x32xf32>
    %347 = vector.broadcast %346 : vector<1x32xf32> to vector<2x32xf32>
    %348 = arith.mulf %345, %347 : vector<2x32xf32>
    %cst_81 = arith.constant dense<0.000000e+00> : vector<2xf32>
    %349 = vector.multi_reduction <add>, %348, %cst_81 [1] : vector<2x32xf32> to vector<2xf32>
    %350 = vector.shape_cast %349 : vector<2xf32> to vector<2x1xf32>
    %c0_82 = arith.constant 0 : index
    %c0_83 = arith.constant 0 : index
    %351 = vector.load %arg8[%c0_82, %c0_83] : memref<1x1xf32, #tpu.memory_space<vmem>>, vector<1x1xf32>
    %352 = vector.broadcast %351 : vector<1x1xf32> to vector<2x1xf32>
    %353 = arith.addf %350, %352 : vector<2x1xf32>
    %c0_84 = arith.constant 0 : index
    %c0_85 = arith.constant 0 : index
    %354 = vector.load %arg9[%c0_84, %c0_85] : memref<2x1xf32, #tpu.memory_space<vmem>>, vector<2x1xf32>
    tpu.vector_store %arg9[%c0_84, %c0_85], %353 {strides = array<i32>} : memref<2x1xf32, #tpu.memory_space<vmem>>, vector<2x1xf32>,
    return
  }
}

</mosaic_0001>

<llo_original>
// kernel: tpu_custom_call.1
$region0: #{tpu_custom_call.1}
  #allocation0 [shape = 'u32[]', space=smem, size = 0x4, offset = 0x4, fixed_abs, tag = 'smem constant byte address 0x4 - core index']
  #allocation1 [shape = 'u32[144,128]{1,0:T(1,128)}', space=vmem, size = 0x12000, scoped, tag = 'internal scratch']
  #allocation2 [shape = 'f32[1,1]{1,0:T(1,128)S(1)}', space=vmem, size = 0x200, scoped, tag = 'scoped memory for tpu_custom_call.1']
  %s0 = inlined_call_operand.hbm [shape: f32[2,8,30], index: 0, kind: input, shape index: {}]
  %s1 = inlined_call_operand.hbm [shape: f32[30,128], index: 1, kind: input, shape index: {}]
  %s2 = inlined_call_operand.hbm [shape: f32[32,128], index: 2, kind: input, shape index: {}]
  %s3 = inlined_call_operand.vmem [shape: f32[1,128], index: 3, kind: input, shape index: {}]
  %s4 = inlined_call_operand.hbm [shape: f32[32,128], index: 4, kind: input, shape index: {}]
  %s5 = inlined_call_operand.hbm [shape: f32[32,128], index: 5, kind: input, shape index: {}]
  %s6 = inlined_call_operand.vmem [shape: f32[1,128], index: 6, kind: input, shape index: {}]
  %s7 = inlined_call_operand.vmem [shape: f32[1,32], index: 7, kind: input, shape index: {}]
  %s8 = inlined_call_operand.<no memory space> [shape: f32[1,1], index: 8, kind: input, shape index: {}]
  %s9 = inlined_call_operand.vmem [shape: f32[2,1], index: 9, kind: output, shape index: {}]
  %s10 = sld [smem:[#allocation0]]
  $region66: #{tpu_custom_call.1} parent=0
    _
  %s12 = ssub.s32 1, %s10
  %s13 = scalar_select 0, %s12, %s10
  %v14 = vstv %s8
  %15 = vst [vmem:[#allocation2] sm:$0x1] %v14
  $region1: #{tpu_custom_call.1} parent=0
    #allocation3 [shape = 'u8[8192]{0}', space=vmem, size = 0x2000, scoped, tag = 'input window, operand 0, single buffered']
    #allocation4 [shape = 's32[1]{0}', space=sflag, size = 0x4, scoped, tag = 'scoped memory for tpu_custom_call.1']
    #allocation5 [shape = 'u8[16384]{0}', space=vmem, size = 0x4000, scoped, tag = 'input window, operand 1, single buffered']
    #allocation6 [shape = 's32[1]{0}', space=sflag, size = 0x4, scoped, tag = 'scoped memory for tpu_custom_call.1']
    #allocation7 [shape = 'u8[16384]{0}', space=vmem, size = 0x4000, scoped, tag = 'input window, operand 2, single buffered']
    #allocation8 [shape = 'u8[16384]{0}', space=vmem, size = 0x4000, scoped, tag = 'input window, operand 4, single buffered']
    #allocation9 [shape = 's32[1]{0}', space=sflag, size = 0x4, scoped, tag = 'scoped memory for tpu_custom_call.1']
    #allocation10 [shape = 'u8[16384]{0}', space=vmem, size = 0x4000, scoped, tag = 'input window, operand 5, single buffered']
    %16 = vsyncpa [#allocation4], 0
    %17 = vsyncpa [#allocation6], 0
    %18 = vsyncpa [#allocation9], 0
    // Predicated region
    $region2: #{tpu_custom_call.1} parent=1 // pred_check
      _
    $region3: #{tpu_custom_call.1} parent=1 // pred_check_branch
      %20 = sbr.rel (0) target = $region5
    $region4: #{tpu_custom_call.1} parent=1 // pred_region
      %s22 = ssub.s32 256, 256
      %23 = vsyncadd [#allocation4], %s22
      %s24 = sshll.u32 [#allocation3], 4
      %s25 = int_to_ptr.vmem [resolvable:$true] %s24
      %30 = dma.hbm_to_vmem [thread:$0]  %s0, 256, %s25, [#allocation4], 128, 128, 8
    $region5: #{tpu_custom_call.1} parent=1 // pred_fallthru
      _
    // Predicated region
    $region6: #{tpu_custom_call.1} parent=1 // pred_check
      _
    $region7: #{tpu_custom_call.1} parent=1 // pred_check_branch
      %32 = sbr.rel (0) target = $region9
    $region8: #{tpu_custom_call.1} parent=1 // pred_region
      %s34 = ssub.s32 512, 512
      %35 = vsyncadd [#allocation6], %s34
      %s36 = sshll.u32 [#allocation5], 4
      %s37 = int_to_ptr.vmem [resolvable:$true] %s36
      %42 = dma.hbm_to_vmem [thread:$0]  %s1, 512, %s37, [#allocation6], 128, 128, 8
    $region9: #{tpu_custom_call.1} parent=1 // pred_fallthru
      _
    // Predicated region
    $region10: #{tpu_custom_call.1} parent=1 // pred_check
      _
    $region11: #{tpu_custom_call.1} parent=1 // pred_check_branch
      %44 = sbr.rel (0) target = $region13
    $region12: #{tpu_custom_call.1} parent=1 // pred_region
      %s46 = ssub.s32 512, 512
      %47 = vsyncadd [#allocation6], %s46
      %s48 = sshll.u32 [#allocation7], 4
      %s49 = int_to_ptr.vmem [resolvable:$true] %s48
      %54 = dma.hbm_to_vmem [thread:$0]  %s2, 512, %s49, [#allocation6], 128, 128, 8
    $region13: #{tpu_custom_call.1} parent=1 // pred_fallthru
      _
    // Predicated region
    $region14: #{tpu_custom_call.1} parent=1 // pred_check
      _
    $region15: #{tpu_custom_call.1} parent=1 // pred_check_branch
      %56 = sbr.rel (0) target = $region17
    $region16: #{tpu_custom_call.1} parent=1 // pred_region
      _
    $region17: #{tpu_custom_call.1} parent=1 // pred_fallthru
      _
    // Predicated region
    $region18: #{tpu_custom_call.1} parent=1 // pred_check
      _
    $region19: #{tpu_custom_call.1} parent=1 // pred_check_branch
      %58 = sbr.rel (0) target = $region21
    $region20: #{tpu_custom_call.1} parent=1 // pred_region
      %s60 = ssub.s32 512, 512
      %61 = vsyncadd [#allocation9], %s60
      %s62 = sshll.u32 [#allocation8], 4
      %s63 = int_to_ptr.vmem [resolvable:$true] %s62
      %68 = dma.hbm_to_vmem [thread:$0]  %s4, 512, %s63, [#allocation9], 128, 128, 8
    $region21: #{tpu_custom_call.1} parent=1 // pred_fallthru
      _
    // Predicated region
    $region22: #{tpu_custom_call.1} parent=1 // pred_check
      _
    $region23: #{tpu_custom_call.1} parent=1 // pred_check_branch
      %70 = sbr.rel (0) target = $region25
    $region24: #{tpu_custom_call.1} parent=1 // pred_region
      %s72 = ssub.s32 512, 512
      %73 = vsyncadd [#allocation9], %s72
      %s74 = sshll.u32 [#allocation10], 4
      %s75 = int_to_ptr.vmem [resolvable:$true] %s74
      %80 = dma.hbm_to_vmem [thread:$0]  %s5, 512, %s75, [#allocation9], 128, 128, 8
    $region25: #{tpu_custom_call.1} parent=1 // pred_fallthru
      _
    // Predicated region
    $region26: #{tpu_custom_call.1} parent=1 // pred_check
      _
    $region27: #{tpu_custom_call.1} parent=1 // pred_check_branch
      %82 = sbr.rel (0) target = $region29
    $region28: #{tpu_custom_call.1} parent=1 // pred_region
      _
    $region29: #{tpu_custom_call.1} parent=1 // pred_fallthru
      _
    // Predicated region
    $region30: #{tpu_custom_call.1} parent=1 // pred_check
      _
    $region31: #{tpu_custom_call.1} parent=1 // pred_check_branch
      %84 = sbr.rel (0) target = $region33
    $region32: #{tpu_custom_call.1} parent=1 // pred_region
      _
    $region33: #{tpu_custom_call.1} parent=1 // pred_fallthru
      _
    // Predicated region
    $region34: #{tpu_custom_call.1} parent=1 // pred_check
      _
    $region35: #{tpu_custom_call.1} parent=1 // pred_check_branch
      %86 = sbr.rel (0) target = $region37
    $region36: #{tpu_custom_call.1} parent=1 // pred_region
      _
    $region37: #{tpu_custom_call.1} parent=1 // pred_fallthru
      _
    // Predicated region
    $region38: #{tpu_custom_call.1} parent=1 // pred_check
      _
    $region39: #{tpu_custom_call.1} parent=1 // pred_check_branch
      %88 = sbr.rel (0) target = $region41
    $region40: #{tpu_custom_call.1} parent=1 // pred_region
      %89 = dma.done [#allocation4], 256
    $region41: #{tpu_custom_call.1} parent=1 // pred_fallthru
      _
    // Predicated region
    $region42: #{tpu_custom_call.1} parent=1 // pred_check
      _
    $region43: #{tpu_custom_call.1} parent=1 // pred_check_branch
      %91 = sbr.rel (0) target = $region45
    $region44: #{tpu_custom_call.1} parent=1 // pred_region
      %92 = dma.done [#allocation6], 512
    $region45: #{tpu_custom_call.1} parent=1 // pred_fallthru
      _
    // Predicated region
    $region46: #{tpu_custom_call.1} parent=1 // pred_check
      _
    $region47: #{tpu_custom_call.1} parent=1 // pred_check_branch
      %94 = sbr.rel (0) target = $region49
    $region48: #{tpu_custom_call.1} parent=1 // pred_region
      %95 = dma.done [#allocation6], 512
    $region49: #{tpu_custom_call.1} parent=1 // pred_fallthru
      _
    // Predicated region
    $region50: #{tpu_custom_call.1} parent=1 // pred_check
      _
    $region51: #{tpu_custom_call.1} parent=1 // pred_check_branch
      %97 = sbr.rel (0) target = $region53
    $region52: #{tpu_custom_call.1} parent=1 // pred_region
      %98 = dma.done [#allocation9], 512
    $region53: #{tpu_custom_call.1} parent=1 // pred_fallthru
      _
    // Predicated region
    $region54: #{tpu_custom_call.1} parent=1 // pred_check
      _
    $region55: #{tpu_custom_call.1} parent=1 // pred_check_branch
      %100 = sbr.rel (0) target = $region57
    $region56: #{tpu_custom_call.1} parent=1 // pred_region
      %101 = dma.done [#allocation9], 512
    $region57: #{tpu_custom_call.1} parent=1 // pred_fallthru
      _
    %v102 = vld [vmem:[#allocation3] sm:$0x1]
    %v103 = vld [vmem:[#allocation3 + $0x8] sm:$0x1]
    %v104 = vld [vmem:[#allocation3 + $0x1] sm:$0x1]
    %v105 = vld [vmem:[#allocation3 + $0x9] sm:$0x1]
    %v106 = vld [vmem:[#allocation3 + $0x2] sm:$0x1]
    %v107 = vld [vmem:[#allocation3 + $0xa] sm:$0x1]
    %v108 = vld [vmem:[#allocation3 + $0x3] sm:$0x1]
    %v109 = vld [vmem:[#allocation3 + $0xb] sm:$0x1]
    %v110 = vld [vmem:[#allocation3 + $0x4] sm:$0x1]
    %v111 = vld [vmem:[#allocation3 + $0xc] sm:$0x1]
    %v112 = vld [vmem:[#allocation3 + $0x5] sm:$0x1]
    %v113 = vld [vmem:[#allocation3 + $0xd] sm:$0x1]
    %v114 = vld [vmem:[#allocation3 + $0x6] sm:$0x1]
    %v115 = vld [vmem:[#allocation3 + $0xe] sm:$0x1]
    %v116 = vld [vmem:[#allocation3 + $0x7] sm:$0x1]
    %v117 = vld [vmem:[#allocation3 + $0xf] sm:$0x1]
    %v118 = vld [vmem:[#allocation5] sm:$0xff]
    %v119 = vld [vmem:[#allocation5 + $0x8] sm:$0xff]
    %v120 = vld [vmem:[#allocation5 + $0x10] sm:$0xff]
    %v121 = vld [vmem:[#allocation5 + $0x18] sm:$0x3f]
    %v122 = vld [vmem:[#allocation7] sm:$0xff]
    %v123 = vld [vmem:[#allocation7 + $0x8] sm:$0xff]
    %v124 = vld [vmem:[#allocation7 + $0x10] sm:$0xff]
    %v125 = vld [vmem:[#allocation7 + $0x18] sm:$0xff]
    %v126 = vld [vmem:[%s3] sm:$0x1]
    %vm127 = vcmask 261120
    %v129 = vsel %vm127, 0.0, 0
    %131 = vmatprep.subr.mxu0 0.0
    %132 = vmatpush1.msra.mxu0 %v122
    %133 = vmatprep.subr.mxu0 0.0
    %134 = vmatpush1.msra.mxu0 %v123
    %135 = vmatprep.subr.mxu0 0.0
    %136 = vmatpush1.msra.mxu0 %v124
    %137 = vmatprep.subr.mxu0 0.0
    %138 = vmatpush1.msra.mxu0 %v125
    %139 = vmatprep.subr.mxu0 0.0
    %140 = vmatpush1.msra.mxu0 0.0
    %141 = vmatprep.subr.mxu0 0.0
    %142 = vmatpush1.msra.mxu0 0.0
    %143 = vmatprep.subr.mxu0 0.0
    %144 = vmatpush1.msra.mxu0 0.0
    %145 = vmatprep.subr.mxu0 0.0
    %146 = vmatpush1.msra.mxu0 0.0
    %147 = vmatprep.subr.mxu0 0.0
    %148 = vmatpush1.msra.mxu0 0.0
    %149 = vmatprep.subr.mxu0 0.0
    %150 = vmatpush1.msra.mxu0 0.0
    %151 = vmatprep.subr.mxu0 0.0
    %152 = vmatpush1.msra.mxu0 0.0
    %153 = vmatprep.subr.mxu0 0.0
    %154 = vmatpush1.msra.mxu0 0.0
    %155 = vmatprep.subr.mxu0 0.0
    %156 = vmatpush1.msra.mxu0 0.0
    %157 = vmatprep.subr.mxu0 0.0
    %158 = vmatpush1.msra.mxu0 0.0
    %159 = vmatprep.subr.mxu0 0.0
    %160 = vmatpush1.msra.mxu0 0.0
    %161 = vmatprep.subr.mxu0 0.0
    %162 = vmatpush1.msra.mxu0 0.0
    %163 = vmatprep.subr.mxu0 0.0
    %164 = vmatpush1.msra.mxu0 0.0
    %165 = vmatprep.subr.mxu0 0.0
    %166 = vmatpush1.msra.mxu0 0.0
    %167 = vmatprep.subr.mxu0 0.0
    %168 = vmatpush1.msra.mxu0 0.0
    %169 = vmatprep.subr.mxu0 0.0
    %170 = vmatpush1.msra.mxu0 0.0
    %171 = vmatprep.subr.mxu0 0.0
    %172 = vmatpush1.msra.mxu0 0.0
    %173 = vmatprep.subr.mxu0 0.0
    %174 = vmatpush1.msra.mxu0 0.0
    %175 = vmatprep.subr.mxu0 0.0
    %176 = vmatpush1.msra.mxu0 0.0
    %177 = vmatprep.subr.mxu0 0.0
    %178 = vmatpush1.msra.mxu0 0.0
    %179 = vmatprep.subr.mxu0 0.0
    %180 = vmatpush1.msra.mxu0 0.0
    %181 = vmatprep.subr.mxu0 0.0
    %182 = vmatpush1.msra.mxu0 0.0
    %183 = vmatprep.subr.mxu0 0.0
    %184 = vmatpush1.msra.mxu0 0.0
    %185 = vmatprep.subr.mxu0 0.0
    %186 = vmatpush1.msra.mxu0 0.0
    %187 = vmatprep.subr.mxu0 0.0
    %188 = vmatpush1.msra.mxu0 0.0
    %189 = vmatprep.subr.mxu0 0.0
    %190 = vmatpush1.msra.mxu0 0.0
    %191 = vmatprep.subr.mxu0 0.0
    %192 = vmatpush1.msra.mxu0 0.0
    %193 = vmatprep.subr.mxu0 0.0
    %194 = vmatpush1.msra.mxu0 0.0
    %195 = vmatprep.mubr.f32.mxu0 0.0
    %196 = vmatmul.mubr.f32.gmra.mrb[0].mxu0 %v129
    %v197 = vpop.f32.mrb[0].mxu0
    %v198 = vadd.f32 0.0, %v197
    %v199 = vpop.f32.mrb[0].mxu0
    %200 = vdwg.mxu0
    %v203 = vrot.slane %v103, 7
    %vm204 = vcmask 1041409
    %v205 = vsel %vm204, %v203, %v102
    %vm206 = vcmask 244736
    %v207 = vsel %vm206, %v205, 0
    %vm209 = vcmask 1045504
    %v211 = vsel %vm209, %v121, 0
    %213 = vmatprep.subr.mxu0 0.0
    %214 = vmatpush1.msra.mxu0 %v118
    %215 = vmatprep.subr.mxu0 0.0
    %216 = vmatpush1.msra.mxu0 %v119
    %217 = vmatprep.subr.mxu0 0.0
    %218 = vmatpush1.msra.mxu0 %v120
    %219 = vmatprep.subr.mxu0 0.0
    %220 = vmatpush1.msra.mxu0 %v211
    %221 = vmatprep.subr.mxu0 0.0
    %222 = vmatpush1.msra.mxu0 0.0
    %223 = vmatprep.subr.mxu0 0.0
    %224 = vmatpush1.msra.mxu0 0.0
    %225 = vmatprep.subr.mxu0 0.0
    %226 = vmatpush1.msra.mxu0 0.0
    %227 = vmatprep.subr.mxu0 0.0
    %228 = vmatpush1.msra.mxu0 0.0
    %229 = vmatprep.subr.mxu0 0.0
    %230 = vmatpush1.msra.mxu0 0.0
    %231 = vmatprep.subr.mxu0 0.0
    %232 = vmatpush1.msra.mxu0 0.0
    %233 = vmatprep.subr.mxu0 0.0
    %234 = vmatpush1.msra.mxu0 0.0
    %235 = vmatprep.subr.mxu0 0.0
    %236 = vmatpush1.msra.mxu0 0.0
    %237 = vmatprep.subr.mxu0 0.0
    %238 = vmatpush1.msra.mxu0 0.0
    %239 = vmatprep.subr.mxu0 0.0
    %240 = vmatpush1.msra.mxu0 0.0
    %241 = vmatprep.subr.mxu0 0.0
    %242 = vmatpush1.msra.mxu0 0.0
    %243 = vmatprep.subr.mxu0 0.0
    %244 = vmatpush1.msra.mxu0 0.0
    %245 = vmatprep.subr.mxu0 0.0
    %246 = vmatpush1.msra.mxu0 0.0
    %247 = vmatprep.subr.mxu0 0.0
    %248 = vmatpush1.msra.mxu0 0.0
    %249 = vmatprep.subr.mxu0 0.0
    %250 = vmatpush1.msra.mxu0 0.0
    %251 = vmatprep.subr.mxu0 0.0
    %252 = vmatpush1.msra.mxu0 0.0
    %253 = vmatprep.subr.mxu0 0.0
    %254 = vmatpush1.msra.mxu0 0.0
    %255 = vmatprep.subr.mxu0 0.0
    %256 = vmatpush1.msra.mxu0 0.0
    %257 = vmatprep.subr.mxu0 0.0
    %258 = vmatpush1.msra.mxu0 0.0
    %259 = vmatprep.subr.mxu0 0.0
    %260 = vmatpush1.msra.mxu0 0.0
    %261 = vmatprep.subr.mxu0 0.0
    %262 = vmatpush1.msra.mxu0 0.0
    %263 = vmatprep.subr.mxu0 0.0
    %264 = vmatpush1.msra.mxu0 0.0
    %265 = vmatprep.subr.mxu0 0.0
    %266 = vmatpush1.msra.mxu0 0.0
    %267 = vmatprep.subr.mxu0 0.0
    %268 = vmatpush1.msra.mxu0 0.0
    %269 = vmatprep.subr.mxu0 0.0
    %270 = vmatpush1.msra.mxu0 0.0
    %271 = vmatprep.subr.mxu0 0.0
    %272 = vmatpush1.msra.mxu0 0.0
    %273 = vmatprep.subr.mxu0 0.0
    %274 = vmatpush1.msra.mxu0 0.0
    %275 = vmatprep.subr.mxu0 0.0
    %276 = vmatpush1.msra.mxu0 0.0
    %277 = vmatprep.mubr.f32.mxu0 0.0
    %278 = vmatmul.mubr.f32.gmra.mrb[0].mxu0 %v207
    %v279 = vpop.f32.mrb[0].mxu0
    %v280 = vadd.f32 %v198, %v279
    %v281 = vpop.f32.mrb[0].mxu0
    %282 = vdwg.mxu0
    %v284 = vlaneseq
    %v285 = vshrl.u32 %v284, 7
    %v286 = vsub.s32 0, %v285
    %v287 = vrot.slane %v126, %v286
    %v289 = vadd.f32 %v280, %v287
    %v290 = vxor.u32 %v289, 2147483648
    %v291 = vmul.f32 %v290, 1.442695
    %v292 = vpow.pop %v291
    %v293 = vadd.f32 %v292, 1.0
    %v294 = vrcp.pop %v293
    %v295 = vmul.f32 1.0, %v294
    %v296 = vtanh.pop %v289
    %v297 = vmul.f32 %v295, 0.0
    %299 = vrot.lane.b32.xlu0 %v296, 64
    %v300 = vpop.permute.xlu0 %299
    %v302 = vmul.f32 %v295, %v300
    %304 = vrot.lane.b32.xlu0 %v302, 32
    %v305 = vpop.permute.xlu0 %304
    %v307 = vadd.f32 %v297, %v305
    %v308 = vtanh.pop %v307
    %310 = vrot.lane.b32.xlu0 %v308, 64
    %v311 = vpop.permute.xlu0 %310
    %v313 = vmul.f32 %v295, %v311
    %315 = vrot.lane.b32.xlu0 %v313, 32
    %v316 = vpop.permute.xlu0 %315
    %v317 = vsel %vm127, %v316, 0
    %319 = vmatprep.subr.mxu0 0.0
    %320 = vmatpush1.msra.mxu0 %v122
    %321 = vmatprep.subr.mxu0 0.0
    %322 = vmatpush1.msra.mxu0 %v123
    %323 = vmatprep.subr.mxu0 0.0
    %324 = vmatpush1.msra.mxu0 %v124
    %325 = vmatprep.subr.mxu0 0.0
    %326 = vmatpush1.msra.mxu0 %v125
    %327 = vmatprep.subr.mxu0 0.0
    %328 = vmatpush1.msra.mxu0 0.0
    %329 = vmatprep.subr.mxu0 0.0
    %330 = vmatpush1.msra.mxu0 0.0
    %331 = vmatprep.subr.mxu0 0.0
    %332 = vmatpush1.msra.mxu0 0.0
    %333 = vmatprep.subr.mxu0 0.0
    %334 = vmatpush1.msra.mxu0 0.0
    %335 = vmatprep.subr.mxu0 0.0
    %336 = vmatpush1.msra.mxu0 0.0
    %337 = vmatprep.subr.mxu0 0.0
    %338 = vmatpush1.msra.mxu0 0.0
    %339 = vmatprep.subr.mxu0 0.0
    %340 = vmatpush1.msra.mxu0 0.0
    %341 = vmatprep.subr.mxu0 0.0
    %342 = vmatpush1.msra.mxu0 0.0
    %343 = vmatprep.subr.mxu0 0.0
    %344 = vmatpush1.msra.mxu0 0.0
    %345 = vmatprep.subr.mxu0 0.0
    %346 = vmatpush1.msra.mxu0 0.0
    %347 = vmatprep.subr.mxu0 0.0
    %348 = vmatpush1.msra.mxu0 0.0
    %349 = vmatprep.subr.mxu0 0.0
    %350 = vmatpush1.msra.mxu0 0.0
    %351 = vmatprep.subr.mxu0 0.0
    %352 = vmatpush1.msra.mxu0 0.0
    %353 = vmatprep.subr.mxu0 0.0
    %354 = vmatpush1.msra.mxu0 0.0
    %355 = vmatprep.subr.mxu0 0.0
    %356 = vmatpush1.msra.mxu0 0.0
    %357 = vmatprep.subr.mxu0 0.0
    %358 = vmatpush1.msra.mxu0 0.0
    %359 = vmatprep.subr.mxu0 0.0
    %360 = vmatpush1.msra.mxu0 0.0
    %361 = vmatprep.subr.mxu0 0.0
    %362 = vmatpush1.msra.mxu0 0.0
    %363 = vmatprep.subr.mxu0 0.0
    %364 = vmatpush1.msra.mxu0 0.0
    %365 = vmatprep.subr.mxu0 0.0
    %366 = vmatpush1.msra.mxu0 0.0
    %367 = vmatprep.subr.mxu0 0.0
    %368 = vmatpush1.msra.mxu0 0.0
    %369 = vmatprep.subr.mxu0 0.0
    %370 = vmatpush1.msra.mxu0 0.0
    %371 = vmatprep.subr.mxu0 0.0
    %372 = vmatpush1.msra.mxu0 0.0
    %373 = vmatprep.subr.mxu0 0.0
    %374 = vmatpush1.msra.mxu0 0.0
    %375 = vmatprep.subr.mxu0 0.0
    %376 = vmatpush1.msra.mxu0 0.0
    %377 = vmatprep.subr.mxu0 0.0
    %378 = vmatpush1.msra.mxu0 0.0
    %379 = vmatprep.subr.mxu0 0.0
    %380 = vmatpush1.msra.mxu0 0.0
    %381 = vmatprep.subr.mxu0 0.0
    %382 = vmatpush1.msra.mxu0 0.0
    %383 = vmatprep.mubr.f32.mxu0 0.0
    %384 = vmatmul.mubr.f32.gmra.mrb[0].mxu0 %v317
    %v385 = vpop.f32.mrb[0].mxu0
    %v386 = vadd.f32 0.0, %v385
    %v387 = vpop.f32.mrb[0].mxu0
    %388 = vdwg.mxu0
    %v391 = vrot.slane %v105, 7
    %v392 = vsel %vm204, %v391, %v104
    %v393 = vsel %vm206, %v392, 0
    %395 = vmatprep.subr.mxu0 0.0
    %396 = vmatpush1.msra.mxu0 %v118
    %397 = vmatprep.subr.mxu0 0.0
    %398 = vmatpush1.msra.mxu0 %v119
    %399 = vmatprep.subr.mxu0 0.0
    %400 = vmatpush1.msra.mxu0 %v120
    %401 = vmatprep.subr.mxu0 0.0
    %402 = vmatpush1.msra.mxu0 %v211
    %403 = vmatprep.subr.mxu0 0.0
    %404 = vmatpush1.msra.mxu0 0.0
    %405 = vmatprep.subr.mxu0 0.0
    %406 = vmatpush1.msra.mxu0 0.0
    %407 = vmatprep.subr.mxu0 0.0
    %408 = vmatpush1.msra.mxu0 0.0
    %409 = vmatprep.subr.mxu0 0.0
    %410 = vmatpush1.msra.mxu0 0.0
    %411 = vmatprep.subr.mxu0 0.0
    %412 = vmatpush1.msra.mxu0 0.0
    %413 = vmatprep.subr.mxu0 0.0
    %414 = vmatpush1.msra.mxu0 0.0
    %415 = vmatprep.subr.mxu0 0.0
    %416 = vmatpush1.msra.mxu0 0.0
    %417 = vmatprep.subr.mxu0 0.0
    %418 = vmatpush1.msra.mxu0 0.0
    %419 = vmatprep.subr.mxu0 0.0
    %420 = vmatpush1.msra.mxu0 0.0
    %421 = vmatprep.subr.mxu0 0.0
    %422 = vmatpush1.msra.mxu0 0.0
    %423 = vmatprep.subr.mxu0 0.0
    %424 = vmatpush1.msra.mxu0 0.0
    %425 = vmatprep.subr.mxu0 0.0
    %426 = vmatpush1.msra.mxu0 0.0
    %427 = vmatprep.subr.mxu0 0.0
    %428 = vmatpush1.msra.mxu0 0.0
    %429 = vmatprep.subr.mxu0 0.0
    %430 = vmatpush1.msra.mxu0 0.0
    %431 = vmatprep.subr.mxu0 0.0
    %432 = vmatpush1.msra.mxu0 0.0
    %433 = vmatprep.subr.mxu0 0.0
    %434 = vmatpush1.msra.mxu0 0.0
    %435 = vmatprep.subr.mxu0 0.0
    %436 = vmatpush1.msra.mxu0 0.0
    %437 = vmatprep.subr.mxu0 0.0
    %438 = vmatpush1.msra.mxu0 0.0
    %439 = vmatprep.subr.mxu0 0.0
    %440 = vmatpush1.msra.mxu0 0.0
    %441 = vmatprep.subr.mxu0 0.0
    %442 = vmatpush1.msra.mxu0 0.0
    %443 = vmatprep.subr.mxu0 0.0
    %444 = vmatpush1.msra.mxu0 0.0
    %445 = vmatprep.subr.mxu0 0.0
    %446 = vmatpush1.msra.mxu0 0.0
    %447 = vmatprep.subr.mxu0 0.0
    %448 = vmatpush1.msra.mxu0 0.0
    %449 = vmatprep.subr.mxu0 0.0
    %450 = vmatpush1.msra.mxu0 0.0
    %451 = vmatprep.subr.mxu0 0.0
    %452 = vmatpush1.msra.mxu0 0.0
    %453 = vmatprep.subr.mxu0 0.0
    %454 = vmatpush1.msra.mxu0 0.0
    %455 = vmatprep.subr.mxu0 0.0
    %456 = vmatpush1.msra.mxu0 0.0
    %457 = vmatprep.subr.mxu0 0.0
    %458 = vmatpush1.msra.mxu0 0.0
    %459 = vmatprep.mubr.f32.mxu0 0.0
    %460 = vmatmul.mubr.f32.gmra.mrb[0].mxu0 %v393
    %v461 = vpop.f32.mrb[0].mxu0
    %v462 = vadd.f32 %v386, %v461
    %v463 = vpop.f32.mrb[0].mxu0
    %464 = vdwg.mxu0
    %v465 = vadd.f32 %v462, %v287
    %v466 = vxor.u32 %v465, 2147483648
    %v467 = vmul.f32 %v466, 1.442695
    %v468 = vpow.pop %v467
    %v469 = vadd.f32 %v468, 1.0
    %v470 = vrcp.pop %v469
    %v471 = vmul.f32 1.0, %v470
    %v472 = vtanh.pop %v465
    %v473 = vmul.f32 %v471, %v307
    %475 = vrot.lane.b32.xlu0 %v472, 64
    %v476 = vpop.permute.xlu0 %475
    %v478 = vmul.f32 %v471, %v476
    %480 = vrot.lane.b32.xlu0 %v478, 32
    %v481 = vpop.permute.xlu0 %480
    %v483 = vadd.f32 %v473, %v481
    %v484 = vtanh.pop %v483
    %486 = vrot.lane.b32.xlu0 %v484, 64
    %v487 = vpop.permute.xlu0 %486
    %v489 = vmul.f32 %v471, %v487
    %491 = vrot.lane.b32.xlu0 %v489, 32
    %v492 = vpop.permute.xlu0 %491
    %v493 = vsel %vm127, %v492, 0
    %495 = vmatprep.subr.mxu0 0.0
    %496 = vmatpush1.msra.mxu0 %v122
    %497 = vmatprep.subr.mxu0 0.0
    %498 = vmatpush1.msra.mxu0 %v123
    %499 = vmatprep.subr.mxu0 0.0
    %500 = vmatpush1.msra.mxu0 %v124
    %501 = vmatprep.subr.mxu0 0.0
    %502 = vmatpush1.msra.mxu0 %v125
    %503 = vmatprep.subr.mxu0 0.0
    %504 = vmatpush1.msra.mxu0 0.0
    %505 = vmatprep.subr.mxu0 0.0
    %506 = vmatpush1.msra.mxu0 0.0
    %507 = vmatprep.subr.mxu0 0.0
    %508 = vmatpush1.msra.mxu0 0.0
    %509 = vmatprep.subr.mxu0 0.0
    %510 = vmatpush1.msra.mxu0 0.0
    %511 = vmatprep.subr.mxu0 0.0
    %512 = vmatpush1.msra.mxu0 0.0
    %513 = vmatprep.subr.mxu0 0.0
    %514 = vmatpush1.msra.mxu0 0.0
    %515 = vmatprep.subr.mxu0 0.0
    %516 = vmatpush1.msra.mxu0 0.0
    %517 = vmatprep.subr.mxu0 0.0
    %518 = vmatpush1.msra.mxu0 0.0
    %519 = vmatprep.subr.mxu0 0.0
    %520 = vmatpush1.msra.mxu0 0.0
    %521 = vmatprep.subr.mxu0 0.0
    %522 = vmatpush1.msra.mxu0 0.0
    %523 = vmatprep.subr.mxu0 0.0
    %524 = vmatpush1.msra.mxu0 0.0
    %525 = vmatprep.subr.mxu0 0.0
    %526 = vmatpush1.msra.mxu0 0.0
    %527 = vmatprep.subr.mxu0 0.0
    %528 = vmatpush1.msra.mxu0 0.0
    %529 = vmatprep.subr.mxu0 0.0
    %530 = vmatpush1.msra.mxu0 0.0
    %531 = vmatprep.subr.mxu0 0.0
    %532 = vmatpush1.msra.mxu0 0.0
    %533 = vmatprep.subr.mxu0 0.0
    %534 = vmatpush1.msra.mxu0 0.0
    %535 = vmatprep.subr.mxu0 0.0
    %536 = vmatpush1.msra.mxu0 0.0
    %537 = vmatprep.subr.mxu0 0.0
    %538 = vmatpush1.msra.mxu0 0.0
    %539 = vmatprep.subr.mxu0 0.0
    %540 = vmatpush1.msra.mxu0 0.0
    %541 = vmatprep.subr.mxu0 0.0
    %542 = vmatpush1.msra.mxu0 0.0
    %543 = vmatprep.subr.mxu0 0.0
    %544 = vmatpush1.msra.mxu0 0.0
    %545 = vmatprep.subr.mxu0 0.0
    %546 = vmatpush1.msra.mxu0 0.0
    %547 = vmatprep.subr.mxu0 0.0
    %548 = vmatpush1.msra.mxu0 0.0
    %549 = vmatprep.subr.mxu0 0.0
    %550 = vmatpush1.msra.mxu0 0.0
    %551 = vmatprep.subr.mxu0 0.0
    %552 = vmatpush1.msra.mxu0 0.0
    %553 = vmatprep.subr.mxu0 0.0
    %554 = vmatpush1.msra.mxu0 0.0
    %555 = vmatprep.subr.mxu0 0.0
    %556 = vmatpush1.msra.mxu0 0.0
    %557 = vmatprep.subr.mxu0 0.0
    %558 = vmatpush1.msra.mxu0 0.0
    %559 = vmatprep.mubr.f32.mxu0 0.0
    %560 = vmatmul.mubr.f32.gmra.mrb[0].mxu0 %v493
    %v561 = vpop.f32.mrb[0].mxu0
    %v562 = vadd.f32 0.0, %v561
    %v563 = vpop.f32.mrb[0].mxu0
    %564 = vdwg.mxu0
    %v567 = vrot.slane %v107, 7
    %v568 = vsel %vm204, %v567, %v106
    %v569 = vsel %vm206, %v568, 0
    %571 = vmatprep.subr.mxu0 0.0
    %572 = vmatpush1.msra.mxu0 %v118
    %573 = vmatprep.subr.mxu0 0.0
    %574 = vmatpush1.msra.mxu0 %v119
    %575 = vmatprep.subr.mxu0 0.0
    %576 = vmatpush1.msra.mxu0 %v120
    %577 = vmatprep.subr.mxu0 0.0
    %578 = vmatpush1.msra.mxu0 %v211
    %579 = vmatprep.subr.mxu0 0.0
    %580 = vmatpush1.msra.mxu0 0.0
    %581 = vmatprep.subr.mxu0 0.0
    %582 = vmatpush1.msra.mxu0 0.0
    %583 = vmatprep.subr.mxu0 0.0
    %584 = vmatpush1.msra.mxu0 0.0
    %585 = vmatprep.subr.mxu0 0.0
    %586 = vmatpush1.msra.mxu0 0.0
    %587 = vmatprep.subr.mxu0 0.0
    %588 = vmatpush1.msra.mxu0 0.0
    %589 = vmatprep.subr.mxu0 0.0
    %590 = vmatpush1.msra.mxu0 0.0
    %591 = vmatprep.subr.mxu0 0.0
    %592 = vmatpush1.msra.mxu0 0.0
    %593 = vmatprep.subr.mxu0 0.0
    %594 = vmatpush1.msra.mxu0 0.0
    %595 = vmatprep.subr.mxu0 0.0
    %596 = vmatpush1.msra.mxu0 0.0
    %597 = vmatprep.subr.mxu0 0.0
    %598 = vmatpush1.msra.mxu0 0.0
    %599 = vmatprep.subr.mxu0 0.0
    %600 = vmatpush1.msra.mxu0 0.0
    %601 = vmatprep.subr.mxu0 0.0
    %602 = vmatpush1.msra.mxu0 0.0
    %603 = vmatprep.subr.mxu0 0.0
    %604 = vmatpush1.msra.mxu0 0.0
    %605 = vmatprep.subr.mxu0 0.0
    %606 = vmatpush1.msra.mxu0 0.0
    %607 = vmatprep.subr.mxu0 0.0
    %608 = vmatpush1.msra.mxu0 0.0
    %609 = vmatprep.subr.mxu0 0.0
    %610 = vmatpush1.msra.mxu0 0.0
    %611 = vmatprep.subr.mxu0 0.0
    %612 = vmatpush1.msra.mxu0 0.0
    %613 = vmatprep.subr.mxu0 0.0
    %614 = vmatpush1.msra.mxu0 0.0
    %615 = vmatprep.subr.mxu0 0.0
    %616 = vmatpush1.msra.mxu0 0.0
    %617 = vmatprep.subr.mxu0 0.0
    %618 = vmatpush1.msra.mxu0 0.0
    %619 = vmatprep.subr.mxu0 0.0
    %620 = vmatpush1.msra.mxu0 0.0
    %621 = vmatprep.subr.mxu0 0.0
    %622 = vmatpush1.msra.mxu0 0.0
    %623 = vmatprep.subr.mxu0 0.0
    %624 = vmatpush1.msra.mxu0 0.0
    %625 = vmatprep.subr.mxu0 0.0
    %626 = vmatpush1.msra.mxu0 0.0
    %627 = vmatprep.subr.mxu0 0.0
    %628 = vmatpush1.msra.mxu0 0.0
    %629 = vmatprep.subr.mxu0 0.0
    %630 = vmatpush1.msra.mxu0 0.0
    %631 = vmatprep.subr.mxu0 0.0
    %632 = vmatpush1.msra.mxu0 0.0
    %633 = vmatprep.subr.mxu0 0.0
    %634 = vmatpush1.msra.mxu0 0.0
    %635 = vmatprep.mubr.f32.mxu0 0.0
    %636 = vmatmul.mubr.f32.gmra.mrb[0].mxu0 %v569
    %v637 = vpop.f32.mrb[0].mxu0
    %v638 = vadd.f32 %v562, %v637
    %v639 = vpop.f32.mrb[0].mxu0
    %640 = vdwg.mxu0
    %v641 = vadd.f32 %v638, %v287
    %v642 = vxor.u32 %v641, 2147483648
    %v643 = vmul.f32 %v642, 1.442695
    %v644 = vpow.pop %v643
    %v645 = vadd.f32 %v644, 1.0
    %v646 = vrcp.pop %v645
    %v647 = vmul.f32 1.0, %v646
    %v648 = vtanh.pop %v641
    %v649 = vmul.f32 %v647, %v483
    %651 = vrot.lane.b32.xlu0 %v648, 64
    %v652 = vpop.permute.xlu0 %651
    %v654 = vmul.f32 %v647, %v652
    %656 = vrot.lane.b32.xlu0 %v654, 32
    %v657 = vpop.permute.xlu0 %656
    %v659 = vadd.f32 %v649, %v657
    %v660 = vtanh.pop %v659
    %662 = vrot.lane.b32.xlu0 %v660, 64
    %v663 = vpop.permute.xlu0 %662
    %v665 = vmul.f32 %v647, %v663
    %667 = vrot.lane.b32.xlu0 %v665, 32
    %v668 = vpop.permute.xlu0 %667
    %v669 = vsel %vm127, %v668, 0
    %671 = vmatprep.subr.mxu0 0.0
    %672 = vmatpush1.msra.mxu0 %v122
    %673 = vmatprep.subr.mxu0 0.0
    %674 = vmatpush1.msra.mxu0 %v123
    %675 = vmatprep.subr.mxu0 0.0
    %676 = vmatpush1.msra.mxu0 %v124
    %677 = vmatprep.subr.mxu0 0.0
    %678 = vmatpush1.msra.mxu0 %v125
    %679 = vmatprep.subr.mxu0 0.0
    %680 = vmatpush1.msra.mxu0 0.0
    %681 = vmatprep.subr.mxu0 0.0
    %682 = vmatpush1.msra.mxu0 0.0
    %683 = vmatprep.subr.mxu0 0.0
    %684 = vmatpush1.msra.mxu0 0.0
    %685 = vmatprep.subr.mxu0 0.0
    %686 = vmatpush1.msra.mxu0 0.0
    %687 = vmatprep.subr.mxu0 0.0
    %688 = vmatpush1.msra.mxu0 0.0
    %689 = vmatprep.subr.mxu0 0.0
    %690 = vmatpush1.msra.mxu0 0.0
    %691 = vmatprep.subr.mxu0 0.0
    %692 = vmatpush1.msra.mxu0 0.0
    %693 = vmatprep.subr.mxu0 0.0
    %694 = vmatpush1.msra.mxu0 0.0
    %695 = vmatprep.subr.mxu0 0.0
    %696 = vmatpush1.msra.mxu0 0.0
    %697 = vmatprep.subr.mxu0 0.0
    %698 = vmatpush1.msra.mxu0 0.0
    %699 = vmatprep.subr.mxu0 0.0
    %700 = vmatpush1.msra.mxu0 0.0
    %701 = vmatprep.subr.mxu0 0.0
    %702 = vmatpush1.msra.mxu0 0.0
    %703 = vmatprep.subr.mxu0 0.0
    %704 = vmatpush1.msra.mxu0 0.0
    %705 = vmatprep.subr.mxu0 0.0
    %706 = vmatpush1.msra.mxu0 0.0
    %707 = vmatprep.subr.mxu0 0.0
    %708 = vmatpush1.msra.mxu0 0.0
    %709 = vmatprep.subr.mxu0 0.0
    %710 = vmatpush1.msra.mxu0 0.0
    %711 = vmatprep.subr.mxu0 0.0
    %712 = vmatpush1.msra.mxu0 0.0
    %713 = vmatprep.subr.mxu0 0.0
    %714 = vmatpush1.msra.mxu0 0.0
    %715 = vmatprep.subr.mxu0 0.0
    %716 = vmatpush1.msra.mxu0 0.0
    %717 = vmatprep.subr.mxu0 0.0
    %718 = vmatpush1.msra.mxu0 0.0
    %719 = vmatprep.subr.mxu0 0.0
    %720 = vmatpush1.msra.mxu0 0.0
    %721 = vmatprep.subr.mxu0 0.0
    %722 = vmatpush1.msra.mxu0 0.0
    %723 = vmatprep.subr.mxu0 0.0
    %724 = vmatpush1.msra.mxu0 0.0
    %725 = vmatprep.subr.mxu0 0.0
    %726 = vmatpush1.msra.mxu0 0.0
    %727 = vmatprep.subr.mxu0 0.0
    %728 = vmatpush1.msra.mxu0 0.0
    %729 = vmatprep.subr.mxu0 0.0
    %730 = vmatpush1.msra.mxu0 0.0
    %731 = vmatprep.subr.mxu0 0.0
    %732 = vmatpush1.msra.mxu0 0.0
    %733 = vmatprep.subr.mxu0 0.0
    %734 = vmatpush1.msra.mxu0 0.0
    %735 = vmatprep.mubr.f32.mxu0 0.0
    %736 = vmatmul.mubr.f32.gmra.mrb[0].mxu0 %v669
    %v737 = vpop.f32.mrb[0].mxu0
    %v738 = vadd.f32 0.0, %v737
    %v739 = vpop.f32.mrb[0].mxu0
    %740 = vdwg.mxu0
    %v743 = vrot.slane %v109, 7
    %v744 = vsel %vm204, %v743, %v108
    %v745 = vsel %vm206, %v744, 0
    %747 = vmatprep.subr.mxu0 0.0
    %748 = vmatpush1.msra.mxu0 %v118
    %749 = vmatprep.subr.mxu0 0.0
    %750 = vmatpush1.msra.mxu0 %v119
    %751 = vmatprep.subr.mxu0 0.0
    %752 = vmatpush1.msra.mxu0 %v120
    %753 = vmatprep.subr.mxu0 0.0
    %754 = vmatpush1.msra.mxu0 %v211
    %755 = vmatprep.subr.mxu0 0.0
    %756 = vmatpush1.msra.mxu0 0.0
    %757 = vmatprep.subr.mxu0 0.0
    %758 = vmatpush1.msra.mxu0 0.0
    %759 = vmatprep.subr.mxu0 0.0
    %760 = vmatpush1.msra.mxu0 0.0
    %761 = vmatprep.subr.mxu0 0.0
    %762 = vmatpush1.msra.mxu0 0.0
    %763 = vmatprep.subr.mxu0 0.0
    %764 = vmatpush1.msra.mxu0 0.0
    %765 = vmatprep.subr.mxu0 0.0
    %766 = vmatpush1.msra.mxu0 0.0
    %767 = vmatprep.subr.mxu0 0.0
    %768 = vmatpush1.msra.mxu0 0.0
    %769 = vmatprep.subr.mxu0 0.0
    %770 = vmatpush1.msra.mxu0 0.0
    %771 = vmatprep.subr.mxu0 0.0
    %772 = vmatpush1.msra.mxu0 0.0
    %773 = vmatprep.subr.mxu0 0.0
    %774 = vmatpush1.msra.mxu0 0.0
    %775 = vmatprep.subr.mxu0 0.0
    %776 = vmatpush1.msra.mxu0 0.0
    %777 = vmatprep.subr.mxu0 0.0
    %778 = vmatpush1.msra.mxu0 0.0
    %779 = vmatprep.subr.mxu0 0.0
    %780 = vmatpush1.msra.mxu0 0.0
    %781 = vmatprep.subr.mxu0 0.0
    %782 = vmatpush1.msra.mxu0 0.0
    %783 = vmatprep.subr.mxu0 0.0
    %784 = vmatpush1.msra.mxu0 0.0
    %785 = vmatprep.subr.mxu0 0.0
    %786 = vmatpush1.msra.mxu0 0.0
    %787 = vmatprep.subr.mxu0 0.0
    %788 = vmatpush1.msra.mxu0 0.0
    %789 = vmatprep.subr.mxu0 0.0
    %790 = vmatpush1.msra.mxu0 0.0
    %791 = vmatprep.subr.mxu0 0.0
    %792 = vmatpush1.msra.mxu0 0.0
    %793 = vmatprep.subr.mxu0 0.0
    %794 = vmatpush1.msra.mxu0 0.0
    %795 = vmatprep.subr.mxu0 0.0
    %796 = vmatpush1.msra.mxu0 0.0
    %797 = vmatprep.subr.mxu0 0.0
    %798 = vmatpush1.msra.mxu0 0.0
    %799 = vmatprep.subr.mxu0 0.0
    %800 = vmatpush1.msra.mxu0 0.0
    %801 = vmatprep.subr.mxu0 0.0
    %802 = vmatpush1.msra.mxu0 0.0
    %803 = vmatprep.subr.mxu0 0.0
    %804 = vmatpush1.msra.mxu0 0.0
    %805 = vmatprep.subr.mxu0 0.0
    %806 = vmatpush1.msra.mxu0 0.0
    %807 = vmatprep.subr.mxu0 0.0
    %808 = vmatpush1.msra.mxu0 0.0
    %809 = vmatprep.subr.mxu0 0.0
    %810 = vmatpush1.msra.mxu0 0.0
    %811 = vmatprep.mubr.f32.mxu0 0.0
    %812 = vmatmul.mubr.f32.gmra.mrb[0].mxu0 %v745
    %v813 = vpop.f32.mrb[0].mxu0
    %v814 = vadd.f32 %v738, %v813
    %v815 = vpop.f32.mrb[0].mxu0
    %816 = vdwg.mxu0
    %v817 = vadd.f32 %v814, %v287
    %v818 = vxor.u32 %v817, 2147483648
    %v819 = vmul.f32 %v818, 1.442695
    %v820 = vpow.pop %v819
    %v821 = vadd.f32 %v820, 1.0
    %v822 = vrcp.pop %v821
    %v823 = vmul.f32 1.0, %v822
    %v824 = vtanh.pop %v817
    %v825 = vmul.f32 %v823, %v659
    %827 = vrot.lane.b32.xlu0 %v824, 64
    %v828 = vpop.permute.xlu0 %827
    %v830 = vmul.f32 %v823, %v828
    %832 = vrot.lane.b32.xlu0 %v830, 32
    %v833 = vpop.permute.xlu0 %832
    %v835 = vadd.f32 %v825, %v833
    %v836 = vtanh.pop %v835
    %838 = vrot.lane.b32.xlu0 %v836, 64
    %v839 = vpop.permute.xlu0 %838
    %v841 = vmul.f32 %v823, %v839
    %843 = vrot.lane.b32.xlu0 %v841, 32
    %v844 = vpop.permute.xlu0 %843
    %v845 = vsel %vm127, %v844, 0
    %847 = vmatprep.subr.mxu0 0.0
    %848 = vmatpush1.msra.mxu0 %v122
    %849 = vmatprep.subr.mxu0 0.0
    %850 = vmatpush1.msra.mxu0 %v123
    %851 = vmatprep.subr.mxu0 0.0
    %852 = vmatpush1.msra.mxu0 %v124
    %853 = vmatprep.subr.mxu0 0.0
    %854 = vmatpush1.msra.mxu0 %v125
    %855 = vmatprep.subr.mxu0 0.0
    %856 = vmatpush1.msra.mxu0 0.0
    %857 = vmatprep.subr.mxu0 0.0
    %858 = vmatpush1.msra.mxu0 0.0
    %859 = vmatprep.subr.mxu0 0.0
    %860 = vmatpush1.msra.mxu0 0.0
    %861 = vmatprep.subr.mxu0 0.0
    %862 = vmatpush1.msra.mxu0 0.0
    %863 = vmatprep.subr.mxu0 0.0
    %864 = vmatpush1.msra.mxu0 0.0
    %865 = vmatprep.subr.mxu0 0.0
    %866 = vmatpush1.msra.mxu0 0.0
    %867 = vmatprep.subr.mxu0 0.0
    %868 = vmatpush1.msra.mxu0 0.0
    %869 = vmatprep.subr.mxu0 0.0
    %870 = vmatpush1.msra.mxu0 0.0
    %871 = vmatprep.subr.mxu0 0.0
    %872 = vmatpush1.msra.mxu0 0.0
    %873 = vmatprep.subr.mxu0 0.0
    %874 = vmatpush1.msra.mxu0 0.0
    %875 = vmatprep.subr.mxu0 0.0
    %876 = vmatpush1.msra.mxu0 0.0
    %877 = vmatprep.subr.mxu0 0.0
    %878 = vmatpush1.msra.mxu0 0.0
    %879 = vmatprep.subr.mxu0 0.0
    %880 = vmatpush1.msra.mxu0 0.0
    %881 = vmatprep.subr.mxu0 0.0
    %882 = vmatpush1.msra.mxu0 0.0
    %883 = vmatprep.subr.mxu0 0.0
    %884 = vmatpush1.msra.mxu0 0.0
    %885 = vmatprep.subr.mxu0 0.0
    %886 = vmatpush1.msra.mxu0 0.0
    %887 = vmatprep.subr.mxu0 0.0
    %888 = vmatpush1.msra.mxu0 0.0
    %889 = vmatprep.subr.mxu0 0.0
    %890 = vmatpush1.msra.mxu0 0.0
    %891 = vmatprep.subr.mxu0 0.0
    %892 = vmatpush1.msra.mxu0 0.0
    %893 = vmatprep.subr.mxu0 0.0
    %894 = vmatpush1.msra.mxu0 0.0
    %895 = vmatprep.subr.mxu0 0.0
    %896 = vmatpush1.msra.mxu0 0.0
    %897 = vmatprep.subr.mxu0 0.0
    %898 = vmatpush1.msra.mxu0 0.0
    %899 = vmatprep.subr.mxu0 0.0
    %900 = vmatpush1.msra.mxu0 0.0
    %901 = vmatprep.subr.mxu0 0.0
    %902 = vmatpush1.msra.mxu0 0.0
    %903 = vmatprep.subr.mxu0 0.0
    %904 = vmatpush1.msra.mxu0 0.0
    %905 = vmatprep.subr.mxu0 0.0
    %906 = vmatpush1.msra.mxu0 0.0
    %907 = vmatprep.subr.mxu0 0.0
    %908 = vmatpush1.msra.mxu0 0.0
    %909 = vmatprep.subr.mxu0 0.0
    %910 = vmatpush1.msra.mxu0 0.0
    %911 = vmatprep.mubr.f32.mxu0 0.0
    %912 = vmatmul.mubr.f32.gmra.mrb[0].mxu0 %v845
    %v913 = vpop.f32.mrb[0].mxu0
    %v914 = vadd.f32 0.0, %v913
    %v915 = vpop.f32.mrb[0].mxu0
    %916 = vdwg.mxu0
    %v919 = vrot.slane %v111, 7
    %v920 = vsel %vm204, %v919, %v110
    %v921 = vsel %vm206, %v920, 0
    %923 = vmatprep.subr.mxu0 0.0
    %924 = vmatpush1.msra.mxu0 %v118
    %925 = vmatprep.subr.mxu0 0.0
    %926 = vmatpush1.msra.mxu0 %v119
    %927 = vmatprep.subr.mxu0 0.0
    %928 = vmatpush1.msra.mxu0 %v120
    %929 = vmatprep.subr.mxu0 0.0
    %930 = vmatpush1.msra.mxu0 %v211
    %931 = vmatprep.subr.mxu0 0.0
    %932 = vmatpush1.msra.mxu0 0.0
    %933 = vmatprep.subr.mxu0 0.0
    %934 = vmatpush1.msra.mxu0 0.0
    %935 = vmatprep.subr.mxu0 0.0
    %936 = vmatpush1.msra.mxu0 0.0
    %937 = vmatprep.subr.mxu0 0.0
    %938 = vmatpush1.msra.mxu0 0.0
    %939 = vmatprep.subr.mxu0 0.0
    %940 = vmatpush1.msra.mxu0 0.0
    %941 = vmatprep.subr.mxu0 0.0
    %942 = vmatpush1.msra.mxu0 0.0
    %943 = vmatprep.subr.mxu0 0.0
    %944 = vmatpush1.msra.mxu0 0.0
    %945 = vmatprep.subr.mxu0 0.0
    %946 = vmatpush1.msra.mxu0 0.0
    %947 = vmatprep.subr.mxu0 0.0
    %948 = vmatpush1.msra.mxu0 0.0
    %949 = vmatprep.subr.mxu0 0.0
    %950 = vmatpush1.msra.mxu0 0.0
    %951 = vmatprep.subr.mxu0 0.0
    %952 = vmatpush1.msra.mxu0 0.0
    %953 = vmatprep.subr.mxu0 0.0
    %954 = vmatpush1.msra.mxu0 0.0
    %955 = vmatprep.subr.mxu0 0.0
    %956 = vmatpush1.msra.mxu0 0.0
    %957 = vmatprep.subr.mxu0 0.0
    %958 = vmatpush1.msra.mxu0 0.0
    %959 = vmatprep.subr.mxu0 0.0
    %960 = vmatpush1.msra.mxu0 0.0
    %961 = vmatprep.subr.mxu0 0.0
    %962 = vmatpush1.msra.mxu0 0.0
    %963 = vmatprep.subr.mxu0 0.0
    %964 = vmatpush1.msra.mxu0 0.0
    %965 = vmatprep.subr.mxu0 0.0
    %966 = vmatpush1.msra.mxu0 0.0
    %967 = vmatprep.subr.mxu0 0.0
    %968 = vmatpush1.msra.mxu0 0.0
    %969 = vmatprep.subr.mxu0 0.0
    %970 = vmatpush1.msra.mxu0 0.0
    %971 = vmatprep.subr.mxu0 0.0
    %972 = vmatpush1.msra.mxu0 0.0
    %973 = vmatprep.subr.mxu0 0.0
    %974 = vmatpush1.msra.mxu0 0.0
    %975 = vmatprep.subr.mxu0 0.0
    %976 = vmatpush1.msra.mxu0 0.0
    %977 = vmatprep.subr.mxu0 0.0
    %978 = vmatpush1.msra.mxu0 0.0
    %979 = vmatprep.subr.mxu0 0.0
    %980 = vmatpush1.msra.mxu0 0.0
    %981 = vmatprep.subr.mxu0 0.0
    %982 = vmatpush1.msra.mxu0 0.0
    %983 = vmatprep.subr.mxu0 0.0
    %984 = vmatpush1.msra.mxu0 0.0
    %985 = vmatprep.subr.mxu0 0.0
    %986 = vmatpush1.msra.mxu0 0.0
    %987 = vmatprep.mubr.f32.mxu0 0.0
    %988 = vmatmul.mubr.f32.gmra.mrb[0].mxu0 %v921
    %v989 = vpop.f32.mrb[0].mxu0
    %v990 = vadd.f32 %v914, %v989
    %v991 = vpop.f32.mrb[0].mxu0
    %992 = vdwg.mxu0
    %v993 = vadd.f32 %v990, %v287
    %v994 = vxor.u32 %v993, 2147483648
    %v995 = vmul.f32 %v994, 1.442695
    %v996 = vpow.pop %v995
    %v997 = vadd.f32 %v996, 1.0
    %v998 = vrcp.pop %v997
    %v999 = vmul.f32 1.0, %v998
    %v1000 = vtanh.pop %v993
    %v1001 = vmul.f32 %v999, %v835
    %1003 = vrot.lane.b32.xlu0 %v1000, 64
    %v1004 = vpop.permute.xlu0 %1003
    %v1006 = vmul.f32 %v999, %v1004
    %1008 = vrot.lane.b32.xlu0 %v1006, 32
    %v1009 = vpop.permute.xlu0 %1008
    %v1011 = vadd.f32 %v1001, %v1009
    %v1012 = vtanh.pop %v1011
    %1014 = vrot.lane.b32.xlu0 %v1012, 64
    %v1015 = vpop.permute.xlu0 %1014
    %v1017 = vmul.f32 %v999, %v1015
    %1019 = vrot.lane.b32.xlu0 %v1017, 32
    %v1020 = vpop.permute.xlu0 %1019
    %v1021 = vsel %vm127, %v1020, 0
    %1023 = vmatprep.subr.mxu0 0.0
    %1024 = vmatpush1.msra.mxu0 %v122
    %1025 = vmatprep.subr.mxu0 0.0
    %1026 = vmatpush1.msra.mxu0 %v123
    %1027 = vmatprep.subr.mxu0 0.0
    %1028 = vmatpush1.msra.mxu0 %v124
    %1029 = vmatprep.subr.mxu0 0.0
    %1030 = vmatpush1.msra.mxu0 %v125
    %1031 = vmatprep.subr.mxu0 0.0
    %1032 = vmatpush1.msra.mxu0 0.0
    %1033 = vmatprep.subr.mxu0 0.0
    %1034 = vmatpush1.msra.mxu0 0.0
    %1035 = vmatprep.subr.mxu0 0.0
    %1036 = vmatpush1.msra.mxu0 0.0
    %1037 = vmatprep.subr.mxu0 0.0
    %1038 = vmatpush1.msra.mxu0 0.0
    %1039 = vmatprep.subr.mxu0 0.0
    %1040 = vmatpush1.msra.mxu0 0.0
    %1041 = vmatprep.subr.mxu0 0.0
    %1042 = vmatpush1.msra.mxu0 0.0
    %1043 = vmatprep.subr.mxu0 0.0
    %1044 = vmatpush1.msra.mxu0 0.0
    %1045 = vmatprep.subr.mxu0 0.0
    %1046 = vmatpush1.msra.mxu0 0.0
    %1047 = vmatprep.subr.mxu0 0.0
    %1048 = vmatpush1.msra.mxu0 0.0
    %1049 = vmatprep.subr.mxu0 0.0
    %1050 = vmatpush1.msra.mxu0 0.0
    %1051 = vmatprep.subr.mxu0 0.0
    %1052 = vmatpush1.msra.mxu0 0.0
    %1053 = vmatprep.subr.mxu0 0.0
    %1054 = vmatpush1.msra.mxu0 0.0
    %1055 = vmatprep.subr.mxu0 0.0
    %1056 = vmatpush1.msra.mxu0 0.0
    %1057 = vmatprep.subr.mxu0 0.0
    %1058 = vmatpush1.msra.mxu0 0.0
    %1059 = vmatprep.subr.mxu0 0.0
    %1060 = vmatpush1.msra.mxu0 0.0
    %1061 = vmatprep.subr.mxu0 0.0
    %1062 = vmatpush1.msra.mxu0 0.0
    %1063 = vmatprep.subr.mxu0 0.0
    %1064 = vmatpush1.msra.mxu0 0.0
    %1065 = vmatprep.subr.mxu0 0.0
    %1066 = vmatpush1.msra.mxu0 0.0
    %1067 = vmatprep.subr.mxu0 0.0
    %1068 = vmatpush1.msra.mxu0 0.0
    %1069 = vmatprep.subr.mxu0 0.0
    %1070 = vmatpush1.msra.mxu0 0.0
    %1071 = vmatprep.subr.mxu0 0.0
    %1072 = vmatpush1.msra.mxu0 0.0
    %1073 = vmatprep.subr.mxu0 0.0
    %1074 = vmatpush1.msra.mxu0 0.0
    %1075 = vmatprep.subr.mxu0 0.0
    %1076 = vmatpush1.msra.mxu0 0.0
    %1077 = vmatprep.subr.mxu0 0.0
    %1078 = vmatpush1.msra.mxu0 0.0
    %1079 = vmatprep.subr.mxu0 0.0
    %1080 = vmatpush1.msra.mxu0 0.0
    %1081 = vmatprep.subr.mxu0 0.0
    %1082 = vmatpush1.msra.mxu0 0.0
    %1083 = vmatprep.subr.mxu0 0.0
    %1084 = vmatpush1.msra.mxu0 0.0
    %1085 = vmatprep.subr.mxu0 0.0
    %1086 = vmatpush1.msra.mxu0 0.0
    %1087 = vmatprep.mubr.f32.mxu0 0.0
    %1088 = vmatmul.mubr.f32.gmra.mrb[0].mxu0 %v1021
    %v1089 = vpop.f32.mrb[0].mxu0
    %v1090 = vadd.f32 0.0, %v1089
    %v1091 = vpop.f32.mrb[0].mxu0
    %1092 = vdwg.mxu0
    %v1095 = vrot.slane %v113, 7
    %v1096 = vsel %vm204, %v1095, %v112
    %v1097 = vsel %vm206, %v1096, 0
    %1099 = vmatprep.subr.mxu0 0.0
    %1100 = vmatpush1.msra.mxu0 %v118
    %1101 = vmatprep.subr.mxu0 0.0
    %1102 = vmatpush1.msra.mxu0 %v119
    %1103 = vmatprep.subr.mxu0 0.0
    %1104 = vmatpush1.msra.mxu0 %v120
    %1105 = vmatprep.subr.mxu0 0.0
    %1106 = vmatpush1.msra.mxu0 %v211
    %1107 = vmatprep.subr.mxu0 0.0
    %1108 = vmatpush1.msra.mxu0 0.0
    %1109 = vmatprep.subr.mxu0 0.0
    %1110 = vmatpush1.msra.mxu0 0.0
    %1111 = vmatprep.subr.mxu0 0.0
    %1112 = vmatpush1.msra.mxu0 0.0
    %1113 = vmatprep.subr.mxu0 0.0
    %1114 = vmatpush1.msra.mxu0 0.0
    %1115 = vmatprep.subr.mxu0 0.0
    %1116 = vmatpush1.msra.mxu0 0.0
    %1117 = vmatprep.subr.mxu0 0.0
    %1118 = vmatpush1.msra.mxu0 0.0
    %1119 = vmatprep.subr.mxu0 0.0
    %1120 = vmatpush1.msra.mxu0 0.0
    %1121 = vmatprep.subr.mxu0 0.0
    %1122 = vmatpush1.msra.mxu0 0.0
    %1123 = vmatprep.subr.mxu0 0.0
    %1124 = vmatpush1.msra.mxu0 0.0
    %1125 = vmatprep.subr.mxu0 0.0
    %1126 = vmatpush1.msra.mxu0 0.0
    %1127 = vmatprep.subr.mxu0 0.0
    %1128 = vmatpush1.msra.mxu0 0.0
    %1129 = vmatprep.subr.mxu0 0.0
    %1130 = vmatpush1.msra.mxu0 0.0
    %1131 = vmatprep.subr.mxu0 0.0
    %1132 = vmatpush1.msra.mxu0 0.0
    %1133 = vmatprep.subr.mxu0 0.0
    %1134 = vmatpush1.msra.mxu0 0.0
    %1135 = vmatprep.subr.mxu0 0.0
    %1136 = vmatpush1.msra.mxu0 0.0
    %1137 = vmatprep.subr.mxu0 0.0
    %1138 = vmatpush1.msra.mxu0 0.0
    %1139 = vmatprep.subr.mxu0 0.0
    %1140 = vmatpush1.msra.mxu0 0.0
    %1141 = vmatprep.subr.mxu0 0.0
    %1142 = vmatpush1.msra.mxu0 0.0
    %1143 = vmatprep.subr.mxu0 0.0
    %1144 = vmatpush1.msra.mxu0 0.0
    %1145 = vmatprep.subr.mxu0 0.0
    %1146 = vmatpush1.msra.mxu0 0.0
    %1147 = vmatprep.subr.mxu0 0.0
    %1148 = vmatpush1.msra.mxu0 0.0
    %1149 = vmatprep.subr.mxu0 0.0
    %1150 = vmatpush1.msra.mxu0 0.0
    %1151 = vmatprep.subr.mxu0 0.0
    %1152 = vmatpush1.msra.mxu0 0.0
    %1153 = vmatprep.subr.mxu0 0.0
    %1154 = vmatpush1.msra.mxu0 0.0
    %1155 = vmatprep.subr.mxu0 0.0
    %1156 = vmatpush1.msra.mxu0 0.0
    %1157 = vmatprep.subr.mxu0 0.0
    %1158 = vmatpush1.msra.mxu0 0.0
    %1159 = vmatprep.subr.mxu0 0.0
    %1160 = vmatpush1.msra.mxu0 0.0
    %1161 = vmatprep.subr.mxu0 0.0
    %1162 = vmatpush1.msra.mxu0 0.0
    %1163 = vmatprep.mubr.f32.mxu0 0.0
    %1164 = vmatmul.mubr.f32.gmra.mrb[0].mxu0 %v1097
    %v1165 = vpop.f32.mrb[0].mxu0
    %v1166 = vadd.f32 %v1090, %v1165
    %v1167 = vpop.f32.mrb[0].mxu0
    %1168 = vdwg.mxu0
    %v1169 = vadd.f32 %v1166, %v287
    %v1170 = vxor.u32 %v1169, 2147483648
    %v1171 = vmul.f32 %v1170, 1.442695
    %v1172 = vpow.pop %v1171
    %v1173 = vadd.f32 %v1172, 1.0
    %v1174 = vrcp.pop %v1173
    %v1175 = vmul.f32 1.0, %v1174
    %v1176 = vtanh.pop %v1169
    %v1177 = vmul.f32 %v1175, %v1011
    %1179 = vrot.lane.b32.xlu0 %v1176, 64
    %v1180 = vpop.permute.xlu0 %1179
    %v1182 = vmul.f32 %v1175, %v1180
    %1184 = vrot.lane.b32.xlu0 %v1182, 32
    %v1185 = vpop.permute.xlu0 %1184
    %v1187 = vadd.f32 %v1177, %v1185
    %v1188 = vtanh.pop %v1187
    %1190 = vrot.lane.b32.xlu0 %v1188, 64
    %v1191 = vpop.permute.xlu0 %1190
    %v1193 = vmul.f32 %v1175, %v1191
    %1195 = vrot.lane.b32.xlu0 %v1193, 32
    %v1196 = vpop.permute.xlu0 %1195
    %v1197 = vsel %vm127, %v1196, 0
    %1199 = vmatprep.subr.mxu0 0.0
    %1200 = vmatpush1.msra.mxu0 %v122
    %1201 = vmatprep.subr.mxu0 0.0
    %1202 = vmatpush1.msra.mxu0 %v123
    %1203 = vmatprep.subr.mxu0 0.0
    %1204 = vmatpush1.msra.mxu0 %v124
    %1205 = vmatprep.subr.mxu0 0.0
    %1206 = vmatpush1.msra.mxu0 %v125
    %1207 = vmatprep.subr.mxu0 0.0
    %1208 = vmatpush1.msra.mxu0 0.0
    %1209 = vmatprep.subr.mxu0 0.0
    %1210 = vmatpush1.msra.mxu0 0.0
    %1211 = vmatprep.subr.mxu0 0.0
    %1212 = vmatpush1.msra.mxu0 0.0
    %1213 = vmatprep.subr.mxu0 0.0
    %1214 = vmatpush1.msra.mxu0 0.0
    %1215 = vmatprep.subr.mxu0 0.0
    %1216 = vmatpush1.msra.mxu0 0.0
    %1217 = vmatprep.subr.mxu0 0.0
    %1218 = vmatpush1.msra.mxu0 0.0
    %1219 = vmatprep.subr.mxu0 0.0
    %1220 = vmatpush1.msra.mxu0 0.0
    %1221 = vmatprep.subr.mxu0 0.0
    %1222 = vmatpush1.msra.mxu0 0.0
    %1223 = vmatprep.subr.mxu0 0.0
    %1224 = vmatpush1.msra.mxu0 0.0
    %1225 = vmatprep.subr.mxu0 0.0
    %1226 = vmatpush1.msra.mxu0 0.0
    %1227 = vmatprep.subr.mxu0 0.0
    %1228 = vmatpush1.msra.mxu0 0.0
    %1229 = vmatprep.subr.mxu0 0.0
    %1230 = vmatpush1.msra.mxu0 0.0
    %1231 = vmatprep.subr.mxu0 0.0
    %1232 = vmatpush1.msra.mxu0 0.0
    %1233 = vmatprep.subr.mxu0 0.0
    %1234 = vmatpush1.msra.mxu0 0.0
    %1235 = vmatprep.subr.mxu0 0.0
    %1236 = vmatpush1.msra.mxu0 0.0
    %1237 = vmatprep.subr.mxu0 0.0
    %1238 = vmatpush1.msra.mxu0 0.0
    %1239 = vmatprep.subr.mxu0 0.0
    %1240 = vmatpush1.msra.mxu0 0.0
    %1241 = vmatprep.subr.mxu0 0.0
    %1242 = vmatpush1.msra.mxu0 0.0
    %1243 = vmatprep.subr.mxu0 0.0
    %1244 = vmatpush1.msra.mxu0 0.0
    %1245 = vmatprep.subr.mxu0 0.0
    %1246 = vmatpush1.msra.mxu0 0.0
    %1247 = vmatprep.subr.mxu0 0.0
    %1248 = vmatpush1.msra.mxu0 0.0
    %1249 = vmatprep.subr.mxu0 0.0
    %1250 = vmatpush1.msra.mxu0 0.0
    %1251 = vmatprep.subr.mxu0 0.0
    %1252 = vmatpush1.msra.mxu0 0.0
    %1253 = vmatprep.subr.mxu0 0.0
    %1254 = vmatpush1.msra.mxu0 0.0
    %1255 = vmatprep.subr.mxu0 0.0
    %1256 = vmatpush1.msra.mxu0 0.0
    %1257 = vmatprep.subr.mxu0 0.0
    %1258 = vmatpush1.msra.mxu0 0.0
    %1259 = vmatprep.subr.mxu0 0.0
    %1260 = vmatpush1.msra.mxu0 0.0
    %1261 = vmatprep.subr.mxu0 0.0
    %1262 = vmatpush1.msra.mxu0 0.0
    %1263 = vmatprep.mubr.f32.mxu0 0.0
    %1264 = vmatmul.mubr.f32.gmra.mrb[0].mxu0 %v1197
    %v1265 = vpop.f32.mrb[0].mxu0
    %v1266 = vadd.f32 0.0, %v1265
    %v1267 = vpop.f32.mrb[0].mxu0
    %1268 = vdwg.mxu0
    %v1271 = vrot.slane %v115, 7
    %v1272 = vsel %vm204, %v1271, %v114
    %v1273 = vsel %vm206, %v1272, 0
    %1275 = vmatprep.subr.mxu0 0.0
    %1276 = vmatpush1.msra.mxu0 %v118
    %1277 = vmatprep.subr.mxu0 0.0
    %1278 = vmatpush1.msra.mxu0 %v119
    %1279 = vmatprep.subr.mxu0 0.0
    %1280 = vmatpush1.msra.mxu0 %v120
    %1281 = vmatprep.subr.mxu0 0.0
    %1282 = vmatpush1.msra.mxu0 %v211
    %1283 = vmatprep.subr.mxu0 0.0
    %1284 = vmatpush1.msra.mxu0 0.0
    %1285 = vmatprep.subr.mxu0 0.0
    %1286 = vmatpush1.msra.mxu0 0.0
    %1287 = vmatprep.subr.mxu0 0.0
    %1288 = vmatpush1.msra.mxu0 0.0
    %1289 = vmatprep.subr.mxu0 0.0
    %1290 = vmatpush1.msra.mxu0 0.0
    %1291 = vmatprep.subr.mxu0 0.0
    %1292 = vmatpush1.msra.mxu0 0.0
    %1293 = vmatprep.subr.mxu0 0.0
    %1294 = vmatpush1.msra.mxu0 0.0
    %1295 = vmatprep.subr.mxu0 0.0
    %1296 = vmatpush1.msra.mxu0 0.0
    %1297 = vmatprep.subr.mxu0 0.0
    %1298 = vmatpush1.msra.mxu0 0.0
    %1299 = vmatprep.subr.mxu0 0.0
    %1300 = vmatpush1.msra.mxu0 0.0
    %1301 = vmatprep.subr.mxu0 0.0
    %1302 = vmatpush1.msra.mxu0 0.0
    %1303 = vmatprep.subr.mxu0 0.0
    %1304 = vmatpush1.msra.mxu0 0.0
    %1305 = vmatprep.subr.mxu0 0.0
    %1306 = vmatpush1.msra.mxu0 0.0
    %1307 = vmatprep.subr.mxu0 0.0
    %1308 = vmatpush1.msra.mxu0 0.0
    %1309 = vmatprep.subr.mxu0 0.0
    %1310 = vmatpush1.msra.mxu0 0.0
    %1311 = vmatprep.subr.mxu0 0.0
    %1312 = vmatpush1.msra.mxu0 0.0
    %1313 = vmatprep.subr.mxu0 0.0
    %1314 = vmatpush1.msra.mxu0 0.0
    %1315 = vmatprep.subr.mxu0 0.0
    %1316 = vmatpush1.msra.mxu0 0.0
    %1317 = vmatprep.subr.mxu0 0.0
    %1318 = vmatpush1.msra.mxu0 0.0
    %1319 = vmatprep.subr.mxu0 0.0
    %1320 = vmatpush1.msra.mxu0 0.0
    %1321 = vmatprep.subr.mxu0 0.0
    %1322 = vmatpush1.msra.mxu0 0.0
    %1323 = vmatprep.subr.mxu0 0.0
    %1324 = vmatpush1.msra.mxu0 0.0
    %1325 = vmatprep.subr.mxu0 0.0
    %1326 = vmatpush1.msra.mxu0 0.0
    %1327 = vmatprep.subr.mxu0 0.0
    %1328 = vmatpush1.msra.mxu0 0.0
    %1329 = vmatprep.subr.mxu0 0.0
    %1330 = vmatpush1.msra.mxu0 0.0
    %1331 = vmatprep.subr.mxu0 0.0
    %1332 = vmatpush1.msra.mxu0 0.0
    %1333 = vmatprep.subr.mxu0 0.0
    %1334 = vmatpush1.msra.mxu0 0.0
    %1335 = vmatprep.subr.mxu0 0.0
    %1336 = vmatpush1.msra.mxu0 0.0
    %1337 = vmatprep.subr.mxu0 0.0
    %1338 = vmatpush1.msra.mxu0 0.0
    %1339 = vmatprep.mubr.f32.mxu0 0.0
    %1340 = vmatmul.mubr.f32.gmra.mrb[0].mxu0 %v1273
    %v1341 = vpop.f32.mrb[0].mxu0
    %v1342 = vadd.f32 %v1266, %v1341
    %v1343 = vpop.f32.mrb[0].mxu0
    %1344 = vdwg.mxu0
    %v1345 = vadd.f32 %v1342, %v287
    %v1346 = vxor.u32 %v1345, 2147483648
    %v1347 = vmul.f32 %v1346, 1.442695
    %v1348 = vpow.pop %v1347
    %v1349 = vadd.f32 %v1348, 1.0
    %v1350 = vrcp.pop %v1349
    %v1351 = vmul.f32 1.0, %v1350
    %v1352 = vtanh.pop %v1345
    %v1353 = vmul.f32 %v1351, %v1187
    %1355 = vrot.lane.b32.xlu0 %v1352, 64
    %v1356 = vpop.permute.xlu0 %1355
    %v1358 = vmul.f32 %v1351, %v1356
    %1360 = vrot.lane.b32.xlu0 %v1358, 32
    %v1361 = vpop.permute.xlu0 %1360
    %v1363 = vadd.f32 %v1353, %v1361
    %v1364 = vtanh.pop %v1363
    %1366 = vrot.lane.b32.xlu0 %v1364, 64
    %v1367 = vpop.permute.xlu0 %1366
    %v1369 = vmul.f32 %v1351, %v1367
    %1371 = vrot.lane.b32.xlu0 %v1369, 32
    %v1372 = vpop.permute.xlu0 %1371
    %v1373 = vsel %vm127, %v1372, 0
    %1375 = vmatprep.subr.mxu0 0.0
    %1376 = vmatpush1.msra.mxu0 %v122
    %1377 = vmatprep.subr.mxu0 0.0
    %1378 = vmatpush1.msra.mxu0 %v123
    %1379 = vmatprep.subr.mxu0 0.0
    %1380 = vmatpush1.msra.mxu0 %v124
    %1381 = vmatprep.subr.mxu0 0.0
    %1382 = vmatpush1.msra.mxu0 %v125
    %1383 = vmatprep.subr.mxu0 0.0
    %1384 = vmatpush1.msra.mxu0 0.0
    %1385 = vmatprep.subr.mxu0 0.0
    %1386 = vmatpush1.msra.mxu0 0.0
    %1387 = vmatprep.subr.mxu0 0.0
    %1388 = vmatpush1.msra.mxu0 0.0
    %1389 = vmatprep.subr.mxu0 0.0
    %1390 = vmatpush1.msra.mxu0 0.0
    %1391 = vmatprep.subr.mxu0 0.0
    %1392 = vmatpush1.msra.mxu0 0.0
    %1393 = vmatprep.subr.mxu0 0.0
    %1394 = vmatpush1.msra.mxu0 0.0
    %1395 = vmatprep.subr.mxu0 0.0
    %1396 = vmatpush1.msra.mxu0 0.0
    %1397 = vmatprep.subr.mxu0 0.0
    %1398 = vmatpush1.msra.mxu0 0.0
    %1399 = vmatprep.subr.mxu0 0.0
    %1400 = vmatpush1.msra.mxu0 0.0
    %1401 = vmatprep.subr.mxu0 0.0
    %1402 = vmatpush1.msra.mxu0 0.0
    %1403 = vmatprep.subr.mxu0 0.0
    %1404 = vmatpush1.msra.mxu0 0.0
    %1405 = vmatprep.subr.mxu0 0.0
    %1406 = vmatpush1.msra.mxu0 0.0
    %1407 = vmatprep.subr.mxu0 0.0
    %1408 = vmatpush1.msra.mxu0 0.0
    %1409 = vmatprep.subr.mxu0 0.0
    %1410 = vmatpush1.msra.mxu0 0.0
    %1411 = vmatprep.subr.mxu0 0.0
    %1412 = vmatpush1.msra.mxu0 0.0
    %1413 = vmatprep.subr.mxu0 0.0
    %1414 = vmatpush1.msra.mxu0 0.0
    %1415 = vmatprep.subr.mxu0 0.0
    %1416 = vmatpush1.msra.mxu0 0.0
    %1417 = vmatprep.subr.mxu0 0.0
    %1418 = vmatpush1.msra.mxu0 0.0
    %1419 = vmatprep.subr.mxu0 0.0
    %1420 = vmatpush1.msra.mxu0 0.0
    %1421 = vmatprep.subr.mxu0 0.0
    %1422 = vmatpush1.msra.mxu0 0.0
    %1423 = vmatprep.subr.mxu0 0.0
    %1424 = vmatpush1.msra.mxu0 0.0
    %1425 = vmatprep.subr.mxu0 0.0
    %1426 = vmatpush1.msra.mxu0 0.0
    %1427 = vmatprep.subr.mxu0 0.0
    %1428 = vmatpush1.msra.mxu0 0.0
    %1429 = vmatprep.subr.mxu0 0.0
    %1430 = vmatpush1.msra.mxu0 0.0
    %1431 = vmatprep.subr.mxu0 0.0
    %1432 = vmatpush1.msra.mxu0 0.0
    %1433 = vmatprep.subr.mxu0 0.0
    %1434 = vmatpush1.msra.mxu0 0.0
    %1435 = vmatprep.subr.mxu0 0.0
    %1436 = vmatpush1.msra.mxu0 0.0
    %1437 = vmatprep.subr.mxu0 0.0
    %1438 = vmatpush1.msra.mxu0 0.0
    %1439 = vmatprep.mubr.f32.mxu0 0.0
    %1440 = vmatmul.mubr.f32.gmra.mrb[0].mxu0 %v1373
    %v1441 = vpop.f32.mrb[0].mxu0
    %v1442 = vadd.f32 0.0, %v1441
    %v1443 = vpop.f32.mrb[0].mxu0
    %1444 = vdwg.mxu0
    %v1447 = vrot.slane %v117, 7
    %v1448 = vsel %vm204, %v1447, %v116
    %v1449 = vsel %vm206, %v1448, 0
    %1451 = vmatprep.subr.mxu0 0.0
    %1452 = vmatpush1.msra.mxu0 %v118
    %1453 = vmatprep.subr.mxu0 0.0
    %1454 = vmatpush1.msra.mxu0 %v119
    %1455 = vmatprep.subr.mxu0 0.0
    %1456 = vmatpush1.msra.mxu0 %v120
    %1457 = vmatprep.subr.mxu0 0.0
    %1458 = vmatpush1.msra.mxu0 %v211
    %1459 = vmatprep.subr.mxu0 0.0
    %1460 = vmatpush1.msra.mxu0 0.0
    %1461 = vmatprep.subr.mxu0 0.0
    %1462 = vmatpush1.msra.mxu0 0.0
    %1463 = vmatprep.subr.mxu0 0.0
    %1464 = vmatpush1.msra.mxu0 0.0
    %1465 = vmatprep.subr.mxu0 0.0
    %1466 = vmatpush1.msra.mxu0 0.0
    %1467 = vmatprep.subr.mxu0 0.0
    %1468 = vmatpush1.msra.mxu0 0.0
    %1469 = vmatprep.subr.mxu0 0.0
    %1470 = vmatpush1.msra.mxu0 0.0
    %1471 = vmatprep.subr.mxu0 0.0
    %1472 = vmatpush1.msra.mxu0 0.0
    %1473 = vmatprep.subr.mxu0 0.0
    %1474 = vmatpush1.msra.mxu0 0.0
    %1475 = vmatprep.subr.mxu0 0.0
    %1476 = vmatpush1.msra.mxu0 0.0
    %1477 = vmatprep.subr.mxu0 0.0
    %1478 = vmatpush1.msra.mxu0 0.0
    %1479 = vmatprep.subr.mxu0 0.0
    %1480 = vmatpush1.msra.mxu0 0.0
    %1481 = vmatprep.subr.mxu0 0.0
    %1482 = vmatpush1.msra.mxu0 0.0
    %1483 = vmatprep.subr.mxu0 0.0
    %1484 = vmatpush1.msra.mxu0 0.0
    %1485 = vmatprep.subr.mxu0 0.0
    %1486 = vmatpush1.msra.mxu0 0.0
    %1487 = vmatprep.subr.mxu0 0.0
    %1488 = vmatpush1.msra.mxu0 0.0
    %1489 = vmatprep.subr.mxu0 0.0
    %1490 = vmatpush1.msra.mxu0 0.0
    %1491 = vmatprep.subr.mxu0 0.0
    %1492 = vmatpush1.msra.mxu0 0.0
    %1493 = vmatprep.subr.mxu0 0.0
    %1494 = vmatpush1.msra.mxu0 0.0
    %1495 = vmatprep.subr.mxu0 0.0
    %1496 = vmatpush1.msra.mxu0 0.0
    %1497 = vmatprep.subr.mxu0 0.0
    %1498 = vmatpush1.msra.mxu0 0.0
    %1499 = vmatprep.subr.mxu0 0.0
    %1500 = vmatpush1.msra.mxu0 0.0
    %1501 = vmatprep.subr.mxu0 0.0
    %1502 = vmatpush1.msra.mxu0 0.0
    %1503 = vmatprep.subr.mxu0 0.0
    %1504 = vmatpush1.msra.mxu0 0.0
    %1505 = vmatprep.subr.mxu0 0.0
    %1506 = vmatpush1.msra.mxu0 0.0
    %1507 = vmatprep.subr.mxu0 0.0
    %1508 = vmatpush1.msra.mxu0 0.0
    %1509 = vmatprep.subr.mxu0 0.0
    %1510 = vmatpush1.msra.mxu0 0.0
    %1511 = vmatprep.subr.mxu0 0.0
    %1512 = vmatpush1.msra.mxu0 0.0
    %1513 = vmatprep.subr.mxu0 0.0
    %1514 = vmatpush1.msra.mxu0 0.0
    %1515 = vmatprep.mubr.f32.mxu0 0.0
    %1516 = vmatmul.mubr.f32.gmra.mrb[0].mxu0 %v1449
    %v1517 = vpop.f32.mrb[0].mxu0
    %v1518 = vadd.f32 %v1442, %v1517
    %v1519 = vpop.f32.mrb[0].mxu0
    %1520 = vdwg.mxu0
    %v1521 = vadd.f32 %v1518, %v287
    %v1522 = vxor.u32 %v1521, 2147483648
    %v1523 = vmul.f32 %v1522, 1.442695
    %v1524 = vpow.pop %v1523
    %v1525 = vadd.f32 %v1524, 1.0
    %v1526 = vrcp.pop %v1525
    %v1527 = vmul.f32 1.0, %v1526
    %v1528 = vtanh.pop %v1521
    %v1529 = vmul.f32 %v1527, %v1363
    %1531 = vrot.lane.b32.xlu0 %v1528, 64
    %v1532 = vpop.permute.xlu0 %1531
    %v1534 = vmul.f32 %v1527, %v1532
    %1536 = vrot.lane.b32.xlu0 %v1534, 32
    %v1537 = vpop.permute.xlu0 %1536
    %v1539 = vadd.f32 %v1529, %v1537
    %v1540 = vtanh.pop %v1539
    %1542 = vrot.lane.b32.xlu0 %v1540, 64
    %v1543 = vpop.permute.xlu0 %1542
    %v1545 = vmul.f32 %v1527, %v1543
    %v1546 = vld [vmem:[#allocation8] sm:$0xff]
    %v1547 = vld [vmem:[#allocation8 + $0x8] sm:$0xff]
    %v1548 = vld [vmem:[#allocation8 + $0x10] sm:$0xff]
    %v1549 = vld [vmem:[#allocation8 + $0x18] sm:$0xff]
    %v1550 = vld [vmem:[#allocation10] sm:$0xff]
    %v1551 = vld [vmem:[#allocation10 + $0x8] sm:$0xff]
    %v1552 = vld [vmem:[#allocation10 + $0x10] sm:$0xff]
    %v1553 = vld [vmem:[#allocation10 + $0x18] sm:$0xff]
    %v1554 = vld [vmem:[%s6] sm:$0x1]
    %1555 = vmatprep.subr.mxu0 0.0
    %1556 = vmatpush1.msra.mxu0 %v1550
    %1557 = vmatprep.subr.mxu0 0.0
    %1558 = vmatpush1.msra.mxu0 %v1551
    %1559 = vmatprep.subr.mxu0 0.0
    %1560 = vmatpush1.msra.mxu0 %v1552
    %1561 = vmatprep.subr.mxu0 0.0
    %1562 = vmatpush1.msra.mxu0 %v1553
    %1563 = vmatprep.subr.mxu0 0.0
    %1564 = vmatpush1.msra.mxu0 0.0
    %1565 = vmatprep.subr.mxu0 0.0
    %1566 = vmatpush1.msra.mxu0 0.0
    %1567 = vmatprep.subr.mxu0 0.0
    %1568 = vmatpush1.msra.mxu0 0.0
    %1569 = vmatprep.subr.mxu0 0.0
    %1570 = vmatpush1.msra.mxu0 0.0
    %1571 = vmatprep.subr.mxu0 0.0
    %1572 = vmatpush1.msra.mxu0 0.0
    %1573 = vmatprep.subr.mxu0 0.0
    %1574 = vmatpush1.msra.mxu0 0.0
    %1575 = vmatprep.subr.mxu0 0.0
    %1576 = vmatpush1.msra.mxu0 0.0
    %1577 = vmatprep.subr.mxu0 0.0
    %1578 = vmatpush1.msra.mxu0 0.0
    %1579 = vmatprep.subr.mxu0 0.0
    %1580 = vmatpush1.msra.mxu0 0.0
    %1581 = vmatprep.subr.mxu0 0.0
    %1582 = vmatpush1.msra.mxu0 0.0
    %1583 = vmatprep.subr.mxu0 0.0
    %1584 = vmatpush1.msra.mxu0 0.0
    %1585 = vmatprep.subr.mxu0 0.0
    %1586 = vmatpush1.msra.mxu0 0.0
    %1587 = vmatprep.subr.mxu0 0.0
    %1588 = vmatpush1.msra.mxu0 0.0
    %1589 = vmatprep.subr.mxu0 0.0
    %1590 = vmatpush1.msra.mxu0 0.0
    %1591 = vmatprep.subr.mxu0 0.0
    %1592 = vmatpush1.msra.mxu0 0.0
    %1593 = vmatprep.subr.mxu0 0.0
    %1594 = vmatpush1.msra.mxu0 0.0
    %1595 = vmatprep.subr.mxu0 0.0
    %1596 = vmatpush1.msra.mxu0 0.0
    %1597 = vmatprep.subr.mxu0 0.0
    %1598 = vmatpush1.msra.mxu0 0.0
    %1599 = vmatprep.subr.mxu0 0.0
    %1600 = vmatpush1.msra.mxu0 0.0
    %1601 = vmatprep.subr.mxu0 0.0
    %1602 = vmatpush1.msra.mxu0 0.0
    %1603 = vmatprep.subr.mxu0 0.0
    %1604 = vmatpush1.msra.mxu0 0.0
    %1605 = vmatprep.subr.mxu0 0.0
    %1606 = vmatpush1.msra.mxu0 0.0
    %1607 = vmatprep.subr.mxu0 0.0
    %1608 = vmatpush1.msra.mxu0 0.0
    %1609 = vmatprep.subr.mxu0 0.0
    %1610 = vmatpush1.msra.mxu0 0.0
    %1611 = vmatprep.subr.mxu0 0.0
    %1612 = vmatpush1.msra.mxu0 0.0
    %1613 = vmatprep.subr.mxu0 0.0
    %1614 = vmatpush1.msra.mxu0 0.0
    %1615 = vmatprep.subr.mxu0 0.0
    %1616 = vmatpush1.msra.mxu0 0.0
    %1617 = vmatprep.subr.mxu0 0.0
    %1618 = vmatpush1.msra.mxu0 0.0
    %1619 = vmatprep.mubr.f32.mxu0 0.0
    %1620 = vmatmul.mubr.f32.gmra.mrb[0].mxu0 %v129
    %v1621 = vpop.f32.mrb[0].mxu0
    %v1622 = vadd.f32 0.0, %v1621
    %v1623 = vpop.f32.mrb[0].mxu0
    %1624 = vdwg.mxu0
    %1625 = vmatprep.subr.mxu0 0.0
    %1626 = vmatpush1.msra.mxu0 %v1546
    %1627 = vmatprep.subr.mxu0 0.0
    %1628 = vmatpush1.msra.mxu0 %v1547
    %1629 = vmatprep.subr.mxu0 0.0
    %1630 = vmatpush1.msra.mxu0 %v1548
    %1631 = vmatprep.subr.mxu0 0.0
    %1632 = vmatpush1.msra.mxu0 %v1549
    %1633 = vmatprep.subr.mxu0 0.0
    %1634 = vmatpush1.msra.mxu0 0.0
    %1635 = vmatprep.subr.mxu0 0.0
    %1636 = vmatpush1.msra.mxu0 0.0
    %1637 = vmatprep.subr.mxu0 0.0
    %1638 = vmatpush1.msra.mxu0 0.0
    %1639 = vmatprep.subr.mxu0 0.0
    %1640 = vmatpush1.msra.mxu0 0.0
    %1641 = vmatprep.subr.mxu0 0.0
    %1642 = vmatpush1.msra.mxu0 0.0
    %1643 = vmatprep.subr.mxu0 0.0
    %1644 = vmatpush1.msra.mxu0 0.0
    %1645 = vmatprep.subr.mxu0 0.0
    %1646 = vmatpush1.msra.mxu0 0.0
    %1647 = vmatprep.subr.mxu0 0.0
    %1648 = vmatpush1.msra.mxu0 0.0
    %1649 = vmatprep.subr.mxu0 0.0
    %1650 = vmatpush1.msra.mxu0 0.0
    %1651 = vmatprep.subr.mxu0 0.0
    %1652 = vmatpush1.msra.mxu0 0.0
    %1653 = vmatprep.subr.mxu0 0.0
    %1654 = vmatpush1.msra.mxu0 0.0
    %1655 = vmatprep.subr.mxu0 0.0
    %1656 = vmatpush1.msra.mxu0 0.0
    %1657 = vmatprep.subr.mxu0 0.0
    %1658 = vmatpush1.msra.mxu0 0.0
    %1659 = vmatprep.subr.mxu0 0.0
    %1660 = vmatpush1.msra.mxu0 0.0
    %1661 = vmatprep.subr.mxu0 0.0
    %1662 = vmatpush1.msra.mxu0 0.0
    %1663 = vmatprep.subr.mxu0 0.0
    %1664 = vmatpush1.msra.mxu0 0.0
    %1665 = vmatprep.subr.mxu0 0.0
    %1666 = vmatpush1.msra.mxu0 0.0
    %1667 = vmatprep.subr.mxu0 0.0
    %1668 = vmatpush1.msra.mxu0 0.0
    %1669 = vmatprep.subr.mxu0 0.0
    %1670 = vmatpush1.msra.mxu0 0.0
    %1671 = vmatprep.subr.mxu0 0.0
    %1672 = vmatpush1.msra.mxu0 0.0
    %1673 = vmatprep.subr.mxu0 0.0
    %1674 = vmatpush1.msra.mxu0 0.0
    %1675 = vmatprep.subr.mxu0 0.0
    %1676 = vmatpush1.msra.mxu0 0.0
    %1677 = vmatprep.subr.mxu0 0.0
    %1678 = vmatpush1.msra.mxu0 0.0
    %1679 = vmatprep.subr.mxu0 0.0
    %1680 = vmatpush1.msra.mxu0 0.0
    %1681 = vmatprep.subr.mxu0 0.0
    %1682 = vmatpush1.msra.mxu0 0.0
    %1683 = vmatprep.subr.mxu0 0.0
    %1684 = vmatpush1.msra.mxu0 0.0
    %1685 = vmatprep.subr.mxu0 0.0
    %1686 = vmatpush1.msra.mxu0 0.0
    %1687 = vmatprep.subr.mxu0 0.0
    %1688 = vmatpush1.msra.mxu0 0.0
    %1689 = vmatprep.mubr.f32.mxu0 0.0
    %1690 = vmatmul.mubr.f32.gmra.mrb[0].mxu0 %v317
    %v1691 = vpop.f32.mrb[0].mxu0
    %v1692 = vadd.f32 %v1622, %v1691
    %v1693 = vpop.f32.mrb[0].mxu0
    %1694 = vdwg.mxu0
    %v1696 = vlaneseq
    %v1697 = vshrl.u32 %v1696, 7
    %v1698 = vsub.s32 0, %v1697
    %v1699 = vrot.slane %v1554, %v1698
    %v1701 = vadd.f32 %v1692, %v1699
    %v1702 = vxor.u32 %v1701, 2147483648
    %v1703 = vmul.f32 %v1702, 1.442695
    %v1704 = vpow.pop %v1703
    %v1705 = vadd.f32 %v1704, 1.0
    %v1706 = vrcp.pop %v1705
    %v1707 = vmul.f32 1.0, %v1706
    %v1708 = vtanh.pop %v1701
    %v1709 = vmul.f32 %v1707, 0.0
    %1711 = vrot.lane.b32.xlu0 %v1708, 64
    %v1712 = vpop.permute.xlu0 %1711
    %v1714 = vmul.f32 %v1707, %v1712
    %1716 = vrot.lane.b32.xlu0 %v1714, 32
    %v1717 = vpop.permute.xlu0 %1716
    %v1719 = vadd.f32 %v1709, %v1717
    %v1720 = vtanh.pop %v1719
    %1722 = vrot.lane.b32.xlu0 %v1720, 64
    %v1723 = vpop.permute.xlu0 %1722
    %v1725 = vmul.f32 %v1707, %v1723
    %1727 = vrot.lane.b32.xlu0 %v1725, 32
    %v1728 = vpop.permute.xlu0 %1727
    %v1729 = vsel %vm127, %v1728, 0
    %1731 = vmatprep.subr.mxu0 0.0
    %1732 = vmatpush1.msra.mxu0 %v1550
    %1733 = vmatprep.subr.mxu0 0.0
    %1734 = vmatpush1.msra.mxu0 %v1551
    %1735 = vmatprep.subr.mxu0 0.0
    %1736 = vmatpush1.msra.mxu0 %v1552
    %1737 = vmatprep.subr.mxu0 0.0
    %1738 = vmatpush1.msra.mxu0 %v1553
    %1739 = vmatprep.subr.mxu0 0.0
    %1740 = vmatpush1.msra.mxu0 0.0
    %1741 = vmatprep.subr.mxu0 0.0
    %1742 = vmatpush1.msra.mxu0 0.0
    %1743 = vmatprep.subr.mxu0 0.0
    %1744 = vmatpush1.msra.mxu0 0.0
    %1745 = vmatprep.subr.mxu0 0.0
    %1746 = vmatpush1.msra.mxu0 0.0
    %1747 = vmatprep.subr.mxu0 0.0
    %1748 = vmatpush1.msra.mxu0 0.0
    %1749 = vmatprep.subr.mxu0 0.0
    %1750 = vmatpush1.msra.mxu0 0.0
    %1751 = vmatprep.subr.mxu0 0.0
    %1752 = vmatpush1.msra.mxu0 0.0
    %1753 = vmatprep.subr.mxu0 0.0
    %1754 = vmatpush1.msra.mxu0 0.0
    %1755 = vmatprep.subr.mxu0 0.0
    %1756 = vmatpush1.msra.mxu0 0.0
    %1757 = vmatprep.subr.mxu0 0.0
    %1758 = vmatpush1.msra.mxu0 0.0
    %1759 = vmatprep.subr.mxu0 0.0
    %1760 = vmatpush1.msra.mxu0 0.0
    %1761 = vmatprep.subr.mxu0 0.0
    %1762 = vmatpush1.msra.mxu0 0.0
    %1763 = vmatprep.subr.mxu0 0.0
    %1764 = vmatpush1.msra.mxu0 0.0
    %1765 = vmatprep.subr.mxu0 0.0
    %1766 = vmatpush1.msra.mxu0 0.0
    %1767 = vmatprep.subr.mxu0 0.0
    %1768 = vmatpush1.msra.mxu0 0.0
    %1769 = vmatprep.subr.mxu0 0.0
    %1770 = vmatpush1.msra.mxu0 0.0
    %1771 = vmatprep.subr.mxu0 0.0
    %1772 = vmatpush1.msra.mxu0 0.0
    %1773 = vmatprep.subr.mxu0 0.0
    %1774 = vmatpush1.msra.mxu0 0.0
    %1775 = vmatprep.subr.mxu0 0.0
    %1776 = vmatpush1.msra.mxu0 0.0
    %1777 = vmatprep.subr.mxu0 0.0
    %1778 = vmatpush1.msra.mxu0 0.0
    %1779 = vmatprep.subr.mxu0 0.0
    %1780 = vmatpush1.msra.mxu0 0.0
    %1781 = vmatprep.subr.mxu0 0.0
    %1782 = vmatpush1.msra.mxu0 0.0
    %1783 = vmatprep.subr.mxu0 0.0
    %1784 = vmatpush1.msra.mxu0 0.0
    %1785 = vmatprep.subr.mxu0 0.0
    %1786 = vmatpush1.msra.mxu0 0.0
    %1787 = vmatprep.subr.mxu0 0.0
    %1788 = vmatpush1.msra.mxu0 0.0
    %1789 = vmatprep.subr.mxu0 0.0
    %1790 = vmatpush1.msra.mxu0 0.0
    %1791 = vmatprep.subr.mxu0 0.0
    %1792 = vmatpush1.msra.mxu0 0.0
    %1793 = vmatprep.subr.mxu0 0.0
    %1794 = vmatpush1.msra.mxu0 0.0
    %1795 = vmatprep.mubr.f32.mxu0 0.0
    %1796 = vmatmul.mubr.f32.gmra.mrb[0].mxu0 %v1729
    %v1797 = vpop.f32.mrb[0].mxu0
    %v1798 = vadd.f32 0.0, %v1797
    %v1799 = vpop.f32.mrb[0].mxu0
    %1800 = vdwg.mxu0
    %1801 = vmatprep.subr.mxu0 0.0
    %1802 = vmatpush1.msra.mxu0 %v1546
    %1803 = vmatprep.subr.mxu0 0.0
    %1804 = vmatpush1.msra.mxu0 %v1547
    %1805 = vmatprep.subr.mxu0 0.0
    %1806 = vmatpush1.msra.mxu0 %v1548
    %1807 = vmatprep.subr.mxu0 0.0
    %1808 = vmatpush1.msra.mxu0 %v1549
    %1809 = vmatprep.subr.mxu0 0.0
    %1810 = vmatpush1.msra.mxu0 0.0
    %1811 = vmatprep.subr.mxu0 0.0
    %1812 = vmatpush1.msra.mxu0 0.0
    %1813 = vmatprep.subr.mxu0 0.0
    %1814 = vmatpush1.msra.mxu0 0.0
    %1815 = vmatprep.subr.mxu0 0.0
    %1816 = vmatpush1.msra.mxu0 0.0
    %1817 = vmatprep.subr.mxu0 0.0
    %1818 = vmatpush1.msra.mxu0 0.0
    %1819 = vmatprep.subr.mxu0 0.0
    %1820 = vmatpush1.msra.mxu0 0.0
    %1821 = vmatprep.subr.mxu0 0.0
    %1822 = vmatpush1.msra.mxu0 0.0
    %1823 = vmatprep.subr.mxu0 0.0
    %1824 = vmatpush1.msra.mxu0 0.0
    %1825 = vmatprep.subr.mxu0 0.0
    %1826 = vmatpush1.msra.mxu0 0.0
    %1827 = vmatprep.subr.mxu0 0.0
    %1828 = vmatpush1.msra.mxu0 0.0
    %1829 = vmatprep.subr.mxu0 0.0
    %1830 = vmatpush1.msra.mxu0 0.0
    %1831 = vmatprep.subr.mxu0 0.0
    %1832 = vmatpush1.msra.mxu0 0.0
    %1833 = vmatprep.subr.mxu0 0.0
    %1834 = vmatpush1.msra.mxu0 0.0
    %1835 = vmatprep.subr.mxu0 0.0
    %1836 = vmatpush1.msra.mxu0 0.0
    %1837 = vmatprep.subr.mxu0 0.0
    %1838 = vmatpush1.msra.mxu0 0.0
    %1839 = vmatprep.subr.mxu0 0.0
    %1840 = vmatpush1.msra.mxu0 0.0
    %1841 = vmatprep.subr.mxu0 0.0
    %1842 = vmatpush1.msra.mxu0 0.0
    %1843 = vmatprep.subr.mxu0 0.0
    %1844 = vmatpush1.msra.mxu0 0.0
    %1845 = vmatprep.subr.mxu0 0.0
    %1846 = vmatpush1.msra.mxu0 0.0
    %1847 = vmatprep.subr.mxu0 0.0
    %1848 = vmatpush1.msra.mxu0 0.0
    %1849 = vmatprep.subr.mxu0 0.0
    %1850 = vmatpush1.msra.mxu0 0.0
    %1851 = vmatprep.subr.mxu0 0.0
    %1852 = vmatpush1.msra.mxu0 0.0
    %1853 = vmatprep.subr.mxu0 0.0
    %1854 = vmatpush1.msra.mxu0 0.0
    %1855 = vmatprep.subr.mxu0 0.0
    %1856 = vmatpush1.msra.mxu0 0.0
    %1857 = vmatprep.subr.mxu0 0.0
    %1858 = vmatpush1.msra.mxu0 0.0
    %1859 = vmatprep.subr.mxu0 0.0
    %1860 = vmatpush1.msra.mxu0 0.0
    %1861 = vmatprep.subr.mxu0 0.0
    %1862 = vmatpush1.msra.mxu0 0.0
    %1863 = vmatprep.subr.mxu0 0.0
    %1864 = vmatpush1.msra.mxu0 0.0
    %1865 = vmatprep.mubr.f32.mxu0 0.0
    %1866 = vmatmul.mubr.f32.gmra.mrb[0].mxu0 %v493
    %v1867 = vpop.f32.mrb[0].mxu0
    %v1868 = vadd.f32 %v1798, %v1867
    %v1869 = vpop.f32.mrb[0].mxu0
    %1870 = vdwg.mxu0
    %v1871 = vadd.f32 %v1868, %v1699
    %v1872 = vxor.u32 %v1871, 2147483648
    %v1873 = vmul.f32 %v1872, 1.442695
    %v1874 = vpow.pop %v1873
    %v1875 = vadd.f32 %v1874, 1.0
    %v1876 = vrcp.pop %v1875
    %v1877 = vmul.f32 1.0, %v1876
    %v1878 = vtanh.pop %v1871
    %v1879 = vmul.f32 %v1877, %v1719
    %1881 = vrot.lane.b32.xlu0 %v1878, 64
    %v1882 = vpop.permute.xlu0 %1881
    %v1884 = vmul.f32 %v1877, %v1882
    %1886 = vrot.lane.b32.xlu0 %v1884, 32
    %v1887 = vpop.permute.xlu0 %1886
    %v1889 = vadd.f32 %v1879, %v1887
    %v1890 = vtanh.pop %v1889
    %1892 = vrot.lane.b32.xlu0 %v1890, 64
    %v1893 = vpop.permute.xlu0 %1892
    %v1895 = vmul.f32 %v1877, %v1893
    %1897 = vrot.lane.b32.xlu0 %v1895, 32
    %v1898 = vpop.permute.xlu0 %1897
    %v1899 = vsel %vm127, %v1898, 0
    %1901 = vmatprep.subr.mxu0 0.0
    %1902 = vmatpush1.msra.mxu0 %v1550
    %1903 = vmatprep.subr.mxu0 0.0
    %1904 = vmatpush1.msra.mxu0 %v1551
    %1905 = vmatprep.subr.mxu0 0.0
    %1906 = vmatpush1.msra.mxu0 %v1552
    %1907 = vmatprep.subr.mxu0 0.0
    %1908 = vmatpush1.msra.mxu0 %v1553
    %1909 = vmatprep.subr.mxu0 0.0
    %1910 = vmatpush1.msra.mxu0 0.0
    %1911 = vmatprep.subr.mxu0 0.0
    %1912 = vmatpush1.msra.mxu0 0.0
    %1913 = vmatprep.subr.mxu0 0.0
    %1914 = vmatpush1.msra.mxu0 0.0
    %1915 = vmatprep.subr.mxu0 0.0
    %1916 = vmatpush1.msra.mxu0 0.0
    %1917 = vmatprep.subr.mxu0 0.0
    %1918 = vmatpush1.msra.mxu0 0.0
    %1919 = vmatprep.subr.mxu0 0.0
    %1920 = vmatpush1.msra.mxu0 0.0
    %1921 = vmatprep.subr.mxu0 0.0
    %1922 = vmatpush1.msra.mxu0 0.0
    %1923 = vmatprep.subr.mxu0 0.0
    %1924 = vmatpush1.msra.mxu0 0.0
    %1925 = vmatprep.subr.mxu0 0.0
    %1926 = vmatpush1.msra.mxu0 0.0
    %1927 = vmatprep.subr.mxu0 0.0
    %1928 = vmatpush1.msra.mxu0 0.0
    %1929 = vmatprep.subr.mxu0 0.0
    %1930 = vmatpush1.msra.mxu0 0.0
    %1931 = vmatprep.subr.mxu0 0.0
    %1932 = vmatpush1.msra.mxu0 0.0
    %1933 = vmatprep.subr.mxu0 0.0
    %1934 = vmatpush1.msra.mxu0 0.0
    %1935 = vmatprep.subr.mxu0 0.0
    %1936 = vmatpush1.msra.mxu0 0.0
    %1937 = vmatprep.subr.mxu0 0.0
    %1938 = vmatpush1.msra.mxu0 0.0
    %1939 = vmatprep.subr.mxu0 0.0
    %1940 = vmatpush1.msra.mxu0 0.0
    %1941 = vmatprep.subr.mxu0 0.0
    %1942 = vmatpush1.msra.mxu0 0.0
    %1943 = vmatprep.subr.mxu0 0.0
    %1944 = vmatpush1.msra.mxu0 0.0
    %1945 = vmatprep.subr.mxu0 0.0
    %1946 = vmatpush1.msra.mxu0 0.0
    %1947 = vmatprep.subr.mxu0 0.0
    %1948 = vmatpush1.msra.mxu0 0.0
    %1949 = vmatprep.subr.mxu0 0.0
    %1950 = vmatpush1.msra.mxu0 0.0
    %1951 = vmatprep.subr.mxu0 0.0
    %1952 = vmatpush1.msra.mxu0 0.0
    %1953 = vmatprep.subr.mxu0 0.0
    %1954 = vmatpush1.msra.mxu0 0.0
    %1955 = vmatprep.subr.mxu0 0.0
    %1956 = vmatpush1.msra.mxu0 0.0
    %1957 = vmatprep.subr.mxu0 0.0
    %1958 = vmatpush1.msra.mxu0 0.0
    %1959 = vmatprep.subr.mxu0 0.0
    %1960 = vmatpush1.msra.mxu0 0.0
    %1961 = vmatprep.subr.mxu0 0.0
    %1962 = vmatpush1.msra.mxu0 0.0
    %1963 = vmatprep.subr.mxu0 0.0
    %1964 = vmatpush1.msra.mxu0 0.0
    %1965 = vmatprep.mubr.f32.mxu0 0.0
    %1966 = vmatmul.mubr.f32.gmra.mrb[0].mxu0 %v1899
    %v1967 = vpop.f32.mrb[0].mxu0
    %v1968 = vadd.f32 0.0, %v1967
    %v1969 = vpop.f32.mrb[0].mxu0
    %1970 = vdwg.mxu0
    %1971 = vmatprep.subr.mxu0 0.0
    %1972 = vmatpush1.msra.mxu0 %v1546
    %1973 = vmatprep.subr.mxu0 0.0
    %1974 = vmatpush1.msra.mxu0 %v1547
    %1975 = vmatprep.subr.mxu0 0.0
    %1976 = vmatpush1.msra.mxu0 %v1548
    %1977 = vmatprep.subr.mxu0 0.0
    %1978 = vmatpush1.msra.mxu0 %v1549
    %1979 = vmatprep.subr.mxu0 0.0
    %1980 = vmatpush1.msra.mxu0 0.0
    %1981 = vmatprep.subr.mxu0 0.0
    %1982 = vmatpush1.msra.mxu0 0.0
    %1983 = vmatprep.subr.mxu0 0.0
    %1984 = vmatpush1.msra.mxu0 0.0
    %1985 = vmatprep.subr.mxu0 0.0
    %1986 = vmatpush1.msra.mxu0 0.0
    %1987 = vmatprep.subr.mxu0 0.0
    %1988 = vmatpush1.msra.mxu0 0.0
    %1989 = vmatprep.subr.mxu0 0.0
    %1990 = vmatpush1.msra.mxu0 0.0
    %1991 = vmatprep.subr.mxu0 0.0
    %1992 = vmatpush1.msra.mxu0 0.0
    %1993 = vmatprep.subr.mxu0 0.0
    %1994 = vmatpush1.msra.mxu0 0.0
    %1995 = vmatprep.subr.mxu0 0.0
    %1996 = vmatpush1.msra.mxu0 0.0
    %1997 = vmatprep.subr.mxu0 0.0
    %1998 = vmatpush1.msra.mxu0 0.0
    %1999 = vmatprep.subr.mxu0 0.0
    %2000 = vmatpush1.msra.mxu0 0.0
    %2001 = vmatprep.subr.mxu0 0.0
    %2002 = vmatpush1.msra.mxu0 0.0
    %2003 = vmatprep.subr.mxu0 0.0
    %2004 = vmatpush1.msra.mxu0 0.0
    %2005 = vmatprep.subr.mxu0 0.0
    %2006 = vmatpush1.msra.mxu0 0.0
    %2007 = vmatprep.subr.mxu0 0.0
    %2008 = vmatpush1.msra.mxu0 0.0
    %2009 = vmatprep.subr.mxu0 0.0
    %2010 = vmatpush1.msra.mxu0 0.0
    %2011 = vmatprep.subr.mxu0 0.0
    %2012 = vmatpush1.msra.mxu0 0.0
    %2013 = vmatprep.subr.mxu0 0.0
    %2014 = vmatpush1.msra.mxu0 0.0
    %2015 = vmatprep.subr.mxu0 0.0
    %2016 = vmatpush1.msra.mxu0 0.0
    %2017 = vmatprep.subr.mxu0 0.0
    %2018 = vmatpush1.msra.mxu0 0.0
    %2019 = vmatprep.subr.mxu0 0.0
    %2020 = vmatpush1.msra.mxu0 0.0
    %2021 = vmatprep.subr.mxu0 0.0
    %2022 = vmatpush1.msra.mxu0 0.0
    %2023 = vmatprep.subr.mxu0 0.0
    %2024 = vmatpush1.msra.mxu0 0.0
    %2025 = vmatprep.subr.mxu0 0.0
    %2026 = vmatpush1.msra.mxu0 0.0
    %2027 = vmatprep.subr.mxu0 0.0
    %2028 = vmatpush1.msra.mxu0 0.0
    %2029 = vmatprep.subr.mxu0 0.0
    %2030 = vmatpush1.msra.mxu0 0.0
    %2031 = vmatprep.subr.mxu0 0.0
    %2032 = vmatpush1.msra.mxu0 0.0
    %2033 = vmatprep.subr.mxu0 0.0
    %2034 = vmatpush1.msra.mxu0 0.0
    %2035 = vmatprep.mubr.f32.mxu0 0.0
    %2036 = vmatmul.mubr.f32.gmra.mrb[0].mxu0 %v669
    %v2037 = vpop.f32.mrb[0].mxu0
    %v2038 = vadd.f32 %v1968, %v2037
    %v2039 = vpop.f32.mrb[0].mxu0
    %2040 = vdwg.mxu0
    %v2041 = vadd.f32 %v2038, %v1699
    %v2042 = vxor.u32 %v2041, 2147483648
    %v2043 = vmul.f32 %v2042, 1.442695
    %v2044 = vpow.pop %v2043
    %v2045 = vadd.f32 %v2044, 1.0
    %v2046 = vrcp.pop %v2045
    %v2047 = vmul.f32 1.0, %v2046
    %v2048 = vtanh.pop %v2041
    %v2049 = vmul.f32 %v2047, %v1889
    %2051 = vrot.lane.b32.xlu0 %v2048, 64
    %v2052 = vpop.permute.xlu0 %2051
    %v2054 = vmul.f32 %v2047, %v2052
    %2056 = vrot.lane.b32.xlu0 %v2054, 32
    %v2057 = vpop.permute.xlu0 %2056
    %v2059 = vadd.f32 %v2049, %v2057
    %v2060 = vtanh.pop %v2059
    %2062 = vrot.lane.b32.xlu0 %v2060, 64
    %v2063 = vpop.permute.xlu0 %2062
    %v2065 = vmul.f32 %v2047, %v2063
    %2067 = vrot.lane.b32.xlu0 %v2065, 32
    %v2068 = vpop.permute.xlu0 %2067
    %v2069 = vsel %vm127, %v2068, 0
    %2071 = vmatprep.subr.mxu0 0.0
    %2072 = vmatpush1.msra.mxu0 %v1550
    %2073 = vmatprep.subr.mxu0 0.0
    %2074 = vmatpush1.msra.mxu0 %v1551
    %2075 = vmatprep.subr.mxu0 0.0
    %2076 = vmatpush1.msra.mxu0 %v1552
    %2077 = vmatprep.subr.mxu0 0.0
    %2078 = vmatpush1.msra.mxu0 %v1553
    %2079 = vmatprep.subr.mxu0 0.0
    %2080 = vmatpush1.msra.mxu0 0.0
    %2081 = vmatprep.subr.mxu0 0.0
    %2082 = vmatpush1.msra.mxu0 0.0
    %2083 = vmatprep.subr.mxu0 0.0
    %2084 = vmatpush1.msra.mxu0 0.0
    %2085 = vmatprep.subr.mxu0 0.0
    %2086 = vmatpush1.msra.mxu0 0.0
    %2087 = vmatprep.subr.mxu0 0.0
    %2088 = vmatpush1.msra.mxu0 0.0
    %2089 = vmatprep.subr.mxu0 0.0
    %2090 = vmatpush1.msra.mxu0 0.0
    %2091 = vmatprep.subr.mxu0 0.0
    %2092 = vmatpush1.msra.mxu0 0.0
    %2093 = vmatprep.subr.mxu0 0.0
    %2094 = vmatpush1.msra.mxu0 0.0
    %2095 = vmatprep.subr.mxu0 0.0
    %2096 = vmatpush1.msra.mxu0 0.0
    %2097 = vmatprep.subr.mxu0 0.0
    %2098 = vmatpush1.msra.mxu0 0.0
    %2099 = vmatprep.subr.mxu0 0.0
    %2100 = vmatpush1.msra.mxu0 0.0
    %2101 = vmatprep.subr.mxu0 0.0
    %2102 = vmatpush1.msra.mxu0 0.0
    %2103 = vmatprep.subr.mxu0 0.0
    %2104 = vmatpush1.msra.mxu0 0.0
    %2105 = vmatprep.subr.mxu0 0.0
    %2106 = vmatpush1.msra.mxu0 0.0
    %2107 = vmatprep.subr.mxu0 0.0
    %2108 = vmatpush1.msra.mxu0 0.0
    %2109 = vmatprep.subr.mxu0 0.0
    %2110 = vmatpush1.msra.mxu0 0.0
    %2111 = vmatprep.subr.mxu0 0.0
    %2112 = vmatpush1.msra.mxu0 0.0
    %2113 = vmatprep.subr.mxu0 0.0
    %2114 = vmatpush1.msra.mxu0 0.0
    %2115 = vmatprep.subr.mxu0 0.0
    %2116 = vmatpush1.msra.mxu0 0.0
    %2117 = vmatprep.subr.mxu0 0.0
    %2118 = vmatpush1.msra.mxu0 0.0
    %2119 = vmatprep.subr.mxu0 0.0
    %2120 = vmatpush1.msra.mxu0 0.0
    %2121 = vmatprep.subr.mxu0 0.0
    %2122 = vmatpush1.msra.mxu0 0.0
    %2123 = vmatprep.subr.mxu0 0.0
    %2124 = vmatpush1.msra.mxu0 0.0
    %2125 = vmatprep.subr.mxu0 0.0
    %2126 = vmatpush1.msra.mxu0 0.0
    %2127 = vmatprep.subr.mxu0 0.0
    %2128 = vmatpush1.msra.mxu0 0.0
    %2129 = vmatprep.subr.mxu0 0.0
    %2130 = vmatpush1.msra.mxu0 0.0
    %2131 = vmatprep.subr.mxu0 0.0
    %2132 = vmatpush1.msra.mxu0 0.0
    %2133 = vmatprep.subr.mxu0 0.0
    %2134 = vmatpush1.msra.mxu0 0.0
    %2135 = vmatprep.mubr.f32.mxu0 0.0
    %2136 = vmatmul.mubr.f32.gmra.mrb[0].mxu0 %v2069
    %v2137 = vpop.f32.mrb[0].mxu0
    %v2138 = vadd.f32 0.0, %v2137
    %v2139 = vpop.f32.mrb[0].mxu0
    %2140 = vdwg.mxu0
    %2141 = vmatprep.subr.mxu0 0.0
    %2142 = vmatpush1.msra.mxu0 %v1546
    %2143 = vmatprep.subr.mxu0 0.0
    %2144 = vmatpush1.msra.mxu0 %v1547
    %2145 = vmatprep.subr.mxu0 0.0
    %2146 = vmatpush1.msra.mxu0 %v1548
    %2147 = vmatprep.subr.mxu0 0.0
    %2148 = vmatpush1.msra.mxu0 %v1549
    %2149 = vmatprep.subr.mxu0 0.0
    %2150 = vmatpush1.msra.mxu0 0.0
    %2151 = vmatprep.subr.mxu0 0.0
    %2152 = vmatpush1.msra.mxu0 0.0
    %2153 = vmatprep.subr.mxu0 0.0
    %2154 = vmatpush1.msra.mxu0 0.0
    %2155 = vmatprep.subr.mxu0 0.0
    %2156 = vmatpush1.msra.mxu0 0.0
    %2157 = vmatprep.subr.mxu0 0.0
    %2158 = vmatpush1.msra.mxu0 0.0
    %2159 = vmatprep.subr.mxu0 0.0
    %2160 = vmatpush1.msra.mxu0 0.0
    %2161 = vmatprep.subr.mxu0 0.0
    %2162 = vmatpush1.msra.mxu0 0.0
    %2163 = vmatprep.subr.mxu0 0.0
    %2164 = vmatpush1.msra.mxu0 0.0
    %2165 = vmatprep.subr.mxu0 0.0
    %2166 = vmatpush1.msra.mxu0 0.0
    %2167 = vmatprep.subr.mxu0 0.0
    %2168 = vmatpush1.msra.mxu0 0.0
    %2169 = vmatprep.subr.mxu0 0.0
    %2170 = vmatpush1.msra.mxu0 0.0
    %2171 = vmatprep.subr.mxu0 0.0
    %2172 = vmatpush1.msra.mxu0 0.0
    %2173 = vmatprep.subr.mxu0 0.0
    %2174 = vmatpush1.msra.mxu0 0.0
    %2175 = vmatprep.subr.mxu0 0.0
    %2176 = vmatpush1.msra.mxu0 0.0
    %2177 = vmatprep.subr.mxu0 0.0
    %2178 = vmatpush1.msra.mxu0 0.0
    %2179 = vmatprep.subr.mxu0 0.0
    %2180 = vmatpush1.msra.mxu0 0.0
    %2181 = vmatprep.subr.mxu0 0.0
    %2182 = vmatpush1.msra.mxu0 0.0
    %2183 = vmatprep.subr.mxu0 0.0
    %2184 = vmatpush1.msra.mxu0 0.0
    %2185 = vmatprep.subr.mxu0 0.0
    %2186 = vmatpush1.msra.mxu0 0.0
    %2187 = vmatprep.subr.mxu0 0.0
    %2188 = vmatpush1.msra.mxu0 0.0
    %2189 = vmatprep.subr.mxu0 0.0
    %2190 = vmatpush1.msra.mxu0 0.0
    %2191 = vmatprep.subr.mxu0 0.0
    %2192 = vmatpush1.msra.mxu0 0.0
    %2193 = vmatprep.subr.mxu0 0.0
    %2194 = vmatpush1.msra.mxu0 0.0
    %2195 = vmatprep.subr.mxu0 0.0
    %2196 = vmatpush1.msra.mxu0 0.0
    %2197 = vmatprep.subr.mxu0 0.0
    %2198 = vmatpush1.msra.mxu0 0.0
    %2199 = vmatprep.subr.mxu0 0.0
    %2200 = vmatpush1.msra.mxu0 0.0
    %2201 = vmatprep.subr.mxu0 0.0
    %2202 = vmatpush1.msra.mxu0 0.0
    %2203 = vmatprep.subr.mxu0 0.0
    %2204 = vmatpush1.msra.mxu0 0.0
    %2205 = vmatprep.mubr.f32.mxu0 0.0
    %2206 = vmatmul.mubr.f32.gmra.mrb[0].mxu0 %v845
    %v2207 = vpop.f32.mrb[0].mxu0
    %v2208 = vadd.f32 %v2138, %v2207
    %v2209 = vpop.f32.mrb[0].mxu0
    %2210 = vdwg.mxu0
    %v2211 = vadd.f32 %v2208, %v1699
    %v2212 = vxor.u32 %v2211, 2147483648
    %v2213 = vmul.f32 %v2212, 1.442695
    %v2214 = vpow.pop %v2213
    %v2215 = vadd.f32 %v2214, 1.0
    %v2216 = vrcp.pop %v2215
    %v2217 = vmul.f32 1.0, %v2216
    %v2218 = vtanh.pop %v2211
    %v2219 = vmul.f32 %v2217, %v2059
    %2221 = vrot.lane.b32.xlu0 %v2218, 64
    %v2222 = vpop.permute.xlu0 %2221
    %v2224 = vmul.f32 %v2217, %v2222
    %2226 = vrot.lane.b32.xlu0 %v2224, 32
    %v2227 = vpop.permute.xlu0 %2226
    %v2229 = vadd.f32 %v2219, %v2227
    %v2230 = vtanh.pop %v2229
    %2232 = vrot.lane.b32.xlu0 %v2230, 64
    %v2233 = vpop.permute.xlu0 %2232
    %v2235 = vmul.f32 %v2217, %v2233
    %2237 = vrot.lane.b32.xlu0 %v2235, 32
    %v2238 = vpop.permute.xlu0 %2237
    %v2239 = vsel %vm127, %v2238, 0
    %2241 = vmatprep.subr.mxu0 0.0
    %2242 = vmatpush1.msra.mxu0 %v1550
    %2243 = vmatprep.subr.mxu0 0.0
    %2244 = vmatpush1.msra.mxu0 %v1551
    %2245 = vmatprep.subr.mxu0 0.0
    %2246 = vmatpush1.msra.mxu0 %v1552
    %2247 = vmatprep.subr.mxu0 0.0
    %2248 = vmatpush1.msra.mxu0 %v1553
    %2249 = vmatprep.subr.mxu0 0.0
    %2250 = vmatpush1.msra.mxu0 0.0
    %2251 = vmatprep.subr.mxu0 0.0
    %2252 = vmatpush1.msra.mxu0 0.0
    %2253 = vmatprep.subr.mxu0 0.0
    %2254 = vmatpush1.msra.mxu0 0.0
    %2255 = vmatprep.subr.mxu0 0.0
    %2256 = vmatpush1.msra.mxu0 0.0
    %2257 = vmatprep.subr.mxu0 0.0
    %2258 = vmatpush1.msra.mxu0 0.0
    %2259 = vmatprep.subr.mxu0 0.0
    %2260 = vmatpush1.msra.mxu0 0.0
    %2261 = vmatprep.subr.mxu0 0.0
    %2262 = vmatpush1.msra.mxu0 0.0
    %2263 = vmatprep.subr.mxu0 0.0
    %2264 = vmatpush1.msra.mxu0 0.0
    %2265 = vmatprep.subr.mxu0 0.0
    %2266 = vmatpush1.msra.mxu0 0.0
    %2267 = vmatprep.subr.mxu0 0.0
    %2268 = vmatpush1.msra.mxu0 0.0
    %2269 = vmatprep.subr.mxu0 0.0
    %2270 = vmatpush1.msra.mxu0 0.0
    %2271 = vmatprep.subr.mxu0 0.0
    %2272 = vmatpush1.msra.mxu0 0.0
    %2273 = vmatprep.subr.mxu0 0.0
    %2274 = vmatpush1.msra.mxu0 0.0
    %2275 = vmatprep.subr.mxu0 0.0
    %2276 = vmatpush1.msra.mxu0 0.0
    %2277 = vmatprep.subr.mxu0 0.0
    %2278 = vmatpush1.msra.mxu0 0.0
    %2279 = vmatprep.subr.mxu0 0.0
    %2280 = vmatpush1.msra.mxu0 0.0
    %2281 = vmatprep.subr.mxu0 0.0
    %2282 = vmatpush1.msra.mxu0 0.0
    %2283 = vmatprep.subr.mxu0 0.0
    %2284 = vmatpush1.msra.mxu0 0.0
    %2285 = vmatprep.subr.mxu0 0.0
    %2286 = vmatpush1.msra.mxu0 0.0
    %2287 = vmatprep.subr.mxu0 0.0
    %2288 = vmatpush1.msra.mxu0 0.0
    %2289 = vmatprep.subr.mxu0 0.0
    %2290 = vmatpush1.msra.mxu0 0.0
    %2291 = vmatprep.subr.mxu0 0.0
    %2292 = vmatpush1.msra.mxu0 0.0
    %2293 = vmatprep.subr.mxu0 0.0
    %2294 = vmatpush1.msra.mxu0 0.0
    %2295 = vmatprep.subr.mxu0 0.0
    %2296 = vmatpush1.msra.mxu0 0.0
    %2297 = vmatprep.subr.mxu0 0.0
    %2298 = vmatpush1.msra.mxu0 0.0
    %2299 = vmatprep.subr.mxu0 0.0
    %2300 = vmatpush1.msra.mxu0 0.0
    %2301 = vmatprep.subr.mxu0 0.0
    %2302 = vmatpush1.msra.mxu0 0.0
    %2303 = vmatprep.subr.mxu0 0.0
    %2304 = vmatpush1.msra.mxu0 0.0
    %2305 = vmatprep.mubr.f32.mxu0 0.0
    %2306 = vmatmul.mubr.f32.gmra.mrb[0].mxu0 %v2239
    %v2307 = vpop.f32.mrb[0].mxu0
    %v2308 = vadd.f32 0.0, %v2307
    %v2309 = vpop.f32.mrb[0].mxu0
    %2310 = vdwg.mxu0
    %2311 = vmatprep.subr.mxu0 0.0
    %2312 = vmatpush1.msra.mxu0 %v1546
    %2313 = vmatprep.subr.mxu0 0.0
    %2314 = vmatpush1.msra.mxu0 %v1547
    %2315 = vmatprep.subr.mxu0 0.0
    %2316 = vmatpush1.msra.mxu0 %v1548
    %2317 = vmatprep.subr.mxu0 0.0
    %2318 = vmatpush1.msra.mxu0 %v1549
    %2319 = vmatprep.subr.mxu0 0.0
    %2320 = vmatpush1.msra.mxu0 0.0
    %2321 = vmatprep.subr.mxu0 0.0
    %2322 = vmatpush1.msra.mxu0 0.0
    %2323 = vmatprep.subr.mxu0 0.0
    %2324 = vmatpush1.msra.mxu0 0.0
    %2325 = vmatprep.subr.mxu0 0.0
    %2326 = vmatpush1.msra.mxu0 0.0
    %2327 = vmatprep.subr.mxu0 0.0
    %2328 = vmatpush1.msra.mxu0 0.0
    %2329 = vmatprep.subr.mxu0 0.0
    %2330 = vmatpush1.msra.mxu0 0.0
    %2331 = vmatprep.subr.mxu0 0.0
    %2332 = vmatpush1.msra.mxu0 0.0
    %2333 = vmatprep.subr.mxu0 0.0
    %2334 = vmatpush1.msra.mxu0 0.0
    %2335 = vmatprep.subr.mxu0 0.0
    %2336 = vmatpush1.msra.mxu0 0.0
    %2337 = vmatprep.subr.mxu0 0.0
    %2338 = vmatpush1.msra.mxu0 0.0
    %2339 = vmatprep.subr.mxu0 0.0
    %2340 = vmatpush1.msra.mxu0 0.0
    %2341 = vmatprep.subr.mxu0 0.0
    %2342 = vmatpush1.msra.mxu0 0.0
    %2343 = vmatprep.subr.mxu0 0.0
    %2344 = vmatpush1.msra.mxu0 0.0
    %2345 = vmatprep.subr.mxu0 0.0
    %2346 = vmatpush1.msra.mxu0 0.0
    %2347 = vmatprep.subr.mxu0 0.0
    %2348 = vmatpush1.msra.mxu0 0.0
    %2349 = vmatprep.subr.mxu0 0.0
    %2350 = vmatpush1.msra.mxu0 0.0
    %2351 = vmatprep.subr.mxu0 0.0
    %2352 = vmatpush1.msra.mxu0 0.0
    %2353 = vmatprep.subr.mxu0 0.0
    %2354 = vmatpush1.msra.mxu0 0.0
    %2355 = vmatprep.subr.mxu0 0.0
    %2356 = vmatpush1.msra.mxu0 0.0
    %2357 = vmatprep.subr.mxu0 0.0
    %2358 = vmatpush1.msra.mxu0 0.0
    %2359 = vmatprep.subr.mxu0 0.0
    %2360 = vmatpush1.msra.mxu0 0.0
    %2361 = vmatprep.subr.mxu0 0.0
    %2362 = vmatpush1.msra.mxu0 0.0
    %2363 = vmatprep.subr.mxu0 0.0
    %2364 = vmatpush1.msra.mxu0 0.0
    %2365 = vmatprep.subr.mxu0 0.0
    %2366 = vmatpush1.msra.mxu0 0.0
    %2367 = vmatprep.subr.mxu0 0.0
    %2368 = vmatpush1.msra.mxu0 0.0
    %2369 = vmatprep.subr.mxu0 0.0
    %2370 = vmatpush1.msra.mxu0 0.0
    %2371 = vmatprep.subr.mxu0 0.0
    %2372 = vmatpush1.msra.mxu0 0.0
    %2373 = vmatprep.subr.mxu0 0.0
    %2374 = vmatpush1.msra.mxu0 0.0
    %2375 = vmatprep.mubr.f32.mxu0 0.0
    %2376 = vmatmul.mubr.f32.gmra.mrb[0].mxu0 %v1021
    %v2377 = vpop.f32.mrb[0].mxu0
    %v2378 = vadd.f32 %v2308, %v2377
    %v2379 = vpop.f32.mrb[0].mxu0
    %2380 = vdwg.mxu0
    %v2381 = vadd.f32 %v2378, %v1699
    %v2382 = vxor.u32 %v2381, 2147483648
    %v2383 = vmul.f32 %v2382, 1.442695
    %v2384 = vpow.pop %v2383
    %v2385 = vadd.f32 %v2384, 1.0
    %v2386 = vrcp.pop %v2385
    %v2387 = vmul.f32 1.0, %v2386
    %v2388 = vtanh.pop %v2381
    %v2389 = vmul.f32 %v2387, %v2229
    %2391 = vrot.lane.b32.xlu0 %v2388, 64
    %v2392 = vpop.permute.xlu0 %2391
    %v2394 = vmul.f32 %v2387, %v2392
    %2396 = vrot.lane.b32.xlu0 %v2394, 32
    %v2397 = vpop.permute.xlu0 %2396
    %v2399 = vadd.f32 %v2389, %v2397
    %v2400 = vtanh.pop %v2399
    %2402 = vrot.lane.b32.xlu0 %v2400, 64
    %v2403 = vpop.permute.xlu0 %2402
    %v2405 = vmul.f32 %v2387, %v2403
    %2407 = vrot.lane.b32.xlu0 %v2405, 32
    %v2408 = vpop.permute.xlu0 %2407
    %v2409 = vsel %vm127, %v2408, 0
    %2411 = vmatprep.subr.mxu0 0.0
    %2412 = vmatpush1.msra.mxu0 %v1550
    %2413 = vmatprep.subr.mxu0 0.0
    %2414 = vmatpush1.msra.mxu0 %v1551
    %2415 = vmatprep.subr.mxu0 0.0
    %2416 = vmatpush1.msra.mxu0 %v1552
    %2417 = vmatprep.subr.mxu0 0.0
    %2418 = vmatpush1.msra.mxu0 %v1553
    %2419 = vmatprep.subr.mxu0 0.0
    %2420 = vmatpush1.msra.mxu0 0.0
    %2421 = vmatprep.subr.mxu0 0.0
    %2422 = vmatpush1.msra.mxu0 0.0
    %2423 = vmatprep.subr.mxu0 0.0
    %2424 = vmatpush1.msra.mxu0 0.0
    %2425 = vmatprep.subr.mxu0 0.0
    %2426 = vmatpush1.msra.mxu0 0.0
    %2427 = vmatprep.subr.mxu0 0.0
    %2428 = vmatpush1.msra.mxu0 0.0
    %2429 = vmatprep.subr.mxu0 0.0
    %2430 = vmatpush1.msra.mxu0 0.0
    %2431 = vmatprep.subr.mxu0 0.0
    %2432 = vmatpush1.msra.mxu0 0.0
    %2433 = vmatprep.subr.mxu0 0.0
    %2434 = vmatpush1.msra.mxu0 0.0
    %2435 = vmatprep.subr.mxu0 0.0
    %2436 = vmatpush1.msra.mxu0 0.0
    %2437 = vmatprep.subr.mxu0 0.0
    %2438 = vmatpush1.msra.mxu0 0.0
    %2439 = vmatprep.subr.mxu0 0.0
    %2440 = vmatpush1.msra.mxu0 0.0
    %2441 = vmatprep.subr.mxu0 0.0
    %2442 = vmatpush1.msra.mxu0 0.0
    %2443 = vmatprep.subr.mxu0 0.0
    %2444 = vmatpush1.msra.mxu0 0.0
    %2445 = vmatprep.subr.mxu0 0.0
    %2446 = vmatpush1.msra.mxu0 0.0
    %2447 = vmatprep.subr.mxu0 0.0
    %2448 = vmatpush1.msra.mxu0 0.0
    %2449 = vmatprep.subr.mxu0 0.0
    %2450 = vmatpush1.msra.mxu0 0.0
    %2451 = vmatprep.subr.mxu0 0.0
    %2452 = vmatpush1.msra.mxu0 0.0
    %2453 = vmatprep.subr.mxu0 0.0
    %2454 = vmatpush1.msra.mxu0 0.0
    %2455 = vmatprep.subr.mxu0 0.0
    %2456 = vmatpush1.msra.mxu0 0.0
    %2457 = vmatprep.subr.mxu0 0.0
    %2458 = vmatpush1.msra.mxu0 0.0
    %2459 = vmatprep.subr.mxu0 0.0
    %2460 = vmatpush1.msra.mxu0 0.0
    %2461 = vmatprep.subr.mxu0 0.0
    %2462 = vmatpush1.msra.mxu0 0.0
    %2463 = vmatprep.subr.mxu0 0.0
    %2464 = vmatpush1.msra.mxu0 0.0
    %2465 = vmatprep.subr.mxu0 0.0
    %2466 = vmatpush1.msra.mxu0 0.0
    %2467 = vmatprep.subr.mxu0 0.0
    %2468 = vmatpush1.msra.mxu0 0.0
    %2469 = vmatprep.subr.mxu0 0.0
    %2470 = vmatpush1.msra.mxu0 0.0
    %2471 = vmatprep.subr.mxu0 0.0
    %2472 = vmatpush1.msra.mxu0 0.0
    %2473 = vmatprep.subr.mxu0 0.0
    %2474 = vmatpush1.msra.mxu0 0.0
    %2475 = vmatprep.mubr.f32.mxu0 0.0
    %2476 = vmatmul.mubr.f32.gmra.mrb[0].mxu0 %v2409
    %v2477 = vpop.f32.mrb[0].mxu0
    %v2478 = vadd.f32 0.0, %v2477
    %v2479 = vpop.f32.mrb[0].mxu0
    %2480 = vdwg.mxu0
    %2481 = vmatprep.subr.mxu0 0.0
    %2482 = vmatpush1.msra.mxu0 %v1546
    %2483 = vmatprep.subr.mxu0 0.0
    %2484 = vmatpush1.msra.mxu0 %v1547
    %2485 = vmatprep.subr.mxu0 0.0
    %2486 = vmatpush1.msra.mxu0 %v1548
    %2487 = vmatprep.subr.mxu0 0.0
    %2488 = vmatpush1.msra.mxu0 %v1549
    %2489 = vmatprep.subr.mxu0 0.0
    %2490 = vmatpush1.msra.mxu0 0.0
    %2491 = vmatprep.subr.mxu0 0.0
    %2492 = vmatpush1.msra.mxu0 0.0
    %2493 = vmatprep.subr.mxu0 0.0
    %2494 = vmatpush1.msra.mxu0 0.0
    %2495 = vmatprep.subr.mxu0 0.0
    %2496 = vmatpush1.msra.mxu0 0.0
    %2497 = vmatprep.subr.mxu0 0.0
    %2498 = vmatpush1.msra.mxu0 0.0
    %2499 = vmatprep.subr.mxu0 0.0
    %2500 = vmatpush1.msra.mxu0 0.0
    %2501 = vmatprep.subr.mxu0 0.0
    %2502 = vmatpush1.msra.mxu0 0.0
    %2503 = vmatprep.subr.mxu0 0.0
    %2504 = vmatpush1.msra.mxu0 0.0
    %2505 = vmatprep.subr.mxu0 0.0
    %2506 = vmatpush1.msra.mxu0 0.0
    %2507 = vmatprep.subr.mxu0 0.0
    %2508 = vmatpush1.msra.mxu0 0.0
    %2509 = vmatprep.subr.mxu0 0.0
    %2510 = vmatpush1.msra.mxu0 0.0
    %2511 = vmatprep.subr.mxu0 0.0
    %2512 = vmatpush1.msra.mxu0 0.0
    %2513 = vmatprep.subr.mxu0 0.0
    %2514 = vmatpush1.msra.mxu0 0.0
    %2515 = vmatprep.subr.mxu0 0.0
    %2516 = vmatpush1.msra.mxu0 0.0
    %2517 = vmatprep.subr.mxu0 0.0
    %2518 = vmatpush1.msra.mxu0 0.0
    %2519 = vmatprep.subr.mxu0 0.0
    %2520 = vmatpush1.msra.mxu0 0.0
    %2521 = vmatprep.subr.mxu0 0.0
    %2522 = vmatpush1.msra.mxu0 0.0
    %2523 = vmatprep.subr.mxu0 0.0
    %2524 = vmatpush1.msra.mxu0 0.0
    %2525 = vmatprep.subr.mxu0 0.0
    %2526 = vmatpush1.msra.mxu0 0.0
    %2527 = vmatprep.subr.mxu0 0.0
    %2528 = vmatpush1.msra.mxu0 0.0
    %2529 = vmatprep.subr.mxu0 0.0
    %2530 = vmatpush1.msra.mxu0 0.0
    %2531 = vmatprep.subr.mxu0 0.0
    %2532 = vmatpush1.msra.mxu0 0.0
    %2533 = vmatprep.subr.mxu0 0.0
    %2534 = vmatpush1.msra.mxu0 0.0
    %2535 = vmatprep.subr.mxu0 0.0
    %2536 = vmatpush1.msra.mxu0 0.0
    %2537 = vmatprep.subr.mxu0 0.0
    %2538 = vmatpush1.msra.mxu0 0.0
    %2539 = vmatprep.subr.mxu0 0.0
    %2540 = vmatpush1.msra.mxu0 0.0
    %2541 = vmatprep.subr.mxu0 0.0
    %2542 = vmatpush1.msra.mxu0 0.0
    %2543 = vmatprep.subr.mxu0 0.0
    %2544 = vmatpush1.msra.mxu0 0.0
    %2545 = vmatprep.mubr.f32.mxu0 0.0
    %2546 = vmatmul.mubr.f32.gmra.mrb[0].mxu0 %v1197
    %v2547 = vpop.f32.mrb[0].mxu0
    %v2548 = vadd.f32 %v2478, %v2547
    %v2549 = vpop.f32.mrb[0].mxu0
    %2550 = vdwg.mxu0
    %v2551 = vadd.f32 %v2548, %v1699
    %v2552 = vxor.u32 %v2551, 2147483648
    %v2553 = vmul.f32 %v2552, 1.442695
    %v2554 = vpow.pop %v2553
    %v2555 = vadd.f32 %v2554, 1.0
    %v2556 = vrcp.pop %v2555
    %v2557 = vmul.f32 1.0, %v2556
    %v2558 = vtanh.pop %v2551
    %v2559 = vmul.f32 %v2557, %v2399
    %2561 = vrot.lane.b32.xlu0 %v2558, 64
    %v2562 = vpop.permute.xlu0 %2561
    %v2564 = vmul.f32 %v2557, %v2562
    %2566 = vrot.lane.b32.xlu0 %v2564, 32
    %v2567 = vpop.permute.xlu0 %2566
    %v2569 = vadd.f32 %v2559, %v2567
    %v2570 = vtanh.pop %v2569
    %2572 = vrot.lane.b32.xlu0 %v2570, 64
    %v2573 = vpop.permute.xlu0 %2572
    %v2575 = vmul.f32 %v2557, %v2573
    %2577 = vrot.lane.b32.xlu0 %v2575, 32
    %v2578 = vpop.permute.xlu0 %2577
    %v2579 = vsel %vm127, %v2578, 0
    %2581 = vmatprep.subr.mxu0 0.0
    %2582 = vmatpush1.msra.mxu0 %v1550
    %2583 = vmatprep.subr.mxu0 0.0
    %2584 = vmatpush1.msra.mxu0 %v1551
    %2585 = vmatprep.subr.mxu0 0.0
    %2586 = vmatpush1.msra.mxu0 %v1552
    %2587 = vmatprep.subr.mxu0 0.0
    %2588 = vmatpush1.msra.mxu0 %v1553
    %2589 = vmatprep.subr.mxu0 0.0
    %2590 = vmatpush1.msra.mxu0 0.0
    %2591 = vmatprep.subr.mxu0 0.0
    %2592 = vmatpush1.msra.mxu0 0.0
    %2593 = vmatprep.subr.mxu0 0.0
    %2594 = vmatpush1.msra.mxu0 0.0
    %2595 = vmatprep.subr.mxu0 0.0
    %2596 = vmatpush1.msra.mxu0 0.0
    %2597 = vmatprep.subr.mxu0 0.0
    %2598 = vmatpush1.msra.mxu0 0.0
    %2599 = vmatprep.subr.mxu0 0.0
    %2600 = vmatpush1.msra.mxu0 0.0
    %2601 = vmatprep.subr.mxu0 0.0
    %2602 = vmatpush1.msra.mxu0 0.0
    %2603 = vmatprep.subr.mxu0 0.0
    %2604 = vmatpush1.msra.mxu0 0.0
    %2605 = vmatprep.subr.mxu0 0.0
    %2606 = vmatpush1.msra.mxu0 0.0
    %2607 = vmatprep.subr.mxu0 0.0
    %2608 = vmatpush1.msra.mxu0 0.0
    %2609 = vmatprep.subr.mxu0 0.0
    %2610 = vmatpush1.msra.mxu0 0.0
    %2611 = vmatprep.subr.mxu0 0.0
    %2612 = vmatpush1.msra.mxu0 0.0
    %2613 = vmatprep.subr.mxu0 0.0
    %2614 = vmatpush1.msra.mxu0 0.0
    %2615 = vmatprep.subr.mxu0 0.0
    %2616 = vmatpush1.msra.mxu0 0.0
    %2617 = vmatprep.subr.mxu0 0.0
    %2618 = vmatpush1.msra.mxu0 0.0
    %2619 = vmatprep.subr.mxu0 0.0
    %2620 = vmatpush1.msra.mxu0 0.0
    %2621 = vmatprep.subr.mxu0 0.0
    %2622 = vmatpush1.msra.mxu0 0.0
    %2623 = vmatprep.subr.mxu0 0.0
    %2624 = vmatpush1.msra.mxu0 0.0
    %2625 = vmatprep.subr.mxu0 0.0
    %2626 = vmatpush1.msra.mxu0 0.0
    %2627 = vmatprep.subr.mxu0 0.0
    %2628 = vmatpush1.msra.mxu0 0.0
    %2629 = vmatprep.subr.mxu0 0.0
    %2630 = vmatpush1.msra.mxu0 0.0
    %2631 = vmatprep.subr.mxu0 0.0
    %2632 = vmatpush1.msra.mxu0 0.0
    %2633 = vmatprep.subr.mxu0 0.0
    %2634 = vmatpush1.msra.mxu0 0.0
    %2635 = vmatprep.subr.mxu0 0.0
    %2636 = vmatpush1.msra.mxu0 0.0
    %2637 = vmatprep.subr.mxu0 0.0
    %2638 = vmatpush1.msra.mxu0 0.0
    %2639 = vmatprep.subr.mxu0 0.0
    %2640 = vmatpush1.msra.mxu0 0.0
    %2641 = vmatprep.subr.mxu0 0.0
    %2642 = vmatpush1.msra.mxu0 0.0
    %2643 = vmatprep.subr.mxu0 0.0
    %2644 = vmatpush1.msra.mxu0 0.0
    %2645 = vmatprep.mubr.f32.mxu0 0.0
    %2646 = vmatmul.mubr.f32.gmra.mrb[0].mxu0 %v2579
    %v2647 = vpop.f32.mrb[0].mxu0
    %v2648 = vadd.f32 0.0, %v2647
    %v2649 = vpop.f32.mrb[0].mxu0
    %2650 = vdwg.mxu0
    %2651 = vmatprep.subr.mxu0 0.0
    %2652 = vmatpush1.msra.mxu0 %v1546
    %2653 = vmatprep.subr.mxu0 0.0
    %2654 = vmatpush1.msra.mxu0 %v1547
    %2655 = vmatprep.subr.mxu0 0.0
    %2656 = vmatpush1.msra.mxu0 %v1548
    %2657 = vmatprep.subr.mxu0 0.0
    %2658 = vmatpush1.msra.mxu0 %v1549
    %2659 = vmatprep.subr.mxu0 0.0
    %2660 = vmatpush1.msra.mxu0 0.0
    %2661 = vmatprep.subr.mxu0 0.0
    %2662 = vmatpush1.msra.mxu0 0.0
    %2663 = vmatprep.subr.mxu0 0.0
    %2664 = vmatpush1.msra.mxu0 0.0
    %2665 = vmatprep.subr.mxu0 0.0
    %2666 = vmatpush1.msra.mxu0 0.0
    %2667 = vmatprep.subr.mxu0 0.0
    %2668 = vmatpush1.msra.mxu0 0.0
    %2669 = vmatprep.subr.mxu0 0.0
    %2670 = vmatpush1.msra.mxu0 0.0
    %2671 = vmatprep.subr.mxu0 0.0
    %2672 = vmatpush1.msra.mxu0 0.0
    %2673 = vmatprep.subr.mxu0 0.0
    %2674 = vmatpush1.msra.mxu0 0.0
    %2675 = vmatprep.subr.mxu0 0.0
    %2676 = vmatpush1.msra.mxu0 0.0
    %2677 = vmatprep.subr.mxu0 0.0
    %2678 = vmatpush1.msra.mxu0 0.0
    %2679 = vmatprep.subr.mxu0 0.0
    %2680 = vmatpush1.msra.mxu0 0.0
    %2681 = vmatprep.subr.mxu0 0.0
    %2682 = vmatpush1.msra.mxu0 0.0
    %2683 = vmatprep.subr.mxu0 0.0
    %2684 = vmatpush1.msra.mxu0 0.0
    %2685 = vmatprep.subr.mxu0 0.0
    %2686 = vmatpush1.msra.mxu0 0.0
    %2687 = vmatprep.subr.mxu0 0.0
    %2688 = vmatpush1.msra.mxu0 0.0
    %2689 = vmatprep.subr.mxu0 0.0
    %2690 = vmatpush1.msra.mxu0 0.0
    %2691 = vmatprep.subr.mxu0 0.0
    %2692 = vmatpush1.msra.mxu0 0.0
    %2693 = vmatprep.subr.mxu0 0.0
    %2694 = vmatpush1.msra.mxu0 0.0
    %2695 = vmatprep.subr.mxu0 0.0
    %2696 = vmatpush1.msra.mxu0 0.0
    %2697 = vmatprep.subr.mxu0 0.0
    %2698 = vmatpush1.msra.mxu0 0.0
    %2699 = vmatprep.subr.mxu0 0.0
    %2700 = vmatpush1.msra.mxu0 0.0
    %2701 = vmatprep.subr.mxu0 0.0
    %2702 = vmatpush1.msra.mxu0 0.0
    %2703 = vmatprep.subr.mxu0 0.0
    %2704 = vmatpush1.msra.mxu0 0.0
    %2705 = vmatprep.subr.mxu0 0.0
    %2706 = vmatpush1.msra.mxu0 0.0
    %2707 = vmatprep.subr.mxu0 0.0
    %2708 = vmatpush1.msra.mxu0 0.0
    %2709 = vmatprep.subr.mxu0 0.0
    %2710 = vmatpush1.msra.mxu0 0.0
    %2711 = vmatprep.subr.mxu0 0.0
    %2712 = vmatpush1.msra.mxu0 0.0
    %2713 = vmatprep.subr.mxu0 0.0
    %2714 = vmatpush1.msra.mxu0 0.0
    %2715 = vmatprep.mubr.f32.mxu0 0.0
    %2716 = vmatmul.mubr.f32.gmra.mrb[0].mxu0 %v1373
    %v2717 = vpop.f32.mrb[0].mxu0
    %v2718 = vadd.f32 %v2648, %v2717
    %v2719 = vpop.f32.mrb[0].mxu0
    %2720 = vdwg.mxu0
    %v2721 = vadd.f32 %v2718, %v1699
    %v2722 = vxor.u32 %v2721, 2147483648
    %v2723 = vmul.f32 %v2722, 1.442695
    %v2724 = vpow.pop %v2723
    %v2725 = vadd.f32 %v2724, 1.0
    %v2726 = vrcp.pop %v2725
    %v2727 = vmul.f32 1.0, %v2726
    %v2728 = vtanh.pop %v2721
    %v2729 = vmul.f32 %v2727, %v2569
    %2731 = vrot.lane.b32.xlu0 %v2728, 64
    %v2732 = vpop.permute.xlu0 %2731
    %v2734 = vmul.f32 %v2727, %v2732
    %2736 = vrot.lane.b32.xlu0 %v2734, 32
    %v2737 = vpop.permute.xlu0 %2736
    %v2739 = vadd.f32 %v2729, %v2737
    %v2740 = vtanh.pop %v2739
    %2742 = vrot.lane.b32.xlu0 %v2740, 64
    %v2743 = vpop.permute.xlu0 %2742
    %v2745 = vmul.f32 %v2727, %v2743
    %2747 = vrot.lane.b32.xlu0 %v2745, 32
    %v2748 = vpop.permute.xlu0 %2747
    %v2749 = vsel %vm127, %v2748, 0
    %2751 = vmatprep.subr.mxu0 0.0
    %2752 = vmatpush1.msra.mxu0 %v1550
    %2753 = vmatprep.subr.mxu0 0.0
    %2754 = vmatpush1.msra.mxu0 %v1551
    %2755 = vmatprep.subr.mxu0 0.0
    %2756 = vmatpush1.msra.mxu0 %v1552
    %2757 = vmatprep.subr.mxu0 0.0
    %2758 = vmatpush1.msra.mxu0 %v1553
    %2759 = vmatprep.subr.mxu0 0.0
    %2760 = vmatpush1.msra.mxu0 0.0
    %2761 = vmatprep.subr.mxu0 0.0
    %2762 = vmatpush1.msra.mxu0 0.0
    %2763 = vmatprep.subr.mxu0 0.0
    %2764 = vmatpush1.msra.mxu0 0.0
    %2765 = vmatprep.subr.mxu0 0.0
    %2766 = vmatpush1.msra.mxu0 0.0
    %2767 = vmatprep.subr.mxu0 0.0
    %2768 = vmatpush1.msra.mxu0 0.0
    %2769 = vmatprep.subr.mxu0 0.0
    %2770 = vmatpush1.msra.mxu0 0.0
    %2771 = vmatprep.subr.mxu0 0.0
    %2772 = vmatpush1.msra.mxu0 0.0
    %2773 = vmatprep.subr.mxu0 0.0
    %2774 = vmatpush1.msra.mxu0 0.0
    %2775 = vmatprep.subr.mxu0 0.0
    %2776 = vmatpush1.msra.mxu0 0.0
    %2777 = vmatprep.subr.mxu0 0.0
    %2778 = vmatpush1.msra.mxu0 0.0
    %2779 = vmatprep.subr.mxu0 0.0
    %2780 = vmatpush1.msra.mxu0 0.0
    %2781 = vmatprep.subr.mxu0 0.0
    %2782 = vmatpush1.msra.mxu0 0.0
    %2783 = vmatprep.subr.mxu0 0.0
    %2784 = vmatpush1.msra.mxu0 0.0
    %2785 = vmatprep.subr.mxu0 0.0
    %2786 = vmatpush1.msra.mxu0 0.0
    %2787 = vmatprep.subr.mxu0 0.0
    %2788 = vmatpush1.msra.mxu0 0.0
    %2789 = vmatprep.subr.mxu0 0.0
    %2790 = vmatpush1.msra.mxu0 0.0
    %2791 = vmatprep.subr.mxu0 0.0
    %2792 = vmatpush1.msra.mxu0 0.0
    %2793 = vmatprep.subr.mxu0 0.0
    %2794 = vmatpush1.msra.mxu0 0.0
    %2795 = vmatprep.subr.mxu0 0.0
    %2796 = vmatpush1.msra.mxu0 0.0
    %2797 = vmatprep.subr.mxu0 0.0
    %2798 = vmatpush1.msra.mxu0 0.0
    %2799 = vmatprep.subr.mxu0 0.0
    %2800 = vmatpush1.msra.mxu0 0.0
    %2801 = vmatprep.subr.mxu0 0.0
    %2802 = vmatpush1.msra.mxu0 0.0
    %2803 = vmatprep.subr.mxu0 0.0
    %2804 = vmatpush1.msra.mxu0 0.0
    %2805 = vmatprep.subr.mxu0 0.0
    %2806 = vmatpush1.msra.mxu0 0.0
    %2807 = vmatprep.subr.mxu0 0.0
    %2808 = vmatpush1.msra.mxu0 0.0
    %2809 = vmatprep.subr.mxu0 0.0
    %2810 = vmatpush1.msra.mxu0 0.0
    %2811 = vmatprep.subr.mxu0 0.0
    %2812 = vmatpush1.msra.mxu0 0.0
    %2813 = vmatprep.subr.mxu0 0.0
    %2814 = vmatpush1.msra.mxu0 0.0
    %2815 = vmatprep.mubr.f32.mxu0 0.0
    %2816 = vmatmul.mubr.f32.gmra.mrb[0].mxu0 %v2749
    %v2817 = vpop.f32.mrb[0].mxu0
    %v2818 = vadd.f32 0.0, %v2817
    %v2819 = vpop.f32.mrb[0].mxu0
    %2820 = vdwg.mxu0
    %2822 = vrot.lane.b32.xlu0 %v1545, 32
    %v2823 = vpop.permute.xlu0 %2822
    %v2824 = vsel %vm127, %v2823, 0
    %2826 = vmatprep.subr.mxu0 0.0
    %2827 = vmatpush1.msra.mxu0 %v1546
    %2828 = vmatprep.subr.mxu0 0.0
    %2829 = vmatpush1.msra.mxu0 %v1547
    %2830 = vmatprep.subr.mxu0 0.0
    %2831 = vmatpush1.msra.mxu0 %v1548
    %2832 = vmatprep.subr.mxu0 0.0
    %2833 = vmatpush1.msra.mxu0 %v1549
    %2834 = vmatprep.subr.mxu0 0.0
    %2835 = vmatpush1.msra.mxu0 0.0
    %2836 = vmatprep.subr.mxu0 0.0
    %2837 = vmatpush1.msra.mxu0 0.0
    %2838 = vmatprep.subr.mxu0 0.0
    %2839 = vmatpush1.msra.mxu0 0.0
    %2840 = vmatprep.subr.mxu0 0.0
    %2841 = vmatpush1.msra.mxu0 0.0
    %2842 = vmatprep.subr.mxu0 0.0
    %2843 = vmatpush1.msra.mxu0 0.0
    %2844 = vmatprep.subr.mxu0 0.0
    %2845 = vmatpush1.msra.mxu0 0.0
    %2846 = vmatprep.subr.mxu0 0.0
    %2847 = vmatpush1.msra.mxu0 0.0
    %2848 = vmatprep.subr.mxu0 0.0
    %2849 = vmatpush1.msra.mxu0 0.0
    %2850 = vmatprep.subr.mxu0 0.0
    %2851 = vmatpush1.msra.mxu0 0.0
    %2852 = vmatprep.subr.mxu0 0.0
    %2853 = vmatpush1.msra.mxu0 0.0
    %2854 = vmatprep.subr.mxu0 0.0
    %2855 = vmatpush1.msra.mxu0 0.0
    %2856 = vmatprep.subr.mxu0 0.0
    %2857 = vmatpush1.msra.mxu0 0.0
    %2858 = vmatprep.subr.mxu0 0.0
    %2859 = vmatpush1.msra.mxu0 0.0
    %2860 = vmatprep.subr.mxu0 0.0
    %2861 = vmatpush1.msra.mxu0 0.0
    %2862 = vmatprep.subr.mxu0 0.0
    %2863 = vmatpush1.msra.mxu0 0.0
    %2864 = vmatprep.subr.mxu0 0.0
    %2865 = vmatpush1.msra.mxu0 0.0
    %2866 = vmatprep.subr.mxu0 0.0
    %2867 = vmatpush1.msra.mxu0 0.0
    %2868 = vmatprep.subr.mxu0 0.0
    %2869 = vmatpush1.msra.mxu0 0.0
    %2870 = vmatprep.subr.mxu0 0.0
    %2871 = vmatpush1.msra.mxu0 0.0
    %2872 = vmatprep.subr.mxu0 0.0
    %2873 = vmatpush1.msra.mxu0 0.0
    %2874 = vmatprep.subr.mxu0 0.0
    %2875 = vmatpush1.msra.mxu0 0.0
    %2876 = vmatprep.subr.mxu0 0.0
    %2877 = vmatpush1.msra.mxu0 0.0
    %2878 = vmatprep.subr.mxu0 0.0
    %2879 = vmatpush1.msra.mxu0 0.0
    %2880 = vmatprep.subr.mxu0 0.0
    %2881 = vmatpush1.msra.mxu0 0.0
    %2882 = vmatprep.subr.mxu0 0.0
    %2883 = vmatpush1.msra.mxu0 0.0
    %2884 = vmatprep.subr.mxu0 0.0
    %2885 = vmatpush1.msra.mxu0 0.0
    %2886 = vmatprep.subr.mxu0 0.0
    %2887 = vmatpush1.msra.mxu0 0.0
    %2888 = vmatprep.subr.mxu0 0.0
    %2889 = vmatpush1.msra.mxu0 0.0
    %2890 = vmatprep.mubr.f32.mxu0 0.0
    %2891 = vmatmul.mubr.f32.gmra.mrb[0].mxu0 %v2824
    %v2892 = vpop.f32.mrb[0].mxu0
    %v2893 = vadd.f32 %v2818, %v2892
    %v2894 = vpop.f32.mrb[0].mxu0
    %2895 = vdwg.mxu0
    %v2896 = vadd.f32 %v2893, %v1699
    %v2897 = vxor.u32 %v2896, 2147483648
    %v2898 = vmul.f32 %v2897, 1.442695
    %v2899 = vpow.pop %v2898
    %v2900 = vadd.f32 %v2899, 1.0
    %v2901 = vrcp.pop %v2900
    %v2902 = vmul.f32 1.0, %v2901
    %v2903 = vtanh.pop %v2896
    %v2904 = vmul.f32 %v2902, %v2739
    %2906 = vrot.lane.b32.xlu0 %v2903, 64
    %v2907 = vpop.permute.xlu0 %2906
    %v2909 = vmul.f32 %v2902, %v2907
    %2911 = vrot.lane.b32.xlu0 %v2909, 32
    %v2912 = vpop.permute.xlu0 %2911
    %v2914 = vadd.f32 %v2904, %v2912
    %v2915 = vtanh.pop %v2914
    %2917 = vrot.lane.b32.xlu0 %v2915, 64
    %v2918 = vpop.permute.xlu0 %2917
    %v2920 = vmul.f32 %v2902, %v2918
    %v2921 = vld [vmem:[%s7] sm:$0x1]
    %v2923 = vlaneseq
    %v2924 = vshrl.u32 %v2923, 7
    %v2925 = vsub.s32 0, %v2924
    %v2926 = vrot.slane %v2921, %v2925
    %2927 = vrot.lane.b32.xlu0 %v2926, 96
    %v2928 = vpop.permute.xlu0 %2927
    %v2930 = vmul.f32 %v2920, %v2928
    %2932 = vrot.lane.b32.xlu0 %v2930, 32
    %v2933 = vpop.permute.xlu0 %2932
    %vm2935 = vcmask 254976
    %v2936 = vsel %vm2935, %v2933, 0.0
    %2937 = vadd.xlane.f32.xlu0 %v2936
    %v2938 = vpop.xlane.xlu0 %2937
    %v2939 = vld [vmem:[#allocation2] sm:$0x1]
    %v2941 = vlaneseq
    %v2942 = vshrl.u32 %v2941, 7
    %v2943 = vsub.s32 0, %v2942
    %v2944 = vrot.slane %v2939, %v2943
    %v2946 = vadd.f32 %v2938, %v2944
    %vm2947 = vcmask 1024
    %2948 = vst.msk [vmem:[%s9] sm:$0x3] %vm2947, %v2946
    // Predicated region
    $region58: #{tpu_custom_call.1} parent=1 // pred_check
      _
    $region59: #{tpu_custom_call.1} parent=1 // pred_check_branch
      %2950 = sbr.rel (0) target = $region61
    $region60: #{tpu_custom_call.1} parent=1 // pred_region
      _
    $region61: #{tpu_custom_call.1} parent=1 // pred_fallthru
      _
    // Predicated region
    $region62: #{tpu_custom_call.1} parent=1 // pred_check
      _
    $region63: #{tpu_custom_call.1} parent=1 // pred_check_branch
      %2952 = sbr.rel (0) target = $region65
    $region64: #{tpu_custom_call.1} parent=1 // pred_region
      _
    $region65: #{tpu_custom_call.1} parent=1 // pred_fallthru
      _
    %2953 = vsyncpa [#allocation4], 1
    %2954 = vsyncpa [#allocation6], 1
    %2955 = vsyncpa [#allocation9], 1

</llo_original>
